<compile_context>
chip_gen: v6e
topology: v6e:2x2x1
jax: 0.10.0
libtpu: 0.0.40
codegen_flags: <defaults>
</compile_context>

<pallas_src>
import functools

import jax
import jax.numpy as jnp
from jax.experimental import pallas as pl
from jax.experimental.pallas import tpu as pltpu


def _round_up(x, m):
    return ((x + m - 1) // m) * m


def _leaky_relu(h, slope=0.2):
    return jnp.where(h > 0, h, slope * h)


def generator_kernel(x_ref,
                     w1_ref, b1_ref,
                     w2_ref, b2_ref,
                     w3_ref, b3_ref,
                     w4_ref, b4_ref,
                     o_ref):
    """Fully fused 4-layer MLP on one batch tile.

    bf16 matmul inputs, f32 MXU accumulation; bias/LeakyReLU/tanh in f32;
    bf16 store.  The tile is processed as two independent row halves in a
    single basic block so the scheduler can overlap one half's matmul with
    the other half's elementwise epilogue.
    """
    tb = x_ref.shape[0]

    def mlp(rows):
        h = jnp.dot(x_ref[rows, :], w1_ref[...],
                    preferred_element_type=jnp.float32) + b1_ref[...]
        h = _leaky_relu(h)
        h = jnp.dot(h.astype(jnp.bfloat16), w2_ref[...],
                    preferred_element_type=jnp.float32) + b2_ref[...]
        h = _leaky_relu(h)
        h = jnp.dot(h.astype(jnp.bfloat16), w3_ref[...],
                    preferred_element_type=jnp.float32) + b3_ref[...]
        h = _leaky_relu(h)
        h = jnp.dot(h.astype(jnp.bfloat16), w4_ref[...],
                    preferred_element_type=jnp.float32) + b4_ref[...]
        return jnp.tanh(h).astype(o_ref.dtype)

    if tb >= 64 and tb % 16 == 0:
        half = tb // 2
        o_ref[pl.ds(0, half), :] = mlp(pl.ds(0, half))
        o_ref[pl.ds(half, half), :] = mlp(pl.ds(half, half))
    else:
        o_ref[...] = mlp(pl.ds(0, tb))


def make_generator_params(key, noise_dim, image_dim, dtype=jnp.float32):
    """Deterministic synthetic params. Weights stored as (in, out); biases as (1, out)."""
    dims = [noise_dim, 256, 512, 1024, image_dim]
    params = []
    for i in range(4):
        key, kw, kb = jax.random.split(key, 3)
        fan_in = dims[i]
        bound = 1.0 / (fan_in ** 0.5)  # matches torch.nn.Linear default init range
        w = jax.random.uniform(kw, (dims[i], dims[i + 1]), dtype, -bound, bound)
        b = jax.random.uniform(kb, (1, dims[i + 1]), dtype, -bound, bound)
        params.append((w, b))
    return params


def _choose_batch_tile(batch, batch_tile):
    """Pick (tile_rows, padded_batch): >=2 tiles once batch >= 32 (v7x megacore),
    each tile <= batch_tile rows, rows rounded to 16 (bf16 sublane packing)."""
    if batch >= 32:
        num_tiles = max(2, pl.cdiv(batch, batch_tile))
    else:
        num_tiles = 1
    tb = _round_up(pl.cdiv(batch, num_tiles), 16)
    return tb, num_tiles * tb


@functools.partial(jax.jit, static_argnames=("batch_tile", "out_dtype"))
def generator_forward(x, params, *, batch_tile=512, out_dtype=jnp.bfloat16):
    """x: (B, noise_dim) float32 -> (B, image_dim) `out_dtype` (default bf16)."""
    B, noise_dim = x.shape
    image_dim = params[3][0].shape[1]

    # ---- Pad noise dim to 128 lanes and the batch to the chosen tiling -----
    k_pad = _round_up(noise_dim, 128)          # 100 -> 128
    tb, b_pad = _choose_batch_tile(B, batch_tile)

    x_p = jnp.zeros((b_pad, k_pad), jnp.bfloat16)
    x_p = x_p.at[:B, :noise_dim].set(x.astype(jnp.bfloat16))

    (w1, b1), (w2, b2), (w3, b3), (w4, b4) = params
    # Zero-pad W1 rows (K) to match padded noise dim; cast all weights to bf16.
    w1_p = jnp.zeros((k_pad, w1.shape[1]), jnp.bfloat16).at[:noise_dim, :].set(
        w1.astype(jnp.bfloat16))
    w2_p = w2.astype(jnp.bfloat16)
    w3_p = w3.astype(jnp.bfloat16)
    w4_p = w4.astype(jnp.bfloat16)          # (1024, image_dim): no column pad
    b1_p = b1.astype(jnp.float32)
    b2_p = b2.astype(jnp.float32)
    b3_p = b3.astype(jnp.float32)
    b4_p = b4.astype(jnp.float32)

    # ---- BlockSpecs ---------------------------------------------------------
    const0 = lambda i: (0, 0)

    def resident(arr):
        # Grid-invariant operand: constant index_map, single-buffered (never
        # re-fetched, so no need for a second VMEM buffer).
        return pl.BlockSpec(arr.shape, const0,
                            pipeline_mode=pl.Buffered(buffer_count=1))

    in_specs = [
        pl.BlockSpec((tb, k_pad), lambda i: (i, 0)),          # x batch tile
        resident(w1_p), resident(b1_p),
        resident(w2_p), resident(b2_p),
        resident(w3_p), resident(b3_p),
        resident(w4_p), resident(b4_p),
    ]
    out_spec = pl.BlockSpec((tb, image_dim), lambda i: (i, 0))

    out_p = pl.pallas_call(
        generator_kernel,
        out_shape=jax.ShapeDtypeStruct((b_pad, image_dim), out_dtype),
        grid_spec=pltpu.PrefetchScalarGridSpec(
            num_scalar_prefetch=0,
            grid=(b_pad // tb,),
            in_specs=in_specs,
            out_specs=out_spec,
        ),
        compiler_params=pltpu.CompilerParams(
            dimension_semantics=("parallel",),   # shard batch tiles across TCs
            vmem_limit_bytes=48 << 20,           # safe on v7x (64 MiB/TC)
        ),
    )(x_p, w1_p, b1_p, w2_p, b2_p, w3_p, b3_p, w4_p, b4_p)

    # Only trim padded batch rows (small); columns are stored unpadded.
    return out_p if b_pad == B else out_p[:B]


def generator_ref_bf16(x, params):
    """Reference mirroring the kernel's bf16-matmul / f32-elementwise math."""
    h = x.astype(jnp.bfloat16)
    for i, (w, b) in enumerate(params):
        h = jnp.dot(h, w.astype(jnp.bfloat16),
                    preferred_element_type=jnp.float32) + b.astype(jnp.float32)
        if i < 3:
            h = jnp.where(h > 0, h, 0.2 * h).astype(jnp.bfloat16)
    return jnp.tanh(h)


def generator_ref_f32(x, params):
    h = x
    for i, (w, b) in enumerate(params):
        h = h @ w + b
        if i < 3:
            h = jnp.where(h > 0, h, 0.2 * h)
    return jnp.tanh(h)


if __name__ == "__main__":
    noise_dim = 100
    image_dim = 784
    batch = 8

    key = jax.random.PRNGKey(0)
    kx, kp = jax.random.split(key)
    x = jax.random.normal(kx, (batch, noise_dim), dtype=jnp.float32)
    params = make_generator_params(kp, noise_dim, image_dim)

    out = generator_forward(x, params)
    out = jax.block_until_ready(out)
    assert out.shape == (batch, image_dim)
    out_f32 = out.astype(jnp.float32)

    # Numerical check against a reference using identical bf16-matmul math
    # (output additionally quantized to bf16 in the kernel).
    ref_bf16 = generator_ref_bf16(x, params)
    assert jnp.allclose(out_f32, ref_bf16, atol=1e-2, rtol=0), \
        "mismatch vs bf16-emulated reference"

    # Semantic sanity check against the pure-f32 PyTorch-equivalent math
    # (loose tolerance: weights/activations/output were quantized to bf16).
    ref_f32 = generator_ref_f32(x, params)
    assert jnp.allclose(out_f32, ref_f32, atol=4e-2, rtol=0), \
        "mismatch vs f32 reference beyond bf16 tolerance"

    print("KERNEL_OK")
</pallas_src>

<mosaic_0001>
module attributes {stable_mosaic.version = 11 : i64} {
  func.func @generator_kernel(%arg0: i32, %arg1: memref<16x128xbf16, #tpu.memory_space<vmem>>, %arg2: memref<128x256xbf16, #tpu.memory_space<vmem>>, %arg3: memref<1x256xf32, #tpu.memory_space<vmem>>, %arg4: memref<256x512xbf16, #tpu.memory_space<vmem>>, %arg5: memref<1x512xf32, #tpu.memory_space<vmem>>, %arg6: memref<512x1024xbf16, #tpu.memory_space<vmem>>, %arg7: memref<1x1024xf32, #tpu.memory_space<vmem>>, %arg8: memref<1024x784xbf16, #tpu.memory_space<vmem>>, %arg9: memref<1x784xf32, #tpu.memory_space<vmem>>, %arg10: memref<16x784xbf16, #tpu.memory_space<vmem>>) attributes {dimension_semantics = [#tpu.dimension_semantics<parallel>], iteration_bounds = array<i64: 1>, scalar_prefetch = 0 : i64, scratch_operands = 0 : i64, tpu.core_type = #tpu.core_type<tc>, window_params = [{transform_indices = @transform_0, window_bounds = array<i64: 16, 128>}, {pipeline_mode = #tpu.pipeline_mode<synchronous>, transform_indices = @transform_1, window_bounds = array<i64: 128, 256>}, {pipeline_mode = #tpu.pipeline_mode<synchronous>, transform_indices = @transform_2, window_bounds = array<i64: 1, 256>}, {pipeline_mode = #tpu.pipeline_mode<synchronous>, transform_indices = @transform_3, window_bounds = array<i64: 256, 512>}, {pipeline_mode = #tpu.pipeline_mode<synchronous>, transform_indices = @transform_4, window_bounds = array<i64: 1, 512>}, {pipeline_mode = #tpu.pipeline_mode<synchronous>, transform_indices = @transform_5, window_bounds = array<i64: 512, 1024>}, {pipeline_mode = #tpu.pipeline_mode<synchronous>, transform_indices = @transform_6, window_bounds = array<i64: 1, 1024>}, {pipeline_mode = #tpu.pipeline_mode<synchronous>, transform_indices = @transform_7, window_bounds = array<i64: 1024, 784>}, {pipeline_mode = #tpu.pipeline_mode<synchronous>, transform_indices = @transform_8, window_bounds = array<i64: 1, 784>}, {transform_indices = @transform_9, window_bounds = array<i64: 16, 784>}]} {
    %c0 = arith.constant 0 : index
    %c0_0 = arith.constant 0 : index
    %0 = vector.load %arg1[%c0, %c0_0] : memref<16x128xbf16, #tpu.memory_space<vmem>>, vector<16x128xbf16>
    %c0_1 = arith.constant 0 : index
    %c0_2 = arith.constant 0 : index
    %1 = vector.load %arg2[%c0_1, %c0_2] : memref<128x256xbf16, #tpu.memory_space<vmem>>, vector<128x256xbf16>
    %cst = arith.constant dense<0.000000e+00> : vector<16x256xf32>
    %2 = tpu.matmul %0, %1, %cst {dimension_numbers = #tpu.dot_dimension_numbers<[1], [0], [0], [1], [0, 0, 1, 1], [], []>} : vector<16x128xbf16>, vector<128x256xbf16>, vector<16x256xf32> -> vector<16x256xf32>
    %c0_3 = arith.constant 0 : index
    %c0_4 = arith.constant 0 : index
    %3 = vector.load %arg3[%c0_3, %c0_4] : memref<1x256xf32, #tpu.memory_space<vmem>>, vector<1x256xf32>
    %4 = vector.broadcast %3 : vector<1x256xf32> to vector<16x256xf32>
    %5 = arith.addf %2, %4 : vector<16x256xf32>
    %cst_5 = arith.constant 0.000000e+00 : f32
    %6 = vector.broadcast %cst_5 : f32 to vector<16x256xf32>
    %7 = arith.cmpf ogt, %5, %6 : vector<16x256xf32>
    %cst_6 = arith.constant 2.000000e-01 : f32
    %8 = vector.broadcast %cst_6 : f32 to vector<16x256xf32>
    %9 = arith.mulf %8, %5 : vector<16x256xf32>
    %10 = arith.select %7, %5, %9 : vector<16x256xi1>, vector<16x256xf32>
    %11 = arith.truncf %10 : vector<16x256xf32> to vector<16x256xbf16>
    %c0_7 = arith.constant 0 : index
    %c0_8 = arith.constant 0 : index
    %12 = vector.load %arg4[%c0_7, %c0_8] : memref<256x512xbf16, #tpu.memory_space<vmem>>, vector<256x512xbf16>
    %cst_9 = arith.constant dense<0.000000e+00> : vector<16x512xf32>
    %13 = tpu.matmul %11, %12, %cst_9 {dimension_numbers = #tpu.dot_dimension_numbers<[1], [0], [0], [1], [0, 0, 1, 1], [], []>} : vector<16x256xbf16>, vector<256x512xbf16>, vector<16x512xf32> -> vector<16x512xf32>
    %c0_10 = arith.constant 0 : index
    %c0_11 = arith.constant 0 : index
    %14 = vector.load %arg5[%c0_10, %c0_11] : memref<1x512xf32, #tpu.memory_space<vmem>>, vector<1x512xf32>
    %15 = vector.broadcast %14 : vector<1x512xf32> to vector<16x512xf32>
    %16 = arith.addf %13, %15 : vector<16x512xf32>
    %cst_12 = arith.constant 0.000000e+00 : f32
    %17 = vector.broadcast %cst_12 : f32 to vector<16x512xf32>
    %18 = arith.cmpf ogt, %16, %17 : vector<16x512xf32>
    %cst_13 = arith.constant 2.000000e-01 : f32
    %19 = vector.broadcast %cst_13 : f32 to vector<16x512xf32>
    %20 = arith.mulf %19, %16 : vector<16x512xf32>
    %21 = arith.select %18, %16, %20 : vector<16x512xi1>, vector<16x512xf32>
    %22 = arith.truncf %21 : vector<16x512xf32> to vector<16x512xbf16>
    %c0_14 = arith.constant 0 : index
    %c0_15 = arith.constant 0 : index
    %23 = vector.load %arg6[%c0_14, %c0_15] : memref<512x1024xbf16, #tpu.memory_space<vmem>>, vector<512x1024xbf16>
    %cst_16 = arith.constant dense<0.000000e+00> : vector<16x1024xf32>
    %24 = tpu.matmul %22, %23, %cst_16 {dimension_numbers = #tpu.dot_dimension_numbers<[1], [0], [0], [1], [0, 0, 1, 1], [], []>} : vector<16x512xbf16>, vector<512x1024xbf16>, vector<16x1024xf32> -> vector<16x1024xf32>
    %c0_17 = arith.constant 0 : index
    %c0_18 = arith.constant 0 : index
    %25 = vector.load %arg7[%c0_17, %c0_18] : memref<1x1024xf32, #tpu.memory_space<vmem>>, vector<1x1024xf32>
    %26 = vector.broadcast %25 : vector<1x1024xf32> to vector<16x1024xf32>
    %27 = arith.addf %24, %26 : vector<16x1024xf32>
    %cst_19 = arith.constant 0.000000e+00 : f32
    %28 = vector.broadcast %cst_19 : f32 to vector<16x1024xf32>
    %29 = arith.cmpf ogt, %27, %28 : vector<16x1024xf32>
    %cst_20 = arith.constant 2.000000e-01 : f32
    %30 = vector.broadcast %cst_20 : f32 to vector<16x1024xf32>
    %31 = arith.mulf %30, %27 : vector<16x1024xf32>
    %32 = arith.select %29, %27, %31 : vector<16x1024xi1>, vector<16x1024xf32>
    %33 = arith.truncf %32 : vector<16x1024xf32> to vector<16x1024xbf16>
    %c0_21 = arith.constant 0 : index
    %c0_22 = arith.constant 0 : index
    %34 = vector.load %arg8[%c0_21, %c0_22] : memref<1024x784xbf16, #tpu.memory_space<vmem>>, vector<1024x784xbf16>
    %cst_23 = arith.constant dense<0.000000e+00> : vector<16x784xf32>
    %35 = tpu.matmul %33, %34, %cst_23 {dimension_numbers = #tpu.dot_dimension_numbers<[1], [0], [0], [1], [0, 0, 1, 1], [], []>} : vector<16x1024xbf16>, vector<1024x784xbf16>, vector<16x784xf32> -> vector<16x784xf32>
    %c0_24 = arith.constant 0 : index
    %c0_25 = arith.constant 0 : index
    %36 = vector.load %arg9[%c0_24, %c0_25] : memref<1x784xf32, #tpu.memory_space<vmem>>, vector<1x784xf32>
    %37 = vector.broadcast %36 : vector<1x784xf32> to vector<16x784xf32>
    %38 = arith.addf %35, %37 : vector<16x784xf32>
    %39 = math.tanh %38 : vector<16x784xf32>
    %40 = arith.truncf %39 : vector<16x784xf32> to vector<16x784xbf16>
    %c0_26 = arith.constant 0 : index
    %c0_27 = arith.constant 0 : index
    %41 = vector.load %arg10[%c0_26, %c0_27] : memref<16x784xbf16, #tpu.memory_space<vmem>>, vector<16x784xbf16>
    tpu.vector_store %arg10[%c0_26, %c0_27], %40 {strides = array<i32>} : memref<16x784xbf16, #tpu.memory_space<vmem>>, vector<16x784xbf16>,
    return
  }
  func.func @transform_0(%arg0: i32) -> (i32, i32) {
    %c0_i32 = arith.constant 0 : i32
    %c0_i32_0 = arith.constant 0 : i32
    return %arg0, %c0_i32 : i32, i32
  }
  func.func @transform_1(%arg0: i32) -> (i32, i32) {
    %c0_i32 = arith.constant 0 : i32
    %c0_i32_0 = arith.constant 0 : i32
    %c0_i32_1 = arith.constant 0 : i32
    return %c0_i32, %c0_i32_0 : i32, i32
  }
  func.func @transform_2(%arg0: i32) -> (i32, i32) {
    %c0_i32 = arith.constant 0 : i32
    %c0_i32_0 = arith.constant 0 : i32
    %c0_i32_1 = arith.constant 0 : i32
    return %c0_i32, %c0_i32_0 : i32, i32
  }
  func.func @transform_3(%arg0: i32) -> (i32, i32) {
    %c0_i32 = arith.constant 0 : i32
    %c0_i32_0 = arith.constant 0 : i32
    %c0_i32_1 = arith.constant 0 : i32
    return %c0_i32, %c0_i32_0 : i32, i32
  }
  func.func @transform_4(%arg0: i32) -> (i32, i32) {
    %c0_i32 = arith.constant 0 : i32
    %c0_i32_0 = arith.constant 0 : i32
    %c0_i32_1 = arith.constant 0 : i32
    return %c0_i32, %c0_i32_0 : i32, i32
  }
  func.func @transform_5(%arg0: i32) -> (i32, i32) {
    %c0_i32 = arith.constant 0 : i32
    %c0_i32_0 = arith.constant 0 : i32
    %c0_i32_1 = arith.constant 0 : i32
    return %c0_i32, %c0_i32_0 : i32, i32
  }
  func.func @transform_6(%arg0: i32) -> (i32, i32) {
    %c0_i32 = arith.constant 0 : i32
    %c0_i32_0 = arith.constant 0 : i32
    %c0_i32_1 = arith.constant 0 : i32
    return %c0_i32, %c0_i32_0 : i32, i32
  }
  func.func @transform_7(%arg0: i32) -> (i32, i32) {
    %c0_i32 = arith.constant 0 : i32
    %c0_i32_0 = arith.constant 0 : i32
    %c0_i32_1 = arith.constant 0 : i32
    return %c0_i32, %c0_i32_0 : i32, i32
  }
  func.func @transform_8(%arg0: i32) -> (i32, i32) {
    %c0_i32 = arith.constant 0 : i32
    %c0_i32_0 = arith.constant 0 : i32
    %c0_i32_1 = arith.constant 0 : i32
    return %c0_i32, %c0_i32_0 : i32, i32
  }
  func.func @transform_9(%arg0: i32) -> (i32, i32) {
    %c0_i32 = arith.constant 0 : i32
    %c0_i32_0 = arith.constant 0 : i32
    return %arg0, %c0_i32 : i32, i32
  }
}

</mosaic_0001>

<llo_original>
// kernel: generator_forward.1
$region0: #{generator_forward.1}
  #allocation0 [shape = 'u32[]', space=smem, size = 0x4, offset = 0x4, fixed_abs, tag = 'smem constant byte address 0x4 - core index']
  #allocation1 [shape = 'u32[144,128]{1,0:T(1,128)}', space=vmem, size = 0x12000, scoped, tag = 'internal scratch']
  %s0 = inlined_call_operand.vmem [shape: bf16[16,128], index: 0, kind: input, shape index: {}]
  %s1 = inlined_call_operand.vmem [shape: bf16[128,256], index: 1, kind: input, shape index: {}]
  %s2 = inlined_call_operand.vmem [shape: f32[1,256], index: 2, kind: input, shape index: {}]
  %s3 = inlined_call_operand.vmem [shape: bf16[256,512], index: 3, kind: input, shape index: {}]
  %s4 = inlined_call_operand.vmem [shape: f32[1,512], index: 4, kind: input, shape index: {}]
  %s5 = inlined_call_operand.vmem [shape: bf16[512,1024], index: 5, kind: input, shape index: {}]
  %s6 = inlined_call_operand.vmem [shape: f32[1,1024], index: 6, kind: input, shape index: {}]
  %s7 = inlined_call_operand.vmem [shape: bf16[1024,784], index: 7, kind: input, shape index: {}]
  %s8 = inlined_call_operand.vmem [shape: f32[1,784], index: 8, kind: input, shape index: {}]
  %s9 = inlined_call_operand.vmem [shape: bf16[16,784], index: 9, kind: output, shape index: {}]
  %s10 = sld [smem:[#allocation0]]
  $region46: #{generator_forward.1} parent=0
    _
  %s12 = ssub.s32 1, %s10
  %s13 = scalar_select 0, %s12, %s10
  // Predicated region
  $region2: #{generator_forward.1} parent=0 // pred_check
    _
  $region3: #{generator_forward.1} parent=0 // pred_check_branch
    %15 = sbr.rel (0) target = $region5
  $region4: #{generator_forward.1} parent=0 // pred_region
    _
  $region5: #{generator_forward.1} parent=0 // pred_fallthru
    _
  // Predicated region
  $region6: #{generator_forward.1} parent=0 // pred_check
    _
  $region7: #{generator_forward.1} parent=0 // pred_check_branch
    %17 = sbr.rel (0) target = $region9
  $region8: #{generator_forward.1} parent=0 // pred_region
    _
  $region9: #{generator_forward.1} parent=0 // pred_fallthru
    _
  // Predicated region
  $region10: #{generator_forward.1} parent=0 // pred_check
    _
  $region11: #{generator_forward.1} parent=0 // pred_check_branch
    %19 = sbr.rel (0) target = $region13
  $region12: #{generator_forward.1} parent=0 // pred_region
    _
  $region13: #{generator_forward.1} parent=0 // pred_fallthru
    _
  // Predicated region
  $region14: #{generator_forward.1} parent=0 // pred_check
    _
  $region15: #{generator_forward.1} parent=0 // pred_check_branch
    %21 = sbr.rel (0) target = $region17
  $region16: #{generator_forward.1} parent=0 // pred_region
    _
  $region17: #{generator_forward.1} parent=0 // pred_fallthru
    _
  // Predicated region
  $region18: #{generator_forward.1} parent=0 // pred_check
    _
  $region19: #{generator_forward.1} parent=0 // pred_check_branch
    %23 = sbr.rel (0) target = $region21
  $region20: #{generator_forward.1} parent=0 // pred_region
    _
  $region21: #{generator_forward.1} parent=0 // pred_fallthru
    _
  // Predicated region
  $region22: #{generator_forward.1} parent=0 // pred_check
    _
  $region23: #{generator_forward.1} parent=0 // pred_check_branch
    %25 = sbr.rel (0) target = $region25
  $region24: #{generator_forward.1} parent=0 // pred_region
    _
  $region25: #{generator_forward.1} parent=0 // pred_fallthru
    _
  // Predicated region
  $region26: #{generator_forward.1} parent=0 // pred_check
    _
  $region27: #{generator_forward.1} parent=0 // pred_check_branch
    %27 = sbr.rel (0) target = $region29
  $region28: #{generator_forward.1} parent=0 // pred_region
    _
  $region29: #{generator_forward.1} parent=0 // pred_fallthru
    _
  // Predicated region
  $region30: #{generator_forward.1} parent=0 // pred_check
    _
  $region31: #{generator_forward.1} parent=0 // pred_check_branch
    %29 = sbr.rel (0) target = $region33
  $region32: #{generator_forward.1} parent=0 // pred_region
    _
  $region33: #{generator_forward.1} parent=0 // pred_fallthru
    _
  // Predicated region
  $region34: #{generator_forward.1} parent=0 // pred_check
    _
  $region35: #{generator_forward.1} parent=0 // pred_check_branch
    %31 = sbr.rel (0) target = $region37
  $region36: #{generator_forward.1} parent=0 // pred_region
    _
  $region37: #{generator_forward.1} parent=0 // pred_fallthru
    _
  %v33 = vld [vmem:[%s0] sm:$0xf]
  %v34 = vld [vmem:[%s0 + $0x4] sm:$0xf]
  %v35 = vld [vmem:[%s1] sm:$0xff]
  %v36 = vld [vmem:[%s1 + $0x8] sm:$0xff]
  %v37 = vld [vmem:[%s1 + $0x10] sm:$0xff]
  %v38 = vld [vmem:[%s1 + $0x18] sm:$0xff]
  %v39 = vld [vmem:[%s1 + $0x20] sm:$0xff]
  %v40 = vld [vmem:[%s1 + $0x28] sm:$0xff]
  %v41 = vld [vmem:[%s1 + $0x30] sm:$0xff]
  %v42 = vld [vmem:[%s1 + $0x38] sm:$0xff]
  %v43 = vld [vmem:[%s1 + $0x40] sm:$0xff]
  %v44 = vld [vmem:[%s1 + $0x48] sm:$0xff]
  %v45 = vld [vmem:[%s1 + $0x50] sm:$0xff]
  %v46 = vld [vmem:[%s1 + $0x58] sm:$0xff]
  %v47 = vld [vmem:[%s1 + $0x60] sm:$0xff]
  %v48 = vld [vmem:[%s1 + $0x68] sm:$0xff]
  %v49 = vld [vmem:[%s1 + $0x70] sm:$0xff]
  %v50 = vld [vmem:[%s1 + $0x78] sm:$0xff]
  %v51 = vld [vmem:[%s2] sm:$0x3]
  %v53 = vlaneseq
  %v54 = vshrl.u32 %v53, 7
  %v55 = vsub.s32 0, %v54
  %v56 = vrot.slane %v51, %v55
  %v57 = vlaneseq
  %v58 = vshrl.u32 %v57, 7
  %v59 = vsub.s32 1, %v58
  %v60 = vrot.slane %v51, %v59
  %v65 = vunpack.c.l.b16 %v33
  %v66 = vunpack.c.l.b16 %v34
  %v67 = vpack.c.b16 %v66, %v65
  %v85 = vunpack.c.l.b16 %v35
  %v86 = vunpack.c.h.b16 %v35
  %v87 = vunpack.c.l.b16 %v36
  %v88 = vunpack.c.h.b16 %v36
  %v89 = vunpack.c.l.b16 %v37
  %v90 = vunpack.c.h.b16 %v37
  %v91 = vunpack.c.l.b16 %v38
  %v92 = vunpack.c.h.b16 %v38
  %v93 = vunpack.c.l.b16 %v39
  %v94 = vunpack.c.h.b16 %v39
  %v95 = vunpack.c.l.b16 %v40
  %v96 = vunpack.c.h.b16 %v40
  %v97 = vunpack.c.l.b16 %v41
  %v98 = vunpack.c.h.b16 %v41
  %v99 = vunpack.c.l.b16 %v42
  %v100 = vunpack.c.h.b16 %v42
  %v101 = vunpack.c.l.b16 %v43
  %v102 = vunpack.c.h.b16 %v43
  %v103 = vunpack.c.l.b16 %v44
  %v104 = vunpack.c.h.b16 %v44
  %v105 = vunpack.c.l.b16 %v45
  %v106 = vunpack.c.h.b16 %v45
  %v107 = vunpack.c.l.b16 %v46
  %v108 = vunpack.c.h.b16 %v46
  %v109 = vunpack.c.l.b16 %v47
  %v110 = vunpack.c.h.b16 %v47
  %v111 = vunpack.c.l.b16 %v48
  %v112 = vunpack.c.h.b16 %v48
  %v113 = vunpack.c.l.b16 %v49
  %v114 = vunpack.c.h.b16 %v49
  %v115 = vunpack.c.l.b16 %v50
  %v116 = vunpack.c.h.b16 %v50
  %v117 = vpack.c.b16 %v87, %v85
  %v118 = vpack.c.b16 %v88, %v86
  %v119 = vpack.c.b16 %v91, %v89
  %v120 = vpack.c.b16 %v92, %v90
  %v121 = vpack.c.b16 %v95, %v93
  %v122 = vpack.c.b16 %v96, %v94
  %v123 = vpack.c.b16 %v99, %v97
  %v124 = vpack.c.b16 %v100, %v98
  %v125 = vpack.c.b16 %v103, %v101
  %v126 = vpack.c.b16 %v104, %v102
  %v127 = vpack.c.b16 %v107, %v105
  %v128 = vpack.c.b16 %v108, %v106
  %v129 = vpack.c.b16 %v111, %v109
  %v130 = vpack.c.b16 %v112, %v110
  %v131 = vpack.c.b16 %v115, %v113
  %v132 = vpack.c.b16 %v116, %v114
  %149 = vmatprep.subr.bf16.mxu0 %v132
  %150 = vmatpush1.bf16.msra.mxu0 %v131
  %151 = vmatprep.subr.bf16.mxu0 %v130
  %152 = vmatpush1.bf16.msra.mxu0 %v129
  %153 = vmatprep.subr.bf16.mxu0 %v128
  %154 = vmatpush1.bf16.msra.mxu0 %v127
  %155 = vmatprep.subr.bf16.mxu0 %v126
  %156 = vmatpush1.bf16.msra.mxu0 %v125
  %157 = vmatprep.subr.bf16.mxu0 %v124
  %158 = vmatpush1.bf16.msra.mxu0 %v123
  %159 = vmatprep.subr.bf16.mxu0 %v122
  %160 = vmatpush1.bf16.msra.mxu0 %v121
  %161 = vmatprep.subr.bf16.mxu0 %v120
  %162 = vmatpush1.bf16.msra.mxu0 %v119
  %163 = vmatprep.subr.bf16.mxu0 %v118
  %164 = vmatpush1.bf16.msra.mxu0 %v117
  %165 = vmatprep.subr.bf16.mxu0 0
  %166 = vmatpush2.bf16.msra.mxu0 0
  %167 = vmatprep.subr.bf16.mxu0 0
  %168 = vmatpush2.bf16.msra.mxu0 0
  %169 = vmatprep.subr.bf16.mxu0 0
  %170 = vmatpush2.bf16.msra.mxu0 0
  %171 = vmatprep.subr.bf16.mxu0 0
  %172 = vmatpush2.bf16.msra.mxu0 0
  %173 = vmatprep.subr.bf16.mxu0 0
  %174 = vmatpush2.bf16.msra.mxu0 0
  %175 = vmatprep.subr.bf16.mxu0 0
  %176 = vmatpush2.bf16.msra.mxu0 0
  %177 = vmatprep.subr.bf16.mxu0 0
  %178 = vmatpush2.bf16.msra.mxu0 0
  %179 = vmatprep.subr.bf16.mxu0 0
  %180 = vmatpush2.bf16.msra.mxu0 0
  %181 = vmatprep.mubr.bf16.mxu0 0
  %182 = vmatmul.mubr.bf16.gmra.mxu0 %v67
  %v183 = vpop.f32.mrf.mxu0
  %v184 = vadd.f32 %v56, %v183
  %v185 = vpop.f32.mrf.mxu0
  %v186 = vadd.f32 %v60, %v185
  %v187 = vpop.f32.mrf.mxu0
  %v188 = vadd.f32 %v56, %v187
  %v189 = vpop.f32.mrf.mxu0
  %v190 = vadd.f32 %v60, %v189
  %191 = vdwg.mxu0
  %vm192 = vcmp.gt.f32.partialorder %v184, 0.0
  %vm193 = vcmp.gt.f32.partialorder %v186, 0.0
  %vm194 = vcmp.gt.f32.partialorder %v188, 0.0
  %vm195 = vcmp.gt.f32.partialorder %v190, 0.0
  %v196 = vmul.f32 %v184, 0.2
  %v197 = vmul.f32 %v186, 0.2
  %v198 = vmul.f32 %v188, 0.2
  %v199 = vmul.f32 %v190, 0.2
  %v200 = vsel %vm192, %v184, %v196
  %v201 = vsel %vm193, %v186, %v197
  %v202 = vsel %vm194, %v188, %v198
  %v203 = vsel %vm195, %v190, %v199
  %v204 = vpack.c.bf16 %v202, %v200
  %v205 = vpack.c.bf16 %v203, %v201
  %v206 = vld [vmem:[%s3] sm:$0xff]
  %v207 = vld [vmem:[%s3 + $0x8] sm:$0xff]
  %v208 = vld [vmem:[%s3 + $0x10] sm:$0xff]
  %v209 = vld [vmem:[%s3 + $0x18] sm:$0xff]
  %v210 = vld [vmem:[%s3 + $0x20] sm:$0xff]
  %v211 = vld [vmem:[%s3 + $0x28] sm:$0xff]
  %v212 = vld [vmem:[%s3 + $0x30] sm:$0xff]
  %v213 = vld [vmem:[%s3 + $0x38] sm:$0xff]
  %v214 = vld [vmem:[%s3 + $0x40] sm:$0xff]
  %v215 = vld [vmem:[%s3 + $0x48] sm:$0xff]
  %v216 = vld [vmem:[%s3 + $0x50] sm:$0xff]
  %v217 = vld [vmem:[%s3 + $0x58] sm:$0xff]
  %v218 = vld [vmem:[%s3 + $0x60] sm:$0xff]
  %v219 = vld [vmem:[%s3 + $0x68] sm:$0xff]
  %v220 = vld [vmem:[%s3 + $0x70] sm:$0xff]
  %v221 = vld [vmem:[%s3 + $0x78] sm:$0xff]
  %v222 = vld [vmem:[%s3 + $0x80] sm:$0xff]
  %v223 = vld [vmem:[%s3 + $0x88] sm:$0xff]
  %v224 = vld [vmem:[%s3 + $0x90] sm:$0xff]
  %v225 = vld [vmem:[%s3 + $0x98] sm:$0xff]
  %v226 = vld [vmem:[%s3 + $0xa0] sm:$0xff]
  %v227 = vld [vmem:[%s3 + $0xa8] sm:$0xff]
  %v228 = vld [vmem:[%s3 + $0xb0] sm:$0xff]
  %v229 = vld [vmem:[%s3 + $0xb8] sm:$0xff]
  %v230 = vld [vmem:[%s3 + $0xc0] sm:$0xff]
  %v231 = vld [vmem:[%s3 + $0xc8] sm:$0xff]
  %v232 = vld [vmem:[%s3 + $0xd0] sm:$0xff]
  %v233 = vld [vmem:[%s3 + $0xd8] sm:$0xff]
  %v234 = vld [vmem:[%s3 + $0xe0] sm:$0xff]
  %v235 = vld [vmem:[%s3 + $0xe8] sm:$0xff]
  %v236 = vld [vmem:[%s3 + $0xf0] sm:$0xff]
  %v237 = vld [vmem:[%s3 + $0xf8] sm:$0xff]
  %v238 = vld [vmem:[%s3 + $0x100] sm:$0xff]
  %v239 = vld [vmem:[%s3 + $0x108] sm:$0xff]
  %v240 = vld [vmem:[%s3 + $0x110] sm:$0xff]
  %v241 = vld [vmem:[%s3 + $0x118] sm:$0xff]
  %v242 = vld [vmem:[%s3 + $0x120] sm:$0xff]
  %v243 = vld [vmem:[%s3 + $0x128] sm:$0xff]
  %v244 = vld [vmem:[%s3 + $0x130] sm:$0xff]
  %v245 = vld [vmem:[%s3 + $0x138] sm:$0xff]
  %v246 = vld [vmem:[%s3 + $0x140] sm:$0xff]
  %v247 = vld [vmem:[%s3 + $0x148] sm:$0xff]
  %v248 = vld [vmem:[%s3 + $0x150] sm:$0xff]
  %v249 = vld [vmem:[%s3 + $0x158] sm:$0xff]
  %v250 = vld [vmem:[%s3 + $0x160] sm:$0xff]
  %v251 = vld [vmem:[%s3 + $0x168] sm:$0xff]
  %v252 = vld [vmem:[%s3 + $0x170] sm:$0xff]
  %v253 = vld [vmem:[%s3 + $0x178] sm:$0xff]
  %v254 = vld [vmem:[%s3 + $0x180] sm:$0xff]
  %v255 = vld [vmem:[%s3 + $0x188] sm:$0xff]
  %v256 = vld [vmem:[%s3 + $0x190] sm:$0xff]
  %v257 = vld [vmem:[%s3 + $0x198] sm:$0xff]
  %v258 = vld [vmem:[%s3 + $0x1a0] sm:$0xff]
  %v259 = vld [vmem:[%s3 + $0x1a8] sm:$0xff]
  %v260 = vld [vmem:[%s3 + $0x1b0] sm:$0xff]
  %v261 = vld [vmem:[%s3 + $0x1b8] sm:$0xff]
  %v262 = vld [vmem:[%s3 + $0x1c0] sm:$0xff]
  %v263 = vld [vmem:[%s3 + $0x1c8] sm:$0xff]
  %v264 = vld [vmem:[%s3 + $0x1d0] sm:$0xff]
  %v265 = vld [vmem:[%s3 + $0x1d8] sm:$0xff]
  %v266 = vld [vmem:[%s3 + $0x1e0] sm:$0xff]
  %v267 = vld [vmem:[%s3 + $0x1e8] sm:$0xff]
  %v268 = vld [vmem:[%s3 + $0x1f0] sm:$0xff]
  %v269 = vld [vmem:[%s3 + $0x1f8] sm:$0xff]
  %v270 = vld [vmem:[%s4] sm:$0xf]
  %v272 = vlaneseq
  %v273 = vshrl.u32 %v272, 7
  %v274 = vsub.s32 0, %v273
  %v275 = vrot.slane %v270, %v274
  %v276 = vlaneseq
  %v277 = vshrl.u32 %v276, 7
  %v278 = vsub.s32 1, %v277
  %v279 = vrot.slane %v270, %v278
  %v280 = vlaneseq
  %v281 = vshrl.u32 %v280, 7
  %v282 = vsub.s32 2, %v281
  %v283 = vrot.slane %v270, %v282
  %v284 = vlaneseq
  %v285 = vshrl.u32 %v284, 7
  %v286 = vsub.s32 3, %v285
  %v287 = vrot.slane %v270, %v286
  %v356 = vunpack.c.l.b16 %v206
  %v357 = vunpack.c.h.b16 %v206
  %v358 = vunpack.c.l.b16 %v207
  %v359 = vunpack.c.h.b16 %v207
  %v360 = vunpack.c.l.b16 %v208
  %v361 = vunpack.c.h.b16 %v208
  %v362 = vunpack.c.l.b16 %v209
  %v363 = vunpack.c.h.b16 %v209
  %v364 = vunpack.c.l.b16 %v210
  %v365 = vunpack.c.h.b16 %v210
  %v366 = vunpack.c.l.b16 %v211
  %v367 = vunpack.c.h.b16 %v211
  %v368 = vunpack.c.l.b16 %v212
  %v369 = vunpack.c.h.b16 %v212
  %v370 = vunpack.c.l.b16 %v213
  %v371 = vunpack.c.h.b16 %v213
  %v372 = vunpack.c.l.b16 %v214
  %v373 = vunpack.c.h.b16 %v214
  %v374 = vunpack.c.l.b16 %v215
  %v375 = vunpack.c.h.b16 %v215
  %v376 = vunpack.c.l.b16 %v216
  %v377 = vunpack.c.h.b16 %v216
  %v378 = vunpack.c.l.b16 %v217
  %v379 = vunpack.c.h.b16 %v217
  %v380 = vunpack.c.l.b16 %v218
  %v381 = vunpack.c.h.b16 %v218
  %v382 = vunpack.c.l.b16 %v219
  %v383 = vunpack.c.h.b16 %v219
  %v384 = vunpack.c.l.b16 %v220
  %v385 = vunpack.c.h.b16 %v220
  %v386 = vunpack.c.l.b16 %v221
  %v387 = vunpack.c.h.b16 %v221
  %v388 = vunpack.c.l.b16 %v222
  %v389 = vunpack.c.h.b16 %v222
  %v390 = vunpack.c.l.b16 %v223
  %v391 = vunpack.c.h.b16 %v223
  %v392 = vunpack.c.l.b16 %v224
  %v393 = vunpack.c.h.b16 %v224
  %v394 = vunpack.c.l.b16 %v225
  %v395 = vunpack.c.h.b16 %v225
  %v396 = vunpack.c.l.b16 %v226
  %v397 = vunpack.c.h.b16 %v226
  %v398 = vunpack.c.l.b16 %v227
  %v399 = vunpack.c.h.b16 %v227
  %v400 = vunpack.c.l.b16 %v228
  %v401 = vunpack.c.h.b16 %v228
  %v402 = vunpack.c.l.b16 %v229
  %v403 = vunpack.c.h.b16 %v229
  %v404 = vunpack.c.l.b16 %v230
  %v405 = vunpack.c.h.b16 %v230
  %v406 = vunpack.c.l.b16 %v231
  %v407 = vunpack.c.h.b16 %v231
  %v408 = vunpack.c.l.b16 %v232
  %v409 = vunpack.c.h.b16 %v232
  %v410 = vunpack.c.l.b16 %v233
  %v411 = vunpack.c.h.b16 %v233
  %v412 = vunpack.c.l.b16 %v234
  %v413 = vunpack.c.h.b16 %v234
  %v414 = vunpack.c.l.b16 %v235
  %v415 = vunpack.c.h.b16 %v235
  %v416 = vunpack.c.l.b16 %v236
  %v417 = vunpack.c.h.b16 %v236
  %v418 = vunpack.c.l.b16 %v237
  %v419 = vunpack.c.h.b16 %v237
  %v420 = vunpack.c.l.b16 %v238
  %v421 = vunpack.c.h.b16 %v238
  %v422 = vunpack.c.l.b16 %v239
  %v423 = vunpack.c.h.b16 %v239
  %v424 = vunpack.c.l.b16 %v240
  %v425 = vunpack.c.h.b16 %v240
  %v426 = vunpack.c.l.b16 %v241
  %v427 = vunpack.c.h.b16 %v241
  %v428 = vunpack.c.l.b16 %v242
  %v429 = vunpack.c.h.b16 %v242
  %v430 = vunpack.c.l.b16 %v243
  %v431 = vunpack.c.h.b16 %v243
  %v432 = vunpack.c.l.b16 %v244
  %v433 = vunpack.c.h.b16 %v244
  %v434 = vunpack.c.l.b16 %v245
  %v435 = vunpack.c.h.b16 %v245
  %v436 = vunpack.c.l.b16 %v246
  %v437 = vunpack.c.h.b16 %v246
  %v438 = vunpack.c.l.b16 %v247
  %v439 = vunpack.c.h.b16 %v247
  %v440 = vunpack.c.l.b16 %v248
  %v441 = vunpack.c.h.b16 %v248
  %v442 = vunpack.c.l.b16 %v249
  %v443 = vunpack.c.h.b16 %v249
  %v444 = vunpack.c.l.b16 %v250
  %v445 = vunpack.c.h.b16 %v250
  %v446 = vunpack.c.l.b16 %v251
  %v447 = vunpack.c.h.b16 %v251
  %v448 = vunpack.c.l.b16 %v252
  %v449 = vunpack.c.h.b16 %v252
  %v450 = vunpack.c.l.b16 %v253
  %v451 = vunpack.c.h.b16 %v253
  %v452 = vunpack.c.l.b16 %v254
  %v453 = vunpack.c.h.b16 %v254
  %v454 = vunpack.c.l.b16 %v255
  %v455 = vunpack.c.h.b16 %v255
  %v456 = vunpack.c.l.b16 %v256
  %v457 = vunpack.c.h.b16 %v256
  %v458 = vunpack.c.l.b16 %v257
  %v459 = vunpack.c.h.b16 %v257
  %v460 = vunpack.c.l.b16 %v258
  %v461 = vunpack.c.h.b16 %v258
  %v462 = vunpack.c.l.b16 %v259
  %v463 = vunpack.c.h.b16 %v259
  %v464 = vunpack.c.l.b16 %v260
  %v465 = vunpack.c.h.b16 %v260
  %v466 = vunpack.c.l.b16 %v261
  %v467 = vunpack.c.h.b16 %v261
  %v468 = vunpack.c.l.b16 %v262
  %v469 = vunpack.c.h.b16 %v262
  %v470 = vunpack.c.l.b16 %v263
  %v471 = vunpack.c.h.b16 %v263
  %v472 = vunpack.c.l.b16 %v264
  %v473 = vunpack.c.h.b16 %v264
  %v474 = vunpack.c.l.b16 %v265
  %v475 = vunpack.c.h.b16 %v265
  %v476 = vunpack.c.l.b16 %v266
  %v477 = vunpack.c.h.b16 %v266
  %v478 = vunpack.c.l.b16 %v267
  %v479 = vunpack.c.h.b16 %v267
  %v480 = vunpack.c.l.b16 %v268
  %v481 = vunpack.c.h.b16 %v268
  %v482 = vunpack.c.l.b16 %v269
  %v483 = vunpack.c.h.b16 %v269
  %v484 = vpack.c.b16 %v360, %v356
  %v485 = vpack.c.b16 %v361, %v357
  %v486 = vpack.c.b16 %v362, %v358
  %v487 = vpack.c.b16 %v363, %v359
  %v488 = vpack.c.b16 %v368, %v364
  %v489 = vpack.c.b16 %v369, %v365
  %v490 = vpack.c.b16 %v370, %v366
  %v491 = vpack.c.b16 %v371, %v367
  %v492 = vpack.c.b16 %v376, %v372
  %v493 = vpack.c.b16 %v377, %v373
  %v494 = vpack.c.b16 %v378, %v374
  %v495 = vpack.c.b16 %v379, %v375
  %v496 = vpack.c.b16 %v384, %v380
  %v497 = vpack.c.b16 %v385, %v381
  %v498 = vpack.c.b16 %v386, %v382
  %v499 = vpack.c.b16 %v387, %v383
  %v500 = vpack.c.b16 %v392, %v388
  %v501 = vpack.c.b16 %v393, %v389
  %v502 = vpack.c.b16 %v394, %v390
  %v503 = vpack.c.b16 %v395, %v391
  %v504 = vpack.c.b16 %v400, %v396
  %v505 = vpack.c.b16 %v401, %v397
  %v506 = vpack.c.b16 %v402, %v398
  %v507 = vpack.c.b16 %v403, %v399
  %v508 = vpack.c.b16 %v408, %v404
  %v509 = vpack.c.b16 %v409, %v405
  %v510 = vpack.c.b16 %v410, %v406
  %v511 = vpack.c.b16 %v411, %v407
  %v512 = vpack.c.b16 %v416, %v412
  %v513 = vpack.c.b16 %v417, %v413
  %v514 = vpack.c.b16 %v418, %v414
  %v515 = vpack.c.b16 %v419, %v415
  %v516 = vpack.c.b16 %v424, %v420
  %v517 = vpack.c.b16 %v425, %v421
  %v518 = vpack.c.b16 %v426, %v422
  %v519 = vpack.c.b16 %v427, %v423
  %v520 = vpack.c.b16 %v432, %v428
  %v521 = vpack.c.b16 %v433, %v429
  %v522 = vpack.c.b16 %v434, %v430
  %v523 = vpack.c.b16 %v435, %v431
  %v524 = vpack.c.b16 %v440, %v436
  %v525 = vpack.c.b16 %v441, %v437
  %v526 = vpack.c.b16 %v442, %v438
  %v527 = vpack.c.b16 %v443, %v439
  %v528 = vpack.c.b16 %v448, %v444
  %v529 = vpack.c.b16 %v449, %v445
  %v530 = vpack.c.b16 %v450, %v446
  %v531 = vpack.c.b16 %v451, %v447
  %v532 = vpack.c.b16 %v456, %v452
  %v533 = vpack.c.b16 %v457, %v453
  %v534 = vpack.c.b16 %v458, %v454
  %v535 = vpack.c.b16 %v459, %v455
  %v536 = vpack.c.b16 %v464, %v460
  %v537 = vpack.c.b16 %v465, %v461
  %v538 = vpack.c.b16 %v466, %v462
  %v539 = vpack.c.b16 %v467, %v463
  %v540 = vpack.c.b16 %v472, %v468
  %v541 = vpack.c.b16 %v473, %v469
  %v542 = vpack.c.b16 %v474, %v470
  %v543 = vpack.c.b16 %v475, %v471
  %v544 = vpack.c.b16 %v480, %v476
  %v545 = vpack.c.b16 %v481, %v477
  %v546 = vpack.c.b16 %v482, %v478
  %v547 = vpack.c.b16 %v483, %v479
  %612 = vmatprep.subr.bf16.mxu0 %v513
  %613 = vmatpush1.bf16.msra.mxu0 %v512
  %614 = vmatprep.subr.bf16.mxu0 %v509
  %615 = vmatpush1.bf16.msra.mxu0 %v508
  %616 = vmatprep.subr.bf16.mxu0 %v505
  %617 = vmatpush1.bf16.msra.mxu0 %v504
  %618 = vmatprep.subr.bf16.mxu0 %v501
  %619 = vmatpush1.bf16.msra.mxu0 %v500
  %620 = vmatprep.subr.bf16.mxu0 %v497
  %621 = vmatpush1.bf16.msra.mxu0 %v496
  %622 = vmatprep.subr.bf16.mxu0 %v493
  %623 = vmatpush1.bf16.msra.mxu0 %v492
  %624 = vmatprep.subr.bf16.mxu0 %v489
  %625 = vmatpush1.bf16.msra.mxu0 %v488
  %626 = vmatprep.subr.bf16.mxu0 %v485
  %627 = vmatpush1.bf16.msra.mxu0 %v484
  %628 = vmatprep.subr.bf16.mxu0 %v545
  %629 = vmatpush2.bf16.msra.mxu0 %v544
  %630 = vmatprep.subr.bf16.mxu0 %v541
  %631 = vmatpush2.bf16.msra.mxu0 %v540
  %632 = vmatprep.subr.bf16.mxu0 %v537
  %633 = vmatpush2.bf16.msra.mxu0 %v536
  %634 = vmatprep.subr.bf16.mxu0 %v533
  %635 = vmatpush2.bf16.msra.mxu0 %v532
  %636 = vmatprep.subr.bf16.mxu0 %v529
  %637 = vmatpush2.bf16.msra.mxu0 %v528
  %638 = vmatprep.subr.bf16.mxu0 %v525
  %639 = vmatpush2.bf16.msra.mxu0 %v524
  %640 = vmatprep.subr.bf16.mxu0 %v521
  %641 = vmatpush2.bf16.msra.mxu0 %v520
  %642 = vmatprep.subr.bf16.mxu0 %v517
  %643 = vmatpush2.bf16.msra.mxu0 %v516
  %644 = vmatprep.mubr.bf16.mxu0 %v205
  %645 = vmatmul.mubr.bf16.gmra.mxu0 %v204
  %v646 = vpop.f32.mrf.mxu0
  %v647 = vadd.f32 %v275, %v646
  %v648 = vpop.f32.mrf.mxu0
  %v649 = vadd.f32 %v279, %v648
  %v650 = vpop.f32.mrf.mxu0
  %v651 = vadd.f32 %v275, %v650
  %v652 = vpop.f32.mrf.mxu0
  %v653 = vadd.f32 %v279, %v652
  %654 = vdwg.mxu0
  %655 = vmatprep.subr.bf16.mxu0 %v515
  %656 = vmatpush1.bf16.msra.mxu0 %v514
  %657 = vmatprep.subr.bf16.mxu0 %v511
  %658 = vmatpush1.bf16.msra.mxu0 %v510
  %659 = vmatprep.subr.bf16.mxu0 %v507
  %660 = vmatpush1.bf16.msra.mxu0 %v506
  %661 = vmatprep.subr.bf16.mxu0 %v503
  %662 = vmatpush1.bf16.msra.mxu0 %v502
  %663 = vmatprep.subr.bf16.mxu0 %v499
  %664 = vmatpush1.bf16.msra.mxu0 %v498
  %665 = vmatprep.subr.bf16.mxu0 %v495
  %666 = vmatpush1.bf16.msra.mxu0 %v494
  %667 = vmatprep.subr.bf16.mxu0 %v491
  %668 = vmatpush1.bf16.msra.mxu0 %v490
  %669 = vmatprep.subr.bf16.mxu0 %v487
  %670 = vmatpush1.bf16.msra.mxu0 %v486
  %671 = vmatprep.subr.bf16.mxu0 %v547
  %672 = vmatpush2.bf16.msra.mxu0 %v546
  %673 = vmatprep.subr.bf16.mxu0 %v543
  %674 = vmatpush2.bf16.msra.mxu0 %v542
  %675 = vmatprep.subr.bf16.mxu0 %v539
  %676 = vmatpush2.bf16.msra.mxu0 %v538
  %677 = vmatprep.subr.bf16.mxu0 %v535
  %678 = vmatpush2.bf16.msra.mxu0 %v534
  %679 = vmatprep.subr.bf16.mxu0 %v531
  %680 = vmatpush2.bf16.msra.mxu0 %v530
  %681 = vmatprep.subr.bf16.mxu0 %v527
  %682 = vmatpush2.bf16.msra.mxu0 %v526
  %683 = vmatprep.subr.bf16.mxu0 %v523
  %684 = vmatpush2.bf16.msra.mxu0 %v522
  %685 = vmatprep.subr.bf16.mxu0 %v519
  %686 = vmatpush2.bf16.msra.mxu0 %v518
  %687 = vmatprep.mubr.bf16.mxu0 %v205
  %688 = vmatmul.mubr.bf16.gmra.mxu0 %v204
  %v689 = vpop.f32.mrf.mxu0
  %v690 = vadd.f32 %v283, %v689
  %v691 = vpop.f32.mrf.mxu0
  %v692 = vadd.f32 %v287, %v691
  %v693 = vpop.f32.mrf.mxu0
  %v694 = vadd.f32 %v283, %v693
  %v695 = vpop.f32.mrf.mxu0
  %v696 = vadd.f32 %v287, %v695
  %697 = vdwg.mxu0
  %vm698 = vcmp.gt.f32.partialorder %v647, 0.0
  %vm699 = vcmp.gt.f32.partialorder %v649, 0.0
  %vm700 = vcmp.gt.f32.partialorder %v690, 0.0
  %vm701 = vcmp.gt.f32.partialorder %v692, 0.0
  %vm702 = vcmp.gt.f32.partialorder %v651, 0.0
  %vm703 = vcmp.gt.f32.partialorder %v653, 0.0
  %vm704 = vcmp.gt.f32.partialorder %v694, 0.0
  %vm705 = vcmp.gt.f32.partialorder %v696, 0.0
  %v706 = vmul.f32 %v647, 0.2
  %v707 = vmul.f32 %v649, 0.2
  %v708 = vmul.f32 %v690, 0.2
  %v709 = vmul.f32 %v692, 0.2
  %v710 = vmul.f32 %v651, 0.2
  %v711 = vmul.f32 %v653, 0.2
  %v712 = vmul.f32 %v694, 0.2
  %v713 = vmul.f32 %v696, 0.2
  %v714 = vsel %vm698, %v647, %v706
  %v715 = vsel %vm699, %v649, %v707
  %v716 = vsel %vm700, %v690, %v708
  %v717 = vsel %vm701, %v692, %v709
  %v718 = vsel %vm702, %v651, %v710
  %v719 = vsel %vm703, %v653, %v711
  %v720 = vsel %vm704, %v694, %v712
  %v721 = vsel %vm705, %v696, %v713
  %v722 = vpack.c.bf16 %v718, %v714
  %v723 = vpack.c.bf16 %v719, %v715
  %v724 = vpack.c.bf16 %v720, %v716
  %v725 = vpack.c.bf16 %v721, %v717
  %v726 = vld [vmem:[%s5] sm:$0xff]
  %v727 = vld [vmem:[%s5 + $0x8] sm:$0xff]
  %v728 = vld [vmem:[%s5 + $0x10] sm:$0xff]
  %v729 = vld [vmem:[%s5 + $0x18] sm:$0xff]
  %v730 = vld [vmem:[%s5 + $0x20] sm:$0xff]
  %v731 = vld [vmem:[%s5 + $0x28] sm:$0xff]
  %v732 = vld [vmem:[%s5 + $0x30] sm:$0xff]
  %v733 = vld [vmem:[%s5 + $0x38] sm:$0xff]
  %v734 = vld [vmem:[%s5 + $0x40] sm:$0xff]
  %v735 = vld [vmem:[%s5 + $0x48] sm:$0xff]
  %v736 = vld [vmem:[%s5 + $0x50] sm:$0xff]
  %v737 = vld [vmem:[%s5 + $0x58] sm:$0xff]
  %v738 = vld [vmem:[%s5 + $0x60] sm:$0xff]
  %v739 = vld [vmem:[%s5 + $0x68] sm:$0xff]
  %v740 = vld [vmem:[%s5 + $0x70] sm:$0xff]
  %v741 = vld [vmem:[%s5 + $0x78] sm:$0xff]
  %v742 = vld [vmem:[%s5 + $0x80] sm:$0xff]
  %v743 = vld [vmem:[%s5 + $0x88] sm:$0xff]
  %v744 = vld [vmem:[%s5 + $0x90] sm:$0xff]
  %v745 = vld [vmem:[%s5 + $0x98] sm:$0xff]
  %v746 = vld [vmem:[%s5 + $0xa0] sm:$0xff]
  %v747 = vld [vmem:[%s5 + $0xa8] sm:$0xff]
  %v748 = vld [vmem:[%s5 + $0xb0] sm:$0xff]
  %v749 = vld [vmem:[%s5 + $0xb8] sm:$0xff]
  %v750 = vld [vmem:[%s5 + $0xc0] sm:$0xff]
  %v751 = vld [vmem:[%s5 + $0xc8] sm:$0xff]
  %v752 = vld [vmem:[%s5 + $0xd0] sm:$0xff]
  %v753 = vld [vmem:[%s5 + $0xd8] sm:$0xff]
  %v754 = vld [vmem:[%s5 + $0xe0] sm:$0xff]
  %v755 = vld [vmem:[%s5 + $0xe8] sm:$0xff]
  %v756 = vld [vmem:[%s5 + $0xf0] sm:$0xff]
  %v757 = vld [vmem:[%s5 + $0xf8] sm:$0xff]
  %v758 = vld [vmem:[%s5 + $0x100] sm:$0xff]
  %v759 = vld [vmem:[%s5 + $0x108] sm:$0xff]
  %v760 = vld [vmem:[%s5 + $0x110] sm:$0xff]
  %v761 = vld [vmem:[%s5 + $0x118] sm:$0xff]
  %v762 = vld [vmem:[%s5 + $0x120] sm:$0xff]
  %v763 = vld [vmem:[%s5 + $0x128] sm:$0xff]
  %v764 = vld [vmem:[%s5 + $0x130] sm:$0xff]
  %v765 = vld [vmem:[%s5 + $0x138] sm:$0xff]
  %v766 = vld [vmem:[%s5 + $0x140] sm:$0xff]
  %v767 = vld [vmem:[%s5 + $0x148] sm:$0xff]
  %v768 = vld [vmem:[%s5 + $0x150] sm:$0xff]
  %v769 = vld [vmem:[%s5 + $0x158] sm:$0xff]
  %v770 = vld [vmem:[%s5 + $0x160] sm:$0xff]
  %v771 = vld [vmem:[%s5 + $0x168] sm:$0xff]
  %v772 = vld [vmem:[%s5 + $0x170] sm:$0xff]
  %v773 = vld [vmem:[%s5 + $0x178] sm:$0xff]
  %v774 = vld [vmem:[%s5 + $0x180] sm:$0xff]
  %v775 = vld [vmem:[%s5 + $0x188] sm:$0xff]
  %v776 = vld [vmem:[%s5 + $0x190] sm:$0xff]
  %v777 = vld [vmem:[%s5 + $0x198] sm:$0xff]
  %v778 = vld [vmem:[%s5 + $0x1a0] sm:$0xff]
  %v779 = vld [vmem:[%s5 + $0x1a8] sm:$0xff]
  %v780 = vld [vmem:[%s5 + $0x1b0] sm:$0xff]
  %v781 = vld [vmem:[%s5 + $0x1b8] sm:$0xff]
  %v782 = vld [vmem:[%s5 + $0x1c0] sm:$0xff]
  %v783 = vld [vmem:[%s5 + $0x1c8] sm:$0xff]
  %v784 = vld [vmem:[%s5 + $0x1d0] sm:$0xff]
  %v785 = vld [vmem:[%s5 + $0x1d8] sm:$0xff]
  %v786 = vld [vmem:[%s5 + $0x1e0] sm:$0xff]
  %v787 = vld [vmem:[%s5 + $0x1e8] sm:$0xff]
  %v788 = vld [vmem:[%s5 + $0x1f0] sm:$0xff]
  %v789 = vld [vmem:[%s5 + $0x1f8] sm:$0xff]
  %v790 = vld [vmem:[%s5 + $0x200] sm:$0xff]
  %v791 = vld [vmem:[%s5 + $0x208] sm:$0xff]
  %v792 = vld [vmem:[%s5 + $0x210] sm:$0xff]
  %v793 = vld [vmem:[%s5 + $0x218] sm:$0xff]
  %v794 = vld [vmem:[%s5 + $0x220] sm:$0xff]
  %v795 = vld [vmem:[%s5 + $0x228] sm:$0xff]
  %v796 = vld [vmem:[%s5 + $0x230] sm:$0xff]
  %v797 = vld [vmem:[%s5 + $0x238] sm:$0xff]
  %v798 = vld [vmem:[%s5 + $0x240] sm:$0xff]
  %v799 = vld [vmem:[%s5 + $0x248] sm:$0xff]
  %v800 = vld [vmem:[%s5 + $0x250] sm:$0xff]
  %v801 = vld [vmem:[%s5 + $0x258] sm:$0xff]
  %v802 = vld [vmem:[%s5 + $0x260] sm:$0xff]
  %v803 = vld [vmem:[%s5 + $0x268] sm:$0xff]
  %v804 = vld [vmem:[%s5 + $0x270] sm:$0xff]
  %v805 = vld [vmem:[%s5 + $0x278] sm:$0xff]
  %v806 = vld [vmem:[%s5 + $0x280] sm:$0xff]
  %v807 = vld [vmem:[%s5 + $0x288] sm:$0xff]
  %v808 = vld [vmem:[%s5 + $0x290] sm:$0xff]
  %v809 = vld [vmem:[%s5 + $0x298] sm:$0xff]
  %v810 = vld [vmem:[%s5 + $0x2a0] sm:$0xff]
  %v811 = vld [vmem:[%s5 + $0x2a8] sm:$0xff]
  %v812 = vld [vmem:[%s5 + $0x2b0] sm:$0xff]
  %v813 = vld [vmem:[%s5 + $0x2b8] sm:$0xff]
  %v814 = vld [vmem:[%s5 + $0x2c0] sm:$0xff]
  %v815 = vld [vmem:[%s5 + $0x2c8] sm:$0xff]
  %v816 = vld [vmem:[%s5 + $0x2d0] sm:$0xff]
  %v817 = vld [vmem:[%s5 + $0x2d8] sm:$0xff]
  %v818 = vld [vmem:[%s5 + $0x2e0] sm:$0xff]
  %v819 = vld [vmem:[%s5 + $0x2e8] sm:$0xff]
  %v820 = vld [vmem:[%s5 + $0x2f0] sm:$0xff]
  %v821 = vld [vmem:[%s5 + $0x2f8] sm:$0xff]
  %v822 = vld [vmem:[%s5 + $0x300] sm:$0xff]
  %v823 = vld [vmem:[%s5 + $0x308] sm:$0xff]
  %v824 = vld [vmem:[%s5 + $0x310] sm:$0xff]
  %v825 = vld [vmem:[%s5 + $0x318] sm:$0xff]
  %v826 = vld [vmem:[%s5 + $0x320] sm:$0xff]
  %v827 = vld [vmem:[%s5 + $0x328] sm:$0xff]
  %v828 = vld [vmem:[%s5 + $0x330] sm:$0xff]
  %v829 = vld [vmem:[%s5 + $0x338] sm:$0xff]
  %v830 = vld [vmem:[%s5 + $0x340] sm:$0xff]
  %v831 = vld [vmem:[%s5 + $0x348] sm:$0xff]
  %v832 = vld [vmem:[%s5 + $0x350] sm:$0xff]
  %v833 = vld [vmem:[%s5 + $0x358] sm:$0xff]
  %v834 = vld [vmem:[%s5 + $0x360] sm:$0xff]
  %v835 = vld [vmem:[%s5 + $0x368] sm:$0xff]
  %v836 = vld [vmem:[%s5 + $0x370] sm:$0xff]
  %v837 = vld [vmem:[%s5 + $0x378] sm:$0xff]
  %v838 = vld [vmem:[%s5 + $0x380] sm:$0xff]
  %v839 = vld [vmem:[%s5 + $0x388] sm:$0xff]
  %v840 = vld [vmem:[%s5 + $0x390] sm:$0xff]
  %v841 = vld [vmem:[%s5 + $0x398] sm:$0xff]
  %v842 = vld [vmem:[%s5 + $0x3a0] sm:$0xff]
  %v843 = vld [vmem:[%s5 + $0x3a8] sm:$0xff]
  %v844 = vld [vmem:[%s5 + $0x3b0] sm:$0xff]
  %v845 = vld [vmem:[%s5 + $0x3b8] sm:$0xff]
  %v846 = vld [vmem:[%s5 + $0x3c0] sm:$0xff]
  %v847 = vld [vmem:[%s5 + $0x3c8] sm:$0xff]
  %v848 = vld [vmem:[%s5 + $0x3d0] sm:$0xff]
  %v849 = vld [vmem:[%s5 + $0x3d8] sm:$0xff]
  %v850 = vld [vmem:[%s5 + $0x3e0] sm:$0xff]
  %v851 = vld [vmem:[%s5 + $0x3e8] sm:$0xff]
  %v852 = vld [vmem:[%s5 + $0x3f0] sm:$0xff]
  %v853 = vld [vmem:[%s5 + $0x3f8] sm:$0xff]
  %v854 = vld [vmem:[%s5 + $0x400] sm:$0xff]
  %v855 = vld [vmem:[%s5 + $0x408] sm:$0xff]
  %v856 = vld [vmem:[%s5 + $0x410] sm:$0xff]
  %v857 = vld [vmem:[%s5 + $0x418] sm:$0xff]
  %v858 = vld [vmem:[%s5 + $0x420] sm:$0xff]
  %v859 = vld [vmem:[%s5 + $0x428] sm:$0xff]
  %v860 = vld [vmem:[%s5 + $0x430] sm:$0xff]
  %v861 = vld [vmem:[%s5 + $0x438] sm:$0xff]
  %v862 = vld [vmem:[%s5 + $0x440] sm:$0xff]
  %v863 = vld [vmem:[%s5 + $0x448] sm:$0xff]
  %v864 = vld [vmem:[%s5 + $0x450] sm:$0xff]
  %v865 = vld [vmem:[%s5 + $0x458] sm:$0xff]
  %v866 = vld [vmem:[%s5 + $0x460] sm:$0xff]
  %v867 = vld [vmem:[%s5 + $0x468] sm:$0xff]
  %v868 = vld [vmem:[%s5 + $0x470] sm:$0xff]
  %v869 = vld [vmem:[%s5 + $0x478] sm:$0xff]
  %v870 = vld [vmem:[%s5 + $0x480] sm:$0xff]
  %v871 = vld [vmem:[%s5 + $0x488] sm:$0xff]
  %v872 = vld [vmem:[%s5 + $0x490] sm:$0xff]
  %v873 = vld [vmem:[%s5 + $0x498] sm:$0xff]
  %v874 = vld [vmem:[%s5 + $0x4a0] sm:$0xff]
  %v875 = vld [vmem:[%s5 + $0x4a8] sm:$0xff]
  %v876 = vld [vmem:[%s5 + $0x4b0] sm:$0xff]
  %v877 = vld [vmem:[%s5 + $0x4b8] sm:$0xff]
  %v878 = vld [vmem:[%s5 + $0x4c0] sm:$0xff]
  %v879 = vld [vmem:[%s5 + $0x4c8] sm:$0xff]
  %v880 = vld [vmem:[%s5 + $0x4d0] sm:$0xff]
  %v881 = vld [vmem:[%s5 + $0x4d8] sm:$0xff]
  %v882 = vld [vmem:[%s5 + $0x4e0] sm:$0xff]
  %v883 = vld [vmem:[%s5 + $0x4e8] sm:$0xff]
  %v884 = vld [vmem:[%s5 + $0x4f0] sm:$0xff]
  %v885 = vld [vmem:[%s5 + $0x4f8] sm:$0xff]
  %v886 = vld [vmem:[%s5 + $0x500] sm:$0xff]
  %v887 = vld [vmem:[%s5 + $0x508] sm:$0xff]
  %v888 = vld [vmem:[%s5 + $0x510] sm:$0xff]
  %v889 = vld [vmem:[%s5 + $0x518] sm:$0xff]
  %v890 = vld [vmem:[%s5 + $0x520] sm:$0xff]
  %v891 = vld [vmem:[%s5 + $0x528] sm:$0xff]
  %v892 = vld [vmem:[%s5 + $0x530] sm:$0xff]
  %v893 = vld [vmem:[%s5 + $0x538] sm:$0xff]
  %v894 = vld [vmem:[%s5 + $0x540] sm:$0xff]
  %v895 = vld [vmem:[%s5 + $0x548] sm:$0xff]
  %v896 = vld [vmem:[%s5 + $0x550] sm:$0xff]
  %v897 = vld [vmem:[%s5 + $0x558] sm:$0xff]
  %v898 = vld [vmem:[%s5 + $0x560] sm:$0xff]
  %v899 = vld [vmem:[%s5 + $0x568] sm:$0xff]
  %v900 = vld [vmem:[%s5 + $0x570] sm:$0xff]
  %v901 = vld [vmem:[%s5 + $0x578] sm:$0xff]
  %v902 = vld [vmem:[%s5 + $0x580] sm:$0xff]
  %v903 = vld [vmem:[%s5 + $0x588] sm:$0xff]
  %v904 = vld [vmem:[%s5 + $0x590] sm:$0xff]
  %v905 = vld [vmem:[%s5 + $0x598] sm:$0xff]
  %v906 = vld [vmem:[%s5 + $0x5a0] sm:$0xff]
  %v907 = vld [vmem:[%s5 + $0x5a8] sm:$0xff]
  %v908 = vld [vmem:[%s5 + $0x5b0] sm:$0xff]
  %v909 = vld [vmem:[%s5 + $0x5b8] sm:$0xff]
  %v910 = vld [vmem:[%s5 + $0x5c0] sm:$0xff]
  %v911 = vld [vmem:[%s5 + $0x5c8] sm:$0xff]
  %v912 = vld [vmem:[%s5 + $0x5d0] sm:$0xff]
  %v913 = vld [vmem:[%s5 + $0x5d8] sm:$0xff]
  %v914 = vld [vmem:[%s5 + $0x5e0] sm:$0xff]
  %v915 = vld [vmem:[%s5 + $0x5e8] sm:$0xff]
  %v916 = vld [vmem:[%s5 + $0x5f0] sm:$0xff]
  %v917 = vld [vmem:[%s5 + $0x5f8] sm:$0xff]
  %v918 = vld [vmem:[%s5 + $0x600] sm:$0xff]
  %v919 = vld [vmem:[%s5 + $0x608] sm:$0xff]
  %v920 = vld [vmem:[%s5 + $0x610] sm:$0xff]
  %v921 = vld [vmem:[%s5 + $0x618] sm:$0xff]
  %v922 = vld [vmem:[%s5 + $0x620] sm:$0xff]
  %v923 = vld [vmem:[%s5 + $0x628] sm:$0xff]
  %v924 = vld [vmem:[%s5 + $0x630] sm:$0xff]
  %v925 = vld [vmem:[%s5 + $0x638] sm:$0xff]
  %v926 = vld [vmem:[%s5 + $0x640] sm:$0xff]
  %v927 = vld [vmem:[%s5 + $0x648] sm:$0xff]
  %v928 = vld [vmem:[%s5 + $0x650] sm:$0xff]
  %v929 = vld [vmem:[%s5 + $0x658] sm:$0xff]
  %v930 = vld [vmem:[%s5 + $0x660] sm:$0xff]
  %v931 = vld [vmem:[%s5 + $0x668] sm:$0xff]
  %v932 = vld [vmem:[%s5 + $0x670] sm:$0xff]
  %v933 = vld [vmem:[%s5 + $0x678] sm:$0xff]
  %v934 = vld [vmem:[%s5 + $0x680] sm:$0xff]
  %v935 = vld [vmem:[%s5 + $0x688] sm:$0xff]
  %v936 = vld [vmem:[%s5 + $0x690] sm:$0xff]
  %v937 = vld [vmem:[%s5 + $0x698] sm:$0xff]
  %v938 = vld [vmem:[%s5 + $0x6a0] sm:$0xff]
  %v939 = vld [vmem:[%s5 + $0x6a8] sm:$0xff]
  %v940 = vld [vmem:[%s5 + $0x6b0] sm:$0xff]
  %v941 = vld [vmem:[%s5 + $0x6b8] sm:$0xff]
  %v942 = vld [vmem:[%s5 + $0x6c0] sm:$0xff]
  %v943 = vld [vmem:[%s5 + $0x6c8] sm:$0xff]
  %v944 = vld [vmem:[%s5 + $0x6d0] sm:$0xff]
  %v945 = vld [vmem:[%s5 + $0x6d8] sm:$0xff]
  %v946 = vld [vmem:[%s5 + $0x6e0] sm:$0xff]
  %v947 = vld [vmem:[%s5 + $0x6e8] sm:$0xff]
  %v948 = vld [vmem:[%s5 + $0x6f0] sm:$0xff]
  %v949 = vld [vmem:[%s5 + $0x6f8] sm:$0xff]
  %v950 = vld [vmem:[%s5 + $0x700] sm:$0xff]
  %v951 = vld [vmem:[%s5 + $0x708] sm:$0xff]
  %v952 = vld [vmem:[%s5 + $0x710] sm:$0xff]
  %v953 = vld [vmem:[%s5 + $0x718] sm:$0xff]
  %v954 = vld [vmem:[%s5 + $0x720] sm:$0xff]
  %v955 = vld [vmem:[%s5 + $0x728] sm:$0xff]
  %v956 = vld [vmem:[%s5 + $0x730] sm:$0xff]
  %v957 = vld [vmem:[%s5 + $0x738] sm:$0xff]
  %v958 = vld [vmem:[%s5 + $0x740] sm:$0xff]
  %v959 = vld [vmem:[%s5 + $0x748] sm:$0xff]
  %v960 = vld [vmem:[%s5 + $0x750] sm:$0xff]
  %v961 = vld [vmem:[%s5 + $0x758] sm:$0xff]
  %v962 = vld [vmem:[%s5 + $0x760] sm:$0xff]
  %v963 = vld [vmem:[%s5 + $0x768] sm:$0xff]
  %v964 = vld [vmem:[%s5 + $0x770] sm:$0xff]
  %v965 = vld [vmem:[%s5 + $0x778] sm:$0xff]
  %v966 = vld [vmem:[%s5 + $0x780] sm:$0xff]
  %v967 = vld [vmem:[%s5 + $0x788] sm:$0xff]
  %v968 = vld [vmem:[%s5 + $0x790] sm:$0xff]
  %v969 = vld [vmem:[%s5 + $0x798] sm:$0xff]
  %v970 = vld [vmem:[%s5 + $0x7a0] sm:$0xff]
  %v971 = vld [vmem:[%s5 + $0x7a8] sm:$0xff]
  %v972 = vld [vmem:[%s5 + $0x7b0] sm:$0xff]
  %v973 = vld [vmem:[%s5 + $0x7b8] sm:$0xff]
  %v974 = vld [vmem:[%s5 + $0x7c0] sm:$0xff]
  %v975 = vld [vmem:[%s5 + $0x7c8] sm:$0xff]
  %v976 = vld [vmem:[%s5 + $0x7d0] sm:$0xff]
  %v977 = vld [vmem:[%s5 + $0x7d8] sm:$0xff]
  %v978 = vld [vmem:[%s5 + $0x7e0] sm:$0xff]
  %v979 = vld [vmem:[%s5 + $0x7e8] sm:$0xff]
  %v980 = vld [vmem:[%s5 + $0x7f0] sm:$0xff]
  %v981 = vld [vmem:[%s5 + $0x7f8] sm:$0xff]
  %v982 = vld [vmem:[%s6] sm:$0xff]
  %v984 = vlaneseq
  %v985 = vshrl.u32 %v984, 7
  %v986 = vsub.s32 0, %v985
  %v987 = vrot.slane %v982, %v986
  %v988 = vlaneseq
  %v989 = vshrl.u32 %v988, 7
  %v990 = vsub.s32 1, %v989
  %v991 = vrot.slane %v982, %v990
  %v992 = vlaneseq
  %v993 = vshrl.u32 %v992, 7
  %v994 = vsub.s32 2, %v993
  %v995 = vrot.slane %v982, %v994
  %v996 = vlaneseq
  %v997 = vshrl.u32 %v996, 7
  %v998 = vsub.s32 3, %v997
  %v999 = vrot.slane %v982, %v998
  %v1000 = vlaneseq
  %v1001 = vshrl.u32 %v1000, 7
  %v1002 = vsub.s32 4, %v1001
  %v1003 = vrot.slane %v982, %v1002
  %v1004 = vlaneseq
  %v1005 = vshrl.u32 %v1004, 7
  %v1006 = vsub.s32 5, %v1005
  %v1007 = vrot.slane %v982, %v1006
  %v1008 = vlaneseq
  %v1009 = vshrl.u32 %v1008, 7
  %v1010 = vsub.s32 6, %v1009
  %v1011 = vrot.slane %v982, %v1010
  %v1012 = vlaneseq
  %v1013 = vshrl.u32 %v1012, 7
  %v1014 = vsub.s32 7, %v1013
  %v1015 = vrot.slane %v982, %v1014
  %v1280 = vunpack.c.l.b16 %v726
  %v1281 = vunpack.c.h.b16 %v726
  %v1282 = vunpack.c.l.b16 %v727
  %v1283 = vunpack.c.h.b16 %v727
  %v1284 = vunpack.c.l.b16 %v728
  %v1285 = vunpack.c.h.b16 %v728
  %v1286 = vunpack.c.l.b16 %v729
  %v1287 = vunpack.c.h.b16 %v729
  %v1288 = vunpack.c.l.b16 %v730
  %v1289 = vunpack.c.h.b16 %v730
  %v1290 = vunpack.c.l.b16 %v731
  %v1291 = vunpack.c.h.b16 %v731
  %v1292 = vunpack.c.l.b16 %v732
  %v1293 = vunpack.c.h.b16 %v732
  %v1294 = vunpack.c.l.b16 %v733
  %v1295 = vunpack.c.h.b16 %v733
  %v1296 = vunpack.c.l.b16 %v734
  %v1297 = vunpack.c.h.b16 %v734
  %v1298 = vunpack.c.l.b16 %v735
  %v1299 = vunpack.c.h.b16 %v735
  %v1300 = vunpack.c.l.b16 %v736
  %v1301 = vunpack.c.h.b16 %v736
  %v1302 = vunpack.c.l.b16 %v737
  %v1303 = vunpack.c.h.b16 %v737
  %v1304 = vunpack.c.l.b16 %v738
  %v1305 = vunpack.c.h.b16 %v738
  %v1306 = vunpack.c.l.b16 %v739
  %v1307 = vunpack.c.h.b16 %v739
  %v1308 = vunpack.c.l.b16 %v740
  %v1309 = vunpack.c.h.b16 %v740
  %v1310 = vunpack.c.l.b16 %v741
  %v1311 = vunpack.c.h.b16 %v741
  %v1312 = vunpack.c.l.b16 %v742
  %v1313 = vunpack.c.h.b16 %v742
  %v1314 = vunpack.c.l.b16 %v743
  %v1315 = vunpack.c.h.b16 %v743
  %v1316 = vunpack.c.l.b16 %v744
  %v1317 = vunpack.c.h.b16 %v744
  %v1318 = vunpack.c.l.b16 %v745
  %v1319 = vunpack.c.h.b16 %v745
  %v1320 = vunpack.c.l.b16 %v746
  %v1321 = vunpack.c.h.b16 %v746
  %v1322 = vunpack.c.l.b16 %v747
  %v1323 = vunpack.c.h.b16 %v747
  %v1324 = vunpack.c.l.b16 %v748
  %v1325 = vunpack.c.h.b16 %v748
  %v1326 = vunpack.c.l.b16 %v749
  %v1327 = vunpack.c.h.b16 %v749
  %v1328 = vunpack.c.l.b16 %v750
  %v1329 = vunpack.c.h.b16 %v750
  %v1330 = vunpack.c.l.b16 %v751
  %v1331 = vunpack.c.h.b16 %v751
  %v1332 = vunpack.c.l.b16 %v752
  %v1333 = vunpack.c.h.b16 %v752
  %v1334 = vunpack.c.l.b16 %v753
  %v1335 = vunpack.c.h.b16 %v753
  %v1336 = vunpack.c.l.b16 %v754
  %v1337 = vunpack.c.h.b16 %v754
  %v1338 = vunpack.c.l.b16 %v755
  %v1339 = vunpack.c.h.b16 %v755
  %v1340 = vunpack.c.l.b16 %v756
  %v1341 = vunpack.c.h.b16 %v756
  %v1342 = vunpack.c.l.b16 %v757
  %v1343 = vunpack.c.h.b16 %v757
  %v1344 = vunpack.c.l.b16 %v758
  %v1345 = vunpack.c.h.b16 %v758
  %v1346 = vunpack.c.l.b16 %v759
  %v1347 = vunpack.c.h.b16 %v759
  %v1348 = vunpack.c.l.b16 %v760
  %v1349 = vunpack.c.h.b16 %v760
  %v1350 = vunpack.c.l.b16 %v761
  %v1351 = vunpack.c.h.b16 %v761
  %v1352 = vunpack.c.l.b16 %v762
  %v1353 = vunpack.c.h.b16 %v762
  %v1354 = vunpack.c.l.b16 %v763
  %v1355 = vunpack.c.h.b16 %v763
  %v1356 = vunpack.c.l.b16 %v764
  %v1357 = vunpack.c.h.b16 %v764
  %v1358 = vunpack.c.l.b16 %v765
  %v1359 = vunpack.c.h.b16 %v765
  %v1360 = vunpack.c.l.b16 %v766
  %v1361 = vunpack.c.h.b16 %v766
  %v1362 = vunpack.c.l.b16 %v767
  %v1363 = vunpack.c.h.b16 %v767
  %v1364 = vunpack.c.l.b16 %v768
  %v1365 = vunpack.c.h.b16 %v768
  %v1366 = vunpack.c.l.b16 %v769
  %v1367 = vunpack.c.h.b16 %v769
  %v1368 = vunpack.c.l.b16 %v770
  %v1369 = vunpack.c.h.b16 %v770
  %v1370 = vunpack.c.l.b16 %v771
  %v1371 = vunpack.c.h.b16 %v771
  %v1372 = vunpack.c.l.b16 %v772
  %v1373 = vunpack.c.h.b16 %v772
  %v1374 = vunpack.c.l.b16 %v773
  %v1375 = vunpack.c.h.b16 %v773
  %v1376 = vunpack.c.l.b16 %v774
  %v1377 = vunpack.c.h.b16 %v774
  %v1378 = vunpack.c.l.b16 %v775
  %v1379 = vunpack.c.h.b16 %v775
  %v1380 = vunpack.c.l.b16 %v776
  %v1381 = vunpack.c.h.b16 %v776
  %v1382 = vunpack.c.l.b16 %v777
  %v1383 = vunpack.c.h.b16 %v777
  %v1384 = vunpack.c.l.b16 %v778
  %v1385 = vunpack.c.h.b16 %v778
  %v1386 = vunpack.c.l.b16 %v779
  %v1387 = vunpack.c.h.b16 %v779
  %v1388 = vunpack.c.l.b16 %v780
  %v1389 = vunpack.c.h.b16 %v780
  %v1390 = vunpack.c.l.b16 %v781
  %v1391 = vunpack.c.h.b16 %v781
  %v1392 = vunpack.c.l.b16 %v782
  %v1393 = vunpack.c.h.b16 %v782
  %v1394 = vunpack.c.l.b16 %v783
  %v1395 = vunpack.c.h.b16 %v783
  %v1396 = vunpack.c.l.b16 %v784
  %v1397 = vunpack.c.h.b16 %v784
  %v1398 = vunpack.c.l.b16 %v785
  %v1399 = vunpack.c.h.b16 %v785
  %v1400 = vunpack.c.l.b16 %v786
  %v1401 = vunpack.c.h.b16 %v786
  %v1402 = vunpack.c.l.b16 %v787
  %v1403 = vunpack.c.h.b16 %v787
  %v1404 = vunpack.c.l.b16 %v788
  %v1405 = vunpack.c.h.b16 %v788
  %v1406 = vunpack.c.l.b16 %v789
  %v1407 = vunpack.c.h.b16 %v789
  %v1408 = vunpack.c.l.b16 %v790
  %v1409 = vunpack.c.h.b16 %v790
  %v1410 = vunpack.c.l.b16 %v791
  %v1411 = vunpack.c.h.b16 %v791
  %v1412 = vunpack.c.l.b16 %v792
  %v1413 = vunpack.c.h.b16 %v792
  %v1414 = vunpack.c.l.b16 %v793
  %v1415 = vunpack.c.h.b16 %v793
  %v1416 = vunpack.c.l.b16 %v794
  %v1417 = vunpack.c.h.b16 %v794
  %v1418 = vunpack.c.l.b16 %v795
  %v1419 = vunpack.c.h.b16 %v795
  %v1420 = vunpack.c.l.b16 %v796
  %v1421 = vunpack.c.h.b16 %v796
  %v1422 = vunpack.c.l.b16 %v797
  %v1423 = vunpack.c.h.b16 %v797
  %v1424 = vunpack.c.l.b16 %v798
  %v1425 = vunpack.c.h.b16 %v798
  %v1426 = vunpack.c.l.b16 %v799
  %v1427 = vunpack.c.h.b16 %v799
  %v1428 = vunpack.c.l.b16 %v800
  %v1429 = vunpack.c.h.b16 %v800
  %v1430 = vunpack.c.l.b16 %v801
  %v1431 = vunpack.c.h.b16 %v801
  %v1432 = vunpack.c.l.b16 %v802
  %v1433 = vunpack.c.h.b16 %v802
  %v1434 = vunpack.c.l.b16 %v803
  %v1435 = vunpack.c.h.b16 %v803
  %v1436 = vunpack.c.l.b16 %v804
  %v1437 = vunpack.c.h.b16 %v804
  %v1438 = vunpack.c.l.b16 %v805
  %v1439 = vunpack.c.h.b16 %v805
  %v1440 = vunpack.c.l.b16 %v806
  %v1441 = vunpack.c.h.b16 %v806
  %v1442 = vunpack.c.l.b16 %v807
  %v1443 = vunpack.c.h.b16 %v807
  %v1444 = vunpack.c.l.b16 %v808
  %v1445 = vunpack.c.h.b16 %v808
  %v1446 = vunpack.c.l.b16 %v809
  %v1447 = vunpack.c.h.b16 %v809
  %v1448 = vunpack.c.l.b16 %v810
  %v1449 = vunpack.c.h.b16 %v810
  %v1450 = vunpack.c.l.b16 %v811
  %v1451 = vunpack.c.h.b16 %v811
  %v1452 = vunpack.c.l.b16 %v812
  %v1453 = vunpack.c.h.b16 %v812
  %v1454 = vunpack.c.l.b16 %v813
  %v1455 = vunpack.c.h.b16 %v813
  %v1456 = vunpack.c.l.b16 %v814
  %v1457 = vunpack.c.h.b16 %v814
  %v1458 = vunpack.c.l.b16 %v815
  %v1459 = vunpack.c.h.b16 %v815
  %v1460 = vunpack.c.l.b16 %v816
  %v1461 = vunpack.c.h.b16 %v816
  %v1462 = vunpack.c.l.b16 %v817
  %v1463 = vunpack.c.h.b16 %v817
  %v1464 = vunpack.c.l.b16 %v818
  %v1465 = vunpack.c.h.b16 %v818
  %v1466 = vunpack.c.l.b16 %v819
  %v1467 = vunpack.c.h.b16 %v819
  %v1468 = vunpack.c.l.b16 %v820
  %v1469 = vunpack.c.h.b16 %v820
  %v1470 = vunpack.c.l.b16 %v821
  %v1471 = vunpack.c.h.b16 %v821
  %v1472 = vunpack.c.l.b16 %v822
  %v1473 = vunpack.c.h.b16 %v822
  %v1474 = vunpack.c.l.b16 %v823
  %v1475 = vunpack.c.h.b16 %v823
  %v1476 = vunpack.c.l.b16 %v824
  %v1477 = vunpack.c.h.b16 %v824
  %v1478 = vunpack.c.l.b16 %v825
  %v1479 = vunpack.c.h.b16 %v825
  %v1480 = vunpack.c.l.b16 %v826
  %v1481 = vunpack.c.h.b16 %v826
  %v1482 = vunpack.c.l.b16 %v827
  %v1483 = vunpack.c.h.b16 %v827
  %v1484 = vunpack.c.l.b16 %v828
  %v1485 = vunpack.c.h.b16 %v828
  %v1486 = vunpack.c.l.b16 %v829
  %v1487 = vunpack.c.h.b16 %v829
  %v1488 = vunpack.c.l.b16 %v830
  %v1489 = vunpack.c.h.b16 %v830
  %v1490 = vunpack.c.l.b16 %v831
  %v1491 = vunpack.c.h.b16 %v831
  %v1492 = vunpack.c.l.b16 %v832
  %v1493 = vunpack.c.h.b16 %v832
  %v1494 = vunpack.c.l.b16 %v833
  %v1495 = vunpack.c.h.b16 %v833
  %v1496 = vunpack.c.l.b16 %v834
  %v1497 = vunpack.c.h.b16 %v834
  %v1498 = vunpack.c.l.b16 %v835
  %v1499 = vunpack.c.h.b16 %v835
  %v1500 = vunpack.c.l.b16 %v836
  %v1501 = vunpack.c.h.b16 %v836
  %v1502 = vunpack.c.l.b16 %v837
  %v1503 = vunpack.c.h.b16 %v837
  %v1504 = vunpack.c.l.b16 %v838
  %v1505 = vunpack.c.h.b16 %v838
  %v1506 = vunpack.c.l.b16 %v839
  %v1507 = vunpack.c.h.b16 %v839
  %v1508 = vunpack.c.l.b16 %v840
  %v1509 = vunpack.c.h.b16 %v840
  %v1510 = vunpack.c.l.b16 %v841
  %v1511 = vunpack.c.h.b16 %v841
  %v1512 = vunpack.c.l.b16 %v842
  %v1513 = vunpack.c.h.b16 %v842
  %v1514 = vunpack.c.l.b16 %v843
  %v1515 = vunpack.c.h.b16 %v843
  %v1516 = vunpack.c.l.b16 %v844
  %v1517 = vunpack.c.h.b16 %v844
  %v1518 = vunpack.c.l.b16 %v845
  %v1519 = vunpack.c.h.b16 %v845
  %v1520 = vunpack.c.l.b16 %v846
  %v1521 = vunpack.c.h.b16 %v846
  %v1522 = vunpack.c.l.b16 %v847
  %v1523 = vunpack.c.h.b16 %v847
  %v1524 = vunpack.c.l.b16 %v848
  %v1525 = vunpack.c.h.b16 %v848
  %v1526 = vunpack.c.l.b16 %v849
  %v1527 = vunpack.c.h.b16 %v849
  %v1528 = vunpack.c.l.b16 %v850
  %v1529 = vunpack.c.h.b16 %v850
  %v1530 = vunpack.c.l.b16 %v851
  %v1531 = vunpack.c.h.b16 %v851
  %v1532 = vunpack.c.l.b16 %v852
  %v1533 = vunpack.c.h.b16 %v852
  %v1534 = vunpack.c.l.b16 %v853
  %v1535 = vunpack.c.h.b16 %v853
  %v1536 = vunpack.c.l.b16 %v854
  %v1537 = vunpack.c.h.b16 %v854
  %v1538 = vunpack.c.l.b16 %v855
  %v1539 = vunpack.c.h.b16 %v855
  %v1540 = vunpack.c.l.b16 %v856
  %v1541 = vunpack.c.h.b16 %v856
  %v1542 = vunpack.c.l.b16 %v857
  %v1543 = vunpack.c.h.b16 %v857
  %v1544 = vunpack.c.l.b16 %v858
  %v1545 = vunpack.c.h.b16 %v858
  %v1546 = vunpack.c.l.b16 %v859
  %v1547 = vunpack.c.h.b16 %v859
  %v1548 = vunpack.c.l.b16 %v860
  %v1549 = vunpack.c.h.b16 %v860
  %v1550 = vunpack.c.l.b16 %v861
  %v1551 = vunpack.c.h.b16 %v861
  %v1552 = vunpack.c.l.b16 %v862
  %v1553 = vunpack.c.h.b16 %v862
  %v1554 = vunpack.c.l.b16 %v863
  %v1555 = vunpack.c.h.b16 %v863
  %v1556 = vunpack.c.l.b16 %v864
  %v1557 = vunpack.c.h.b16 %v864
  %v1558 = vunpack.c.l.b16 %v865
  %v1559 = vunpack.c.h.b16 %v865
  %v1560 = vunpack.c.l.b16 %v866
  %v1561 = vunpack.c.h.b16 %v866
  %v1562 = vunpack.c.l.b16 %v867
  %v1563 = vunpack.c.h.b16 %v867
  %v1564 = vunpack.c.l.b16 %v868
  %v1565 = vunpack.c.h.b16 %v868
  %v1566 = vunpack.c.l.b16 %v869
  %v1567 = vunpack.c.h.b16 %v869
  %v1568 = vunpack.c.l.b16 %v870
  %v1569 = vunpack.c.h.b16 %v870
  %v1570 = vunpack.c.l.b16 %v871
  %v1571 = vunpack.c.h.b16 %v871
  %v1572 = vunpack.c.l.b16 %v872
  %v1573 = vunpack.c.h.b16 %v872
  %v1574 = vunpack.c.l.b16 %v873
  %v1575 = vunpack.c.h.b16 %v873
  %v1576 = vunpack.c.l.b16 %v874
  %v1577 = vunpack.c.h.b16 %v874
  %v1578 = vunpack.c.l.b16 %v875
  %v1579 = vunpack.c.h.b16 %v875
  %v1580 = vunpack.c.l.b16 %v876
  %v1581 = vunpack.c.h.b16 %v876
  %v1582 = vunpack.c.l.b16 %v877
  %v1583 = vunpack.c.h.b16 %v877
  %v1584 = vunpack.c.l.b16 %v878
  %v1585 = vunpack.c.h.b16 %v878
  %v1586 = vunpack.c.l.b16 %v879
  %v1587 = vunpack.c.h.b16 %v879
  %v1588 = vunpack.c.l.b16 %v880
  %v1589 = vunpack.c.h.b16 %v880
  %v1590 = vunpack.c.l.b16 %v881
  %v1591 = vunpack.c.h.b16 %v881
  %v1592 = vunpack.c.l.b16 %v882
  %v1593 = vunpack.c.h.b16 %v882
  %v1594 = vunpack.c.l.b16 %v883
  %v1595 = vunpack.c.h.b16 %v883
  %v1596 = vunpack.c.l.b16 %v884
  %v1597 = vunpack.c.h.b16 %v884
  %v1598 = vunpack.c.l.b16 %v885
  %v1599 = vunpack.c.h.b16 %v885
  %v1600 = vunpack.c.l.b16 %v886
  %v1601 = vunpack.c.h.b16 %v886
  %v1602 = vunpack.c.l.b16 %v887
  %v1603 = vunpack.c.h.b16 %v887
  %v1604 = vunpack.c.l.b16 %v888
  %v1605 = vunpack.c.h.b16 %v888
  %v1606 = vunpack.c.l.b16 %v889
  %v1607 = vunpack.c.h.b16 %v889
  %v1608 = vunpack.c.l.b16 %v890
  %v1609 = vunpack.c.h.b16 %v890
  %v1610 = vunpack.c.l.b16 %v891
  %v1611 = vunpack.c.h.b16 %v891
  %v1612 = vunpack.c.l.b16 %v892
  %v1613 = vunpack.c.h.b16 %v892
  %v1614 = vunpack.c.l.b16 %v893
  %v1615 = vunpack.c.h.b16 %v893
  %v1616 = vunpack.c.l.b16 %v894
  %v1617 = vunpack.c.h.b16 %v894
  %v1618 = vunpack.c.l.b16 %v895
  %v1619 = vunpack.c.h.b16 %v895
  %v1620 = vunpack.c.l.b16 %v896
  %v1621 = vunpack.c.h.b16 %v896
  %v1622 = vunpack.c.l.b16 %v897
  %v1623 = vunpack.c.h.b16 %v897
  %v1624 = vunpack.c.l.b16 %v898
  %v1625 = vunpack.c.h.b16 %v898
  %v1626 = vunpack.c.l.b16 %v899
  %v1627 = vunpack.c.h.b16 %v899
  %v1628 = vunpack.c.l.b16 %v900
  %v1629 = vunpack.c.h.b16 %v900
  %v1630 = vunpack.c.l.b16 %v901
  %v1631 = vunpack.c.h.b16 %v901
  %v1632 = vunpack.c.l.b16 %v902
  %v1633 = vunpack.c.h.b16 %v902
  %v1634 = vunpack.c.l.b16 %v903
  %v1635 = vunpack.c.h.b16 %v903
  %v1636 = vunpack.c.l.b16 %v904
  %v1637 = vunpack.c.h.b16 %v904
  %v1638 = vunpack.c.l.b16 %v905
  %v1639 = vunpack.c.h.b16 %v905
  %v1640 = vunpack.c.l.b16 %v906
  %v1641 = vunpack.c.h.b16 %v906
  %v1642 = vunpack.c.l.b16 %v907
  %v1643 = vunpack.c.h.b16 %v907
  %v1644 = vunpack.c.l.b16 %v908
  %v1645 = vunpack.c.h.b16 %v908
  %v1646 = vunpack.c.l.b16 %v909
  %v1647 = vunpack.c.h.b16 %v909
  %v1648 = vunpack.c.l.b16 %v910
  %v1649 = vunpack.c.h.b16 %v910
  %v1650 = vunpack.c.l.b16 %v911
  %v1651 = vunpack.c.h.b16 %v911
  %v1652 = vunpack.c.l.b16 %v912
  %v1653 = vunpack.c.h.b16 %v912
  %v1654 = vunpack.c.l.b16 %v913
  %v1655 = vunpack.c.h.b16 %v913
  %v1656 = vunpack.c.l.b16 %v914
  %v1657 = vunpack.c.h.b16 %v914
  %v1658 = vunpack.c.l.b16 %v915
  %v1659 = vunpack.c.h.b16 %v915
  %v1660 = vunpack.c.l.b16 %v916
  %v1661 = vunpack.c.h.b16 %v916
  %v1662 = vunpack.c.l.b16 %v917
  %v1663 = vunpack.c.h.b16 %v917
  %v1664 = vunpack.c.l.b16 %v918
  %v1665 = vunpack.c.h.b16 %v918
  %v1666 = vunpack.c.l.b16 %v919
  %v1667 = vunpack.c.h.b16 %v919
  %v1668 = vunpack.c.l.b16 %v920
  %v1669 = vunpack.c.h.b16 %v920
  %v1670 = vunpack.c.l.b16 %v921
  %v1671 = vunpack.c.h.b16 %v921
  %v1672 = vunpack.c.l.b16 %v922
  %v1673 = vunpack.c.h.b16 %v922
  %v1674 = vunpack.c.l.b16 %v923
  %v1675 = vunpack.c.h.b16 %v923
  %v1676 = vunpack.c.l.b16 %v924
  %v1677 = vunpack.c.h.b16 %v924
  %v1678 = vunpack.c.l.b16 %v925
  %v1679 = vunpack.c.h.b16 %v925
  %v1680 = vunpack.c.l.b16 %v926
  %v1681 = vunpack.c.h.b16 %v926
  %v1682 = vunpack.c.l.b16 %v927
  %v1683 = vunpack.c.h.b16 %v927
  %v1684 = vunpack.c.l.b16 %v928
  %v1685 = vunpack.c.h.b16 %v928
  %v1686 = vunpack.c.l.b16 %v929
  %v1687 = vunpack.c.h.b16 %v929
  %v1688 = vunpack.c.l.b16 %v930
  %v1689 = vunpack.c.h.b16 %v930
  %v1690 = vunpack.c.l.b16 %v931
  %v1691 = vunpack.c.h.b16 %v931
  %v1692 = vunpack.c.l.b16 %v932
  %v1693 = vunpack.c.h.b16 %v932
  %v1694 = vunpack.c.l.b16 %v933
  %v1695 = vunpack.c.h.b16 %v933
  %v1696 = vunpack.c.l.b16 %v934
  %v1697 = vunpack.c.h.b16 %v934
  %v1698 = vunpack.c.l.b16 %v935
  %v1699 = vunpack.c.h.b16 %v935
  %v1700 = vunpack.c.l.b16 %v936
  %v1701 = vunpack.c.h.b16 %v936
  %v1702 = vunpack.c.l.b16 %v937
  %v1703 = vunpack.c.h.b16 %v937
  %v1704 = vunpack.c.l.b16 %v938
  %v1705 = vunpack.c.h.b16 %v938
  %v1706 = vunpack.c.l.b16 %v939
  %v1707 = vunpack.c.h.b16 %v939
  %v1708 = vunpack.c.l.b16 %v940
  %v1709 = vunpack.c.h.b16 %v940
  %v1710 = vunpack.c.l.b16 %v941
  %v1711 = vunpack.c.h.b16 %v941
  %v1712 = vunpack.c.l.b16 %v942
  %v1713 = vunpack.c.h.b16 %v942
  %v1714 = vunpack.c.l.b16 %v943
  %v1715 = vunpack.c.h.b16 %v943
  %v1716 = vunpack.c.l.b16 %v944
  %v1717 = vunpack.c.h.b16 %v944
  %v1718 = vunpack.c.l.b16 %v945
  %v1719 = vunpack.c.h.b16 %v945
  %v1720 = vunpack.c.l.b16 %v946
  %v1721 = vunpack.c.h.b16 %v946
  %v1722 = vunpack.c.l.b16 %v947
  %v1723 = vunpack.c.h.b16 %v947
  %v1724 = vunpack.c.l.b16 %v948
  %v1725 = vunpack.c.h.b16 %v948
  %v1726 = vunpack.c.l.b16 %v949
  %v1727 = vunpack.c.h.b16 %v949
  %v1728 = vunpack.c.l.b16 %v950
  %v1729 = vunpack.c.h.b16 %v950
  %v1730 = vunpack.c.l.b16 %v951
  %v1731 = vunpack.c.h.b16 %v951
  %v1732 = vunpack.c.l.b16 %v952
  %v1733 = vunpack.c.h.b16 %v952
  %v1734 = vunpack.c.l.b16 %v953
  %v1735 = vunpack.c.h.b16 %v953
  %v1736 = vunpack.c.l.b16 %v954
  %v1737 = vunpack.c.h.b16 %v954
  %v1738 = vunpack.c.l.b16 %v955
  %v1739 = vunpack.c.h.b16 %v955
  %v1740 = vunpack.c.l.b16 %v956
  %v1741 = vunpack.c.h.b16 %v956
  %v1742 = vunpack.c.l.b16 %v957
  %v1743 = vunpack.c.h.b16 %v957
  %v1744 = vunpack.c.l.b16 %v958
  %v1745 = vunpack.c.h.b16 %v958
  %v1746 = vunpack.c.l.b16 %v959
  %v1747 = vunpack.c.h.b16 %v959
  %v1748 = vunpack.c.l.b16 %v960
  %v1749 = vunpack.c.h.b16 %v960
  %v1750 = vunpack.c.l.b16 %v961
  %v1751 = vunpack.c.h.b16 %v961
  %v1752 = vunpack.c.l.b16 %v962
  %v1753 = vunpack.c.h.b16 %v962
  %v1754 = vunpack.c.l.b16 %v963
  %v1755 = vunpack.c.h.b16 %v963
  %v1756 = vunpack.c.l.b16 %v964
  %v1757 = vunpack.c.h.b16 %v964
  %v1758 = vunpack.c.l.b16 %v965
  %v1759 = vunpack.c.h.b16 %v965
  %v1760 = vunpack.c.l.b16 %v966
  %v1761 = vunpack.c.h.b16 %v966
  %v1762 = vunpack.c.l.b16 %v967
  %v1763 = vunpack.c.h.b16 %v967
  %v1764 = vunpack.c.l.b16 %v968
  %v1765 = vunpack.c.h.b16 %v968
  %v1766 = vunpack.c.l.b16 %v969
  %v1767 = vunpack.c.h.b16 %v969
  %v1768 = vunpack.c.l.b16 %v970
  %v1769 = vunpack.c.h.b16 %v970
  %v1770 = vunpack.c.l.b16 %v971
  %v1771 = vunpack.c.h.b16 %v971
  %v1772 = vunpack.c.l.b16 %v972
  %v1773 = vunpack.c.h.b16 %v972
  %v1774 = vunpack.c.l.b16 %v973
  %v1775 = vunpack.c.h.b16 %v973
  %v1776 = vunpack.c.l.b16 %v974
  %v1777 = vunpack.c.h.b16 %v974
  %v1778 = vunpack.c.l.b16 %v975
  %v1779 = vunpack.c.h.b16 %v975
  %v1780 = vunpack.c.l.b16 %v976
  %v1781 = vunpack.c.h.b16 %v976
  %v1782 = vunpack.c.l.b16 %v977
  %v1783 = vunpack.c.h.b16 %v977
  %v1784 = vunpack.c.l.b16 %v978
  %v1785 = vunpack.c.h.b16 %v978
  %v1786 = vunpack.c.l.b16 %v979
  %v1787 = vunpack.c.h.b16 %v979
  %v1788 = vunpack.c.l.b16 %v980
  %v1789 = vunpack.c.h.b16 %v980
  %v1790 = vunpack.c.l.b16 %v981
  %v1791 = vunpack.c.h.b16 %v981
  %v1792 = vpack.c.b16 %v1288, %v1280
  %v1793 = vpack.c.b16 %v1289, %v1281
  %v1794 = vpack.c.b16 %v1290, %v1282
  %v1795 = vpack.c.b16 %v1291, %v1283
  %v1796 = vpack.c.b16 %v1292, %v1284
  %v1797 = vpack.c.b16 %v1293, %v1285
  %v1798 = vpack.c.b16 %v1294, %v1286
  %v1799 = vpack.c.b16 %v1295, %v1287
  %v1800 = vpack.c.b16 %v1304, %v1296
  %v1801 = vpack.c.b16 %v1305, %v1297
  %v1802 = vpack.c.b16 %v1306, %v1298
  %v1803 = vpack.c.b16 %v1307, %v1299
  %v1804 = vpack.c.b16 %v1308, %v1300
  %v1805 = vpack.c.b16 %v1309, %v1301
  %v1806 = vpack.c.b16 %v1310, %v1302
  %v1807 = vpack.c.b16 %v1311, %v1303
  %v1808 = vpack.c.b16 %v1320, %v1312
  %v1809 = vpack.c.b16 %v1321, %v1313
  %v1810 = vpack.c.b16 %v1322, %v1314
  %v1811 = vpack.c.b16 %v1323, %v1315
  %v1812 = vpack.c.b16 %v1324, %v1316
  %v1813 = vpack.c.b16 %v1325, %v1317
  %v1814 = vpack.c.b16 %v1326, %v1318
  %v1815 = vpack.c.b16 %v1327, %v1319
  %v1816 = vpack.c.b16 %v1336, %v1328
  %v1817 = vpack.c.b16 %v1337, %v1329
  %v1818 = vpack.c.b16 %v1338, %v1330
  %v1819 = vpack.c.b16 %v1339, %v1331
  %v1820 = vpack.c.b16 %v1340, %v1332
  %v1821 = vpack.c.b16 %v1341, %v1333
  %v1822 = vpack.c.b16 %v1342, %v1334
  %v1823 = vpack.c.b16 %v1343, %v1335
  %v1824 = vpack.c.b16 %v1352, %v1344
  %v1825 = vpack.c.b16 %v1353, %v1345
  %v1826 = vpack.c.b16 %v1354, %v1346
  %v1827 = vpack.c.b16 %v1355, %v1347
  %v1828 = vpack.c.b16 %v1356, %v1348
  %v1829 = vpack.c.b16 %v1357, %v1349
  %v1830 = vpack.c.b16 %v1358, %v1350
  %v1831 = vpack.c.b16 %v1359, %v1351
  %v1832 = vpack.c.b16 %v1368, %v1360
  %v1833 = vpack.c.b16 %v1369, %v1361
  %v1834 = vpack.c.b16 %v1370, %v1362
  %v1835 = vpack.c.b16 %v1371, %v1363
  %v1836 = vpack.c.b16 %v1372, %v1364
  %v1837 = vpack.c.b16 %v1373, %v1365
  %v1838 = vpack.c.b16 %v1374, %v1366
  %v1839 = vpack.c.b16 %v1375, %v1367
  %v1840 = vpack.c.b16 %v1384, %v1376
  %v1841 = vpack.c.b16 %v1385, %v1377
  %v1842 = vpack.c.b16 %v1386, %v1378
  %v1843 = vpack.c.b16 %v1387, %v1379
  %v1844 = vpack.c.b16 %v1388, %v1380
  %v1845 = vpack.c.b16 %v1389, %v1381
  %v1846 = vpack.c.b16 %v1390, %v1382
  %v1847 = vpack.c.b16 %v1391, %v1383
  %v1848 = vpack.c.b16 %v1400, %v1392
  %v1849 = vpack.c.b16 %v1401, %v1393
  %v1850 = vpack.c.b16 %v1402, %v1394
  %v1851 = vpack.c.b16 %v1403, %v1395
  %v1852 = vpack.c.b16 %v1404, %v1396
  %v1853 = vpack.c.b16 %v1405, %v1397
  %v1854 = vpack.c.b16 %v1406, %v1398
  %v1855 = vpack.c.b16 %v1407, %v1399
  %v1856 = vpack.c.b16 %v1416, %v1408
  %v1857 = vpack.c.b16 %v1417, %v1409
  %v1858 = vpack.c.b16 %v1418, %v1410
  %v1859 = vpack.c.b16 %v1419, %v1411
  %v1860 = vpack.c.b16 %v1420, %v1412
  %v1861 = vpack.c.b16 %v1421, %v1413
  %v1862 = vpack.c.b16 %v1422, %v1414
  %v1863 = vpack.c.b16 %v1423, %v1415
  %v1864 = vpack.c.b16 %v1432, %v1424
  %v1865 = vpack.c.b16 %v1433, %v1425
  %v1866 = vpack.c.b16 %v1434, %v1426
  %v1867 = vpack.c.b16 %v1435, %v1427
  %v1868 = vpack.c.b16 %v1436, %v1428
  %v1869 = vpack.c.b16 %v1437, %v1429
  %v1870 = vpack.c.b16 %v1438, %v1430
  %v1871 = vpack.c.b16 %v1439, %v1431
  %v1872 = vpack.c.b16 %v1448, %v1440
  %v1873 = vpack.c.b16 %v1449, %v1441
  %v1874 = vpack.c.b16 %v1450, %v1442
  %v1875 = vpack.c.b16 %v1451, %v1443
  %v1876 = vpack.c.b16 %v1452, %v1444
  %v1877 = vpack.c.b16 %v1453, %v1445
  %v1878 = vpack.c.b16 %v1454, %v1446
  %v1879 = vpack.c.b16 %v1455, %v1447
  %v1880 = vpack.c.b16 %v1464, %v1456
  %v1881 = vpack.c.b16 %v1465, %v1457
  %v1882 = vpack.c.b16 %v1466, %v1458
  %v1883 = vpack.c.b16 %v1467, %v1459
  %v1884 = vpack.c.b16 %v1468, %v1460
  %v1885 = vpack.c.b16 %v1469, %v1461
  %v1886 = vpack.c.b16 %v1470, %v1462
  %v1887 = vpack.c.b16 %v1471, %v1463
  %v1888 = vpack.c.b16 %v1480, %v1472
  %v1889 = vpack.c.b16 %v1481, %v1473
  %v1890 = vpack.c.b16 %v1482, %v1474
  %v1891 = vpack.c.b16 %v1483, %v1475
  %v1892 = vpack.c.b16 %v1484, %v1476
  %v1893 = vpack.c.b16 %v1485, %v1477
  %v1894 = vpack.c.b16 %v1486, %v1478
  %v1895 = vpack.c.b16 %v1487, %v1479
  %v1896 = vpack.c.b16 %v1496, %v1488
  %v1897 = vpack.c.b16 %v1497, %v1489
  %v1898 = vpack.c.b16 %v1498, %v1490
  %v1899 = vpack.c.b16 %v1499, %v1491
  %v1900 = vpack.c.b16 %v1500, %v1492
  %v1901 = vpack.c.b16 %v1501, %v1493
  %v1902 = vpack.c.b16 %v1502, %v1494
  %v1903 = vpack.c.b16 %v1503, %v1495
  %v1904 = vpack.c.b16 %v1512, %v1504
  %v1905 = vpack.c.b16 %v1513, %v1505
  %v1906 = vpack.c.b16 %v1514, %v1506
  %v1907 = vpack.c.b16 %v1515, %v1507
  %v1908 = vpack.c.b16 %v1516, %v1508
  %v1909 = vpack.c.b16 %v1517, %v1509
  %v1910 = vpack.c.b16 %v1518, %v1510
  %v1911 = vpack.c.b16 %v1519, %v1511
  %v1912 = vpack.c.b16 %v1528, %v1520
  %v1913 = vpack.c.b16 %v1529, %v1521
  %v1914 = vpack.c.b16 %v1530, %v1522
  %v1915 = vpack.c.b16 %v1531, %v1523
  %v1916 = vpack.c.b16 %v1532, %v1524
  %v1917 = vpack.c.b16 %v1533, %v1525
  %v1918 = vpack.c.b16 %v1534, %v1526
  %v1919 = vpack.c.b16 %v1535, %v1527
  %v1920 = vpack.c.b16 %v1544, %v1536
  %v1921 = vpack.c.b16 %v1545, %v1537
  %v1922 = vpack.c.b16 %v1546, %v1538
  %v1923 = vpack.c.b16 %v1547, %v1539
  %v1924 = vpack.c.b16 %v1548, %v1540
  %v1925 = vpack.c.b16 %v1549, %v1541
  %v1926 = vpack.c.b16 %v1550, %v1542
  %v1927 = vpack.c.b16 %v1551, %v1543
  %v1928 = vpack.c.b16 %v1560, %v1552
  %v1929 = vpack.c.b16 %v1561, %v1553
  %v1930 = vpack.c.b16 %v1562, %v1554
  %v1931 = vpack.c.b16 %v1563, %v1555
  %v1932 = vpack.c.b16 %v1564, %v1556
  %v1933 = vpack.c.b16 %v1565, %v1557
  %v1934 = vpack.c.b16 %v1566, %v1558
  %v1935 = vpack.c.b16 %v1567, %v1559
  %v1936 = vpack.c.b16 %v1576, %v1568
  %v1937 = vpack.c.b16 %v1577, %v1569
  %v1938 = vpack.c.b16 %v1578, %v1570
  %v1939 = vpack.c.b16 %v1579, %v1571
  %v1940 = vpack.c.b16 %v1580, %v1572
  %v1941 = vpack.c.b16 %v1581, %v1573
  %v1942 = vpack.c.b16 %v1582, %v1574
  %v1943 = vpack.c.b16 %v1583, %v1575
  %v1944 = vpack.c.b16 %v1592, %v1584
  %v1945 = vpack.c.b16 %v1593, %v1585
  %v1946 = vpack.c.b16 %v1594, %v1586
  %v1947 = vpack.c.b16 %v1595, %v1587
  %v1948 = vpack.c.b16 %v1596, %v1588
  %v1949 = vpack.c.b16 %v1597, %v1589
  %v1950 = vpack.c.b16 %v1598, %v1590
  %v1951 = vpack.c.b16 %v1599, %v1591
  %v1952 = vpack.c.b16 %v1608, %v1600
  %v1953 = vpack.c.b16 %v1609, %v1601
  %v1954 = vpack.c.b16 %v1610, %v1602
  %v1955 = vpack.c.b16 %v1611, %v1603
  %v1956 = vpack.c.b16 %v1612, %v1604
  %v1957 = vpack.c.b16 %v1613, %v1605
  %v1958 = vpack.c.b16 %v1614, %v1606
  %v1959 = vpack.c.b16 %v1615, %v1607
  %v1960 = vpack.c.b16 %v1624, %v1616
  %v1961 = vpack.c.b16 %v1625, %v1617
  %v1962 = vpack.c.b16 %v1626, %v1618
  %v1963 = vpack.c.b16 %v1627, %v1619
  %v1964 = vpack.c.b16 %v1628, %v1620
  %v1965 = vpack.c.b16 %v1629, %v1621
  %v1966 = vpack.c.b16 %v1630, %v1622
  %v1967 = vpack.c.b16 %v1631, %v1623
  %v1968 = vpack.c.b16 %v1640, %v1632
  %v1969 = vpack.c.b16 %v1641, %v1633
  %v1970 = vpack.c.b16 %v1642, %v1634
  %v1971 = vpack.c.b16 %v1643, %v1635
  %v1972 = vpack.c.b16 %v1644, %v1636
  %v1973 = vpack.c.b16 %v1645, %v1637
  %v1974 = vpack.c.b16 %v1646, %v1638
  %v1975 = vpack.c.b16 %v1647, %v1639
  %v1976 = vpack.c.b16 %v1656, %v1648
  %v1977 = vpack.c.b16 %v1657, %v1649
  %v1978 = vpack.c.b16 %v1658, %v1650
  %v1979 = vpack.c.b16 %v1659, %v1651
  %v1980 = vpack.c.b16 %v1660, %v1652
  %v1981 = vpack.c.b16 %v1661, %v1653
  %v1982 = vpack.c.b16 %v1662, %v1654
  %v1983 = vpack.c.b16 %v1663, %v1655
  %v1984 = vpack.c.b16 %v1672, %v1664
  %v1985 = vpack.c.b16 %v1673, %v1665
  %v1986 = vpack.c.b16 %v1674, %v1666
  %v1987 = vpack.c.b16 %v1675, %v1667
  %v1988 = vpack.c.b16 %v1676, %v1668
  %v1989 = vpack.c.b16 %v1677, %v1669
  %v1990 = vpack.c.b16 %v1678, %v1670
  %v1991 = vpack.c.b16 %v1679, %v1671
  %v1992 = vpack.c.b16 %v1688, %v1680
  %v1993 = vpack.c.b16 %v1689, %v1681
  %v1994 = vpack.c.b16 %v1690, %v1682
  %v1995 = vpack.c.b16 %v1691, %v1683
  %v1996 = vpack.c.b16 %v1692, %v1684
  %v1997 = vpack.c.b16 %v1693, %v1685
  %v1998 = vpack.c.b16 %v1694, %v1686
  %v1999 = vpack.c.b16 %v1695, %v1687
  %v2000 = vpack.c.b16 %v1704, %v1696
  %v2001 = vpack.c.b16 %v1705, %v1697
  %v2002 = vpack.c.b16 %v1706, %v1698
  %v2003 = vpack.c.b16 %v1707, %v1699
  %v2004 = vpack.c.b16 %v1708, %v1700
  %v2005 = vpack.c.b16 %v1709, %v1701
  %v2006 = vpack.c.b16 %v1710, %v1702
  %v2007 = vpack.c.b16 %v1711, %v1703
  %v2008 = vpack.c.b16 %v1720, %v1712
  %v2009 = vpack.c.b16 %v1721, %v1713
  %v2010 = vpack.c.b16 %v1722, %v1714
  %v2011 = vpack.c.b16 %v1723, %v1715
  %v2012 = vpack.c.b16 %v1724, %v1716
  %v2013 = vpack.c.b16 %v1725, %v1717
  %v2014 = vpack.c.b16 %v1726, %v1718
  %v2015 = vpack.c.b16 %v1727, %v1719
  %v2016 = vpack.c.b16 %v1736, %v1728
  %v2017 = vpack.c.b16 %v1737, %v1729
  %v2018 = vpack.c.b16 %v1738, %v1730
  %v2019 = vpack.c.b16 %v1739, %v1731
  %v2020 = vpack.c.b16 %v1740, %v1732
  %v2021 = vpack.c.b16 %v1741, %v1733
  %v2022 = vpack.c.b16 %v1742, %v1734
  %v2023 = vpack.c.b16 %v1743, %v1735
  %v2024 = vpack.c.b16 %v1752, %v1744
  %v2025 = vpack.c.b16 %v1753, %v1745
  %v2026 = vpack.c.b16 %v1754, %v1746
  %v2027 = vpack.c.b16 %v1755, %v1747
  %v2028 = vpack.c.b16 %v1756, %v1748
  %v2029 = vpack.c.b16 %v1757, %v1749
  %v2030 = vpack.c.b16 %v1758, %v1750
  %v2031 = vpack.c.b16 %v1759, %v1751
  %v2032 = vpack.c.b16 %v1768, %v1760
  %v2033 = vpack.c.b16 %v1769, %v1761
  %v2034 = vpack.c.b16 %v1770, %v1762
  %v2035 = vpack.c.b16 %v1771, %v1763
  %v2036 = vpack.c.b16 %v1772, %v1764
  %v2037 = vpack.c.b16 %v1773, %v1765
  %v2038 = vpack.c.b16 %v1774, %v1766
  %v2039 = vpack.c.b16 %v1775, %v1767
  %v2040 = vpack.c.b16 %v1784, %v1776
  %v2041 = vpack.c.b16 %v1785, %v1777
  %v2042 = vpack.c.b16 %v1786, %v1778
  %v2043 = vpack.c.b16 %v1787, %v1779
  %v2044 = vpack.c.b16 %v1788, %v1780
  %v2045 = vpack.c.b16 %v1789, %v1781
  %v2046 = vpack.c.b16 %v1790, %v1782
  %v2047 = vpack.c.b16 %v1791, %v1783
  %2304 = vmatprep.subr.bf16.mxu0 %v1849
  %2305 = vmatpush1.bf16.msra.mxu0 %v1848
  %2306 = vmatprep.subr.bf16.mxu0 %v1841
  %2307 = vmatpush1.bf16.msra.mxu0 %v1840
  %2308 = vmatprep.subr.bf16.mxu0 %v1833
  %2309 = vmatpush1.bf16.msra.mxu0 %v1832
  %2310 = vmatprep.subr.bf16.mxu0 %v1825
  %2311 = vmatpush1.bf16.msra.mxu0 %v1824
  %2312 = vmatprep.subr.bf16.mxu0 %v1817
  %2313 = vmatpush1.bf16.msra.mxu0 %v1816
  %2314 = vmatprep.subr.bf16.mxu0 %v1809
  %2315 = vmatpush1.bf16.msra.mxu0 %v1808
  %2316 = vmatprep.subr.bf16.mxu0 %v1801
  %2317 = vmatpush1.bf16.msra.mxu0 %v1800
  %2318 = vmatprep.subr.bf16.mxu0 %v1793
  %2319 = vmatpush1.bf16.msra.mxu0 %v1792
  %2320 = vmatprep.subr.bf16.mxu0 %v1913
  %2321 = vmatpush2.bf16.msra.mxu0 %v1912
  %2322 = vmatprep.subr.bf16.mxu0 %v1905
  %2323 = vmatpush2.bf16.msra.mxu0 %v1904
  %2324 = vmatprep.subr.bf16.mxu0 %v1897
  %2325 = vmatpush2.bf16.msra.mxu0 %v1896
  %2326 = vmatprep.subr.bf16.mxu0 %v1889
  %2327 = vmatpush2.bf16.msra.mxu0 %v1888
  %2328 = vmatprep.subr.bf16.mxu0 %v1881
  %2329 = vmatpush2.bf16.msra.mxu0 %v1880
  %2330 = vmatprep.subr.bf16.mxu0 %v1873
  %2331 = vmatpush2.bf16.msra.mxu0 %v1872
  %2332 = vmatprep.subr.bf16.mxu0 %v1865
  %2333 = vmatpush2.bf16.msra.mxu0 %v1864
  %2334 = vmatprep.subr.bf16.mxu0 %v1857
  %2335 = vmatpush2.bf16.msra.mxu0 %v1856
  %2336 = vmatprep.mubr.bf16.mxu0 %v723
  %2337 = vmatmul.mubr.bf16.gmra.mxu0 %v722
  %v2338 = vpop.f32.mrf.mxu0
  %v2339 = vadd.f32 %v987, %v2338
  %v2340 = vpop.f32.mrf.mxu0
  %v2341 = vadd.f32 %v991, %v2340
  %v2342 = vpop.f32.mrf.mxu0
  %v2343 = vadd.f32 %v987, %v2342
  %v2344 = vpop.f32.mrf.mxu0
  %v2345 = vadd.f32 %v991, %v2344
  %2346 = vdwg.mxu0
  %2347 = vmatprep.subr.bf16.mxu0 %v1977
  %2348 = vmatpush1.bf16.msra.mxu0 %v1976
  %2349 = vmatprep.subr.bf16.mxu0 %v1969
  %2350 = vmatpush1.bf16.msra.mxu0 %v1968
  %2351 = vmatprep.subr.bf16.mxu0 %v1961
  %2352 = vmatpush1.bf16.msra.mxu0 %v1960
  %2353 = vmatprep.subr.bf16.mxu0 %v1953
  %2354 = vmatpush1.bf16.msra.mxu0 %v1952
  %2355 = vmatprep.subr.bf16.mxu0 %v1945
  %2356 = vmatpush1.bf16.msra.mxu0 %v1944
  %2357 = vmatprep.subr.bf16.mxu0 %v1937
  %2358 = vmatpush1.bf16.msra.mxu0 %v1936
  %2359 = vmatprep.subr.bf16.mxu0 %v1929
  %2360 = vmatpush1.bf16.msra.mxu0 %v1928
  %2361 = vmatprep.subr.bf16.mxu0 %v1921
  %2362 = vmatpush1.bf16.msra.mxu0 %v1920
  %2363 = vmatprep.subr.bf16.mxu0 %v2041
  %2364 = vmatpush2.bf16.msra.mxu0 %v2040
  %2365 = vmatprep.subr.bf16.mxu0 %v2033
  %2366 = vmatpush2.bf16.msra.mxu0 %v2032
  %2367 = vmatprep.subr.bf16.mxu0 %v2025
  %2368 = vmatpush2.bf16.msra.mxu0 %v2024
  %2369 = vmatprep.subr.bf16.mxu0 %v2017
  %2370 = vmatpush2.bf16.msra.mxu0 %v2016
  %2371 = vmatprep.subr.bf16.mxu0 %v2009
  %2372 = vmatpush2.bf16.msra.mxu0 %v2008
  %2373 = vmatprep.subr.bf16.mxu0 %v2001
  %2374 = vmatpush2.bf16.msra.mxu0 %v2000
  %2375 = vmatprep.subr.bf16.mxu0 %v1993
  %2376 = vmatpush2.bf16.msra.mxu0 %v1992
  %2377 = vmatprep.subr.bf16.mxu0 %v1985
  %2378 = vmatpush2.bf16.msra.mxu0 %v1984
  %2379 = vmatprep.mubr.bf16.mxu0 %v725
  %2380 = vmatmul.mubr.bf16.gmra.mxu0 %v724
  %v2381 = vpop.f32.mrf.mxu0
  %v2382 = vadd.f32 %v2339, %v2381
  %v2383 = vpop.f32.mrf.mxu0
  %v2384 = vadd.f32 %v2341, %v2383
  %v2385 = vpop.f32.mrf.mxu0
  %v2386 = vadd.f32 %v2343, %v2385
  %v2387 = vpop.f32.mrf.mxu0
  %v2388 = vadd.f32 %v2345, %v2387
  %2389 = vdwg.mxu0
  %2390 = vmatprep.subr.bf16.mxu0 %v1851
  %2391 = vmatpush1.bf16.msra.mxu0 %v1850
  %2392 = vmatprep.subr.bf16.mxu0 %v1843
  %2393 = vmatpush1.bf16.msra.mxu0 %v1842
  %2394 = vmatprep.subr.bf16.mxu0 %v1835
  %2395 = vmatpush1.bf16.msra.mxu0 %v1834
  %2396 = vmatprep.subr.bf16.mxu0 %v1827
  %2397 = vmatpush1.bf16.msra.mxu0 %v1826
  %2398 = vmatprep.subr.bf16.mxu0 %v1819
  %2399 = vmatpush1.bf16.msra.mxu0 %v1818
  %2400 = vmatprep.subr.bf16.mxu0 %v1811
  %2401 = vmatpush1.bf16.msra.mxu0 %v1810
  %2402 = vmatprep.subr.bf16.mxu0 %v1803
  %2403 = vmatpush1.bf16.msra.mxu0 %v1802
  %2404 = vmatprep.subr.bf16.mxu0 %v1795
  %2405 = vmatpush1.bf16.msra.mxu0 %v1794
  %2406 = vmatprep.subr.bf16.mxu0 %v1915
  %2407 = vmatpush2.bf16.msra.mxu0 %v1914
  %2408 = vmatprep.subr.bf16.mxu0 %v1907
  %2409 = vmatpush2.bf16.msra.mxu0 %v1906
  %2410 = vmatprep.subr.bf16.mxu0 %v1899
  %2411 = vmatpush2.bf16.msra.mxu0 %v1898
  %2412 = vmatprep.subr.bf16.mxu0 %v1891
  %2413 = vmatpush2.bf16.msra.mxu0 %v1890
  %2414 = vmatprep.subr.bf16.mxu0 %v1883
  %2415 = vmatpush2.bf16.msra.mxu0 %v1882
  %2416 = vmatprep.subr.bf16.mxu0 %v1875
  %2417 = vmatpush2.bf16.msra.mxu0 %v1874
  %2418 = vmatprep.subr.bf16.mxu0 %v1867
  %2419 = vmatpush2.bf16.msra.mxu0 %v1866
  %2420 = vmatprep.subr.bf16.mxu0 %v1859
  %2421 = vmatpush2.bf16.msra.mxu0 %v1858
  %2422 = vmatprep.mubr.bf16.mxu0 %v723
  %2423 = vmatmul.mubr.bf16.gmra.mxu0 %v722
  %v2424 = vpop.f32.mrf.mxu0
  %v2425 = vadd.f32 %v995, %v2424
  %v2426 = vpop.f32.mrf.mxu0
  %v2427 = vadd.f32 %v999, %v2426
  %v2428 = vpop.f32.mrf.mxu0
  %v2429 = vadd.f32 %v995, %v2428
  %v2430 = vpop.f32.mrf.mxu0
  %v2431 = vadd.f32 %v999, %v2430
  %2432 = vdwg.mxu0
  %2433 = vmatprep.subr.bf16.mxu0 %v1979
  %2434 = vmatpush1.bf16.msra.mxu0 %v1978
  %2435 = vmatprep.subr.bf16.mxu0 %v1971
  %2436 = vmatpush1.bf16.msra.mxu0 %v1970
  %2437 = vmatprep.subr.bf16.mxu0 %v1963
  %2438 = vmatpush1.bf16.msra.mxu0 %v1962
  %2439 = vmatprep.subr.bf16.mxu0 %v1955
  %2440 = vmatpush1.bf16.msra.mxu0 %v1954
  %2441 = vmatprep.subr.bf16.mxu0 %v1947
  %2442 = vmatpush1.bf16.msra.mxu0 %v1946
  %2443 = vmatprep.subr.bf16.mxu0 %v1939
  %2444 = vmatpush1.bf16.msra.mxu0 %v1938
  %2445 = vmatprep.subr.bf16.mxu0 %v1931
  %2446 = vmatpush1.bf16.msra.mxu0 %v1930
  %2447 = vmatprep.subr.bf16.mxu0 %v1923
  %2448 = vmatpush1.bf16.msra.mxu0 %v1922
  %2449 = vmatprep.subr.bf16.mxu0 %v2043
  %2450 = vmatpush2.bf16.msra.mxu0 %v2042
  %2451 = vmatprep.subr.bf16.mxu0 %v2035
  %2452 = vmatpush2.bf16.msra.mxu0 %v2034
  %2453 = vmatprep.subr.bf16.mxu0 %v2027
  %2454 = vmatpush2.bf16.msra.mxu0 %v2026
  %2455 = vmatprep.subr.bf16.mxu0 %v2019
  %2456 = vmatpush2.bf16.msra.mxu0 %v2018
  %2457 = vmatprep.subr.bf16.mxu0 %v2011
  %2458 = vmatpush2.bf16.msra.mxu0 %v2010
  %2459 = vmatprep.subr.bf16.mxu0 %v2003
  %2460 = vmatpush2.bf16.msra.mxu0 %v2002
  %2461 = vmatprep.subr.bf16.mxu0 %v1995
  %2462 = vmatpush2.bf16.msra.mxu0 %v1994
  %2463 = vmatprep.subr.bf16.mxu0 %v1987
  %2464 = vmatpush2.bf16.msra.mxu0 %v1986
  %2465 = vmatprep.mubr.bf16.mxu0 %v725
  %2466 = vmatmul.mubr.bf16.gmra.mxu0 %v724
  %v2467 = vpop.f32.mrf.mxu0
  %v2468 = vadd.f32 %v2425, %v2467
  %v2469 = vpop.f32.mrf.mxu0
  %v2470 = vadd.f32 %v2427, %v2469
  %v2471 = vpop.f32.mrf.mxu0
  %v2472 = vadd.f32 %v2429, %v2471
  %v2473 = vpop.f32.mrf.mxu0
  %v2474 = vadd.f32 %v2431, %v2473
  %2475 = vdwg.mxu0
  %2476 = vmatprep.subr.bf16.mxu0 %v1853
  %2477 = vmatpush1.bf16.msra.mxu0 %v1852
  %2478 = vmatprep.subr.bf16.mxu0 %v1845
  %2479 = vmatpush1.bf16.msra.mxu0 %v1844
  %2480 = vmatprep.subr.bf16.mxu0 %v1837
  %2481 = vmatpush1.bf16.msra.mxu0 %v1836
  %2482 = vmatprep.subr.bf16.mxu0 %v1829
  %2483 = vmatpush1.bf16.msra.mxu0 %v1828
  %2484 = vmatprep.subr.bf16.mxu0 %v1821
  %2485 = vmatpush1.bf16.msra.mxu0 %v1820
  %2486 = vmatprep.subr.bf16.mxu0 %v1813
  %2487 = vmatpush1.bf16.msra.mxu0 %v1812
  %2488 = vmatprep.subr.bf16.mxu0 %v1805
  %2489 = vmatpush1.bf16.msra.mxu0 %v1804
  %2490 = vmatprep.subr.bf16.mxu0 %v1797
  %2491 = vmatpush1.bf16.msra.mxu0 %v1796
  %2492 = vmatprep.subr.bf16.mxu0 %v1917
  %2493 = vmatpush2.bf16.msra.mxu0 %v1916
  %2494 = vmatprep.subr.bf16.mxu0 %v1909
  %2495 = vmatpush2.bf16.msra.mxu0 %v1908
  %2496 = vmatprep.subr.bf16.mxu0 %v1901
  %2497 = vmatpush2.bf16.msra.mxu0 %v1900
  %2498 = vmatprep.subr.bf16.mxu0 %v1893
  %2499 = vmatpush2.bf16.msra.mxu0 %v1892
  %2500 = vmatprep.subr.bf16.mxu0 %v1885
  %2501 = vmatpush2.bf16.msra.mxu0 %v1884
  %2502 = vmatprep.subr.bf16.mxu0 %v1877
  %2503 = vmatpush2.bf16.msra.mxu0 %v1876
  %2504 = vmatprep.subr.bf16.mxu0 %v1869
  %2505 = vmatpush2.bf16.msra.mxu0 %v1868
  %2506 = vmatprep.subr.bf16.mxu0 %v1861
  %2507 = vmatpush2.bf16.msra.mxu0 %v1860
  %2508 = vmatprep.mubr.bf16.mxu0 %v723
  %2509 = vmatmul.mubr.bf16.gmra.mxu0 %v722
  %v2510 = vpop.f32.mrf.mxu0
  %v2511 = vadd.f32 %v1003, %v2510
  %v2512 = vpop.f32.mrf.mxu0
  %v2513 = vadd.f32 %v1007, %v2512
  %v2514 = vpop.f32.mrf.mxu0
  %v2515 = vadd.f32 %v1003, %v2514
  %v2516 = vpop.f32.mrf.mxu0
  %v2517 = vadd.f32 %v1007, %v2516
  %2518 = vdwg.mxu0
  %2519 = vmatprep.subr.bf16.mxu0 %v1981
  %2520 = vmatpush1.bf16.msra.mxu0 %v1980
  %2521 = vmatprep.subr.bf16.mxu0 %v1973
  %2522 = vmatpush1.bf16.msra.mxu0 %v1972
  %2523 = vmatprep.subr.bf16.mxu0 %v1965
  %2524 = vmatpush1.bf16.msra.mxu0 %v1964
  %2525 = vmatprep.subr.bf16.mxu0 %v1957
  %2526 = vmatpush1.bf16.msra.mxu0 %v1956
  %2527 = vmatprep.subr.bf16.mxu0 %v1949
  %2528 = vmatpush1.bf16.msra.mxu0 %v1948
  %2529 = vmatprep.subr.bf16.mxu0 %v1941
  %2530 = vmatpush1.bf16.msra.mxu0 %v1940
  %2531 = vmatprep.subr.bf16.mxu0 %v1933
  %2532 = vmatpush1.bf16.msra.mxu0 %v1932
  %2533 = vmatprep.subr.bf16.mxu0 %v1925
  %2534 = vmatpush1.bf16.msra.mxu0 %v1924
  %2535 = vmatprep.subr.bf16.mxu0 %v2045
  %2536 = vmatpush2.bf16.msra.mxu0 %v2044
  %2537 = vmatprep.subr.bf16.mxu0 %v2037
  %2538 = vmatpush2.bf16.msra.mxu0 %v2036
  %2539 = vmatprep.subr.bf16.mxu0 %v2029
  %2540 = vmatpush2.bf16.msra.mxu0 %v2028
  %2541 = vmatprep.subr.bf16.mxu0 %v2021
  %2542 = vmatpush2.bf16.msra.mxu0 %v2020
  %2543 = vmatprep.subr.bf16.mxu0 %v2013
  %2544 = vmatpush2.bf16.msra.mxu0 %v2012
  %2545 = vmatprep.subr.bf16.mxu0 %v2005
  %2546 = vmatpush2.bf16.msra.mxu0 %v2004
  %2547 = vmatprep.subr.bf16.mxu0 %v1997
  %2548 = vmatpush2.bf16.msra.mxu0 %v1996
  %2549 = vmatprep.subr.bf16.mxu0 %v1989
  %2550 = vmatpush2.bf16.msra.mxu0 %v1988
  %2551 = vmatprep.mubr.bf16.mxu0 %v725
  %2552 = vmatmul.mubr.bf16.gmra.mxu0 %v724
  %v2553 = vpop.f32.mrf.mxu0
  %v2554 = vadd.f32 %v2511, %v2553
  %v2555 = vpop.f32.mrf.mxu0
  %v2556 = vadd.f32 %v2513, %v2555
  %v2557 = vpop.f32.mrf.mxu0
  %v2558 = vadd.f32 %v2515, %v2557
  %v2559 = vpop.f32.mrf.mxu0
  %v2560 = vadd.f32 %v2517, %v2559
  %2561 = vdwg.mxu0
  %2562 = vmatprep.subr.bf16.mxu0 %v1855
  %2563 = vmatpush1.bf16.msra.mxu0 %v1854
  %2564 = vmatprep.subr.bf16.mxu0 %v1847
  %2565 = vmatpush1.bf16.msra.mxu0 %v1846
  %2566 = vmatprep.subr.bf16.mxu0 %v1839
  %2567 = vmatpush1.bf16.msra.mxu0 %v1838
  %2568 = vmatprep.subr.bf16.mxu0 %v1831
  %2569 = vmatpush1.bf16.msra.mxu0 %v1830
  %2570 = vmatprep.subr.bf16.mxu0 %v1823
  %2571 = vmatpush1.bf16.msra.mxu0 %v1822
  %2572 = vmatprep.subr.bf16.mxu0 %v1815
  %2573 = vmatpush1.bf16.msra.mxu0 %v1814
  %2574 = vmatprep.subr.bf16.mxu0 %v1807
  %2575 = vmatpush1.bf16.msra.mxu0 %v1806
  %2576 = vmatprep.subr.bf16.mxu0 %v1799
  %2577 = vmatpush1.bf16.msra.mxu0 %v1798
  %2578 = vmatprep.subr.bf16.mxu0 %v1919
  %2579 = vmatpush2.bf16.msra.mxu0 %v1918
  %2580 = vmatprep.subr.bf16.mxu0 %v1911
  %2581 = vmatpush2.bf16.msra.mxu0 %v1910
  %2582 = vmatprep.subr.bf16.mxu0 %v1903
  %2583 = vmatpush2.bf16.msra.mxu0 %v1902
  %2584 = vmatprep.subr.bf16.mxu0 %v1895
  %2585 = vmatpush2.bf16.msra.mxu0 %v1894
  %2586 = vmatprep.subr.bf16.mxu0 %v1887
  %2587 = vmatpush2.bf16.msra.mxu0 %v1886
  %2588 = vmatprep.subr.bf16.mxu0 %v1879
  %2589 = vmatpush2.bf16.msra.mxu0 %v1878
  %2590 = vmatprep.subr.bf16.mxu0 %v1871
  %2591 = vmatpush2.bf16.msra.mxu0 %v1870
  %2592 = vmatprep.subr.bf16.mxu0 %v1863
  %2593 = vmatpush2.bf16.msra.mxu0 %v1862
  %2594 = vmatprep.mubr.bf16.mxu0 %v723
  %2595 = vmatmul.mubr.bf16.gmra.mxu0 %v722
  %v2596 = vpop.f32.mrf.mxu0
  %v2597 = vadd.f32 %v1011, %v2596
  %v2598 = vpop.f32.mrf.mxu0
  %v2599 = vadd.f32 %v1015, %v2598
  %v2600 = vpop.f32.mrf.mxu0
  %v2601 = vadd.f32 %v1011, %v2600
  %v2602 = vpop.f32.mrf.mxu0
  %v2603 = vadd.f32 %v1015, %v2602
  %2604 = vdwg.mxu0
  %2605 = vmatprep.subr.bf16.mxu0 %v1983
  %2606 = vmatpush1.bf16.msra.mxu0 %v1982
  %2607 = vmatprep.subr.bf16.mxu0 %v1975
  %2608 = vmatpush1.bf16.msra.mxu0 %v1974
  %2609 = vmatprep.subr.bf16.mxu0 %v1967
  %2610 = vmatpush1.bf16.msra.mxu0 %v1966
  %2611 = vmatprep.subr.bf16.mxu0 %v1959
  %2612 = vmatpush1.bf16.msra.mxu0 %v1958
  %2613 = vmatprep.subr.bf16.mxu0 %v1951
  %2614 = vmatpush1.bf16.msra.mxu0 %v1950
  %2615 = vmatprep.subr.bf16.mxu0 %v1943
  %2616 = vmatpush1.bf16.msra.mxu0 %v1942
  %2617 = vmatprep.subr.bf16.mxu0 %v1935
  %2618 = vmatpush1.bf16.msra.mxu0 %v1934
  %2619 = vmatprep.subr.bf16.mxu0 %v1927
  %2620 = vmatpush1.bf16.msra.mxu0 %v1926
  %2621 = vmatprep.subr.bf16.mxu0 %v2047
  %2622 = vmatpush2.bf16.msra.mxu0 %v2046
  %2623 = vmatprep.subr.bf16.mxu0 %v2039
  %2624 = vmatpush2.bf16.msra.mxu0 %v2038
  %2625 = vmatprep.subr.bf16.mxu0 %v2031
  %2626 = vmatpush2.bf16.msra.mxu0 %v2030
  %2627 = vmatprep.subr.bf16.mxu0 %v2023
  %2628 = vmatpush2.bf16.msra.mxu0 %v2022
  %2629 = vmatprep.subr.bf16.mxu0 %v2015
  %2630 = vmatpush2.bf16.msra.mxu0 %v2014
  %2631 = vmatprep.subr.bf16.mxu0 %v2007
  %2632 = vmatpush2.bf16.msra.mxu0 %v2006
  %2633 = vmatprep.subr.bf16.mxu0 %v1999
  %2634 = vmatpush2.bf16.msra.mxu0 %v1998
  %2635 = vmatprep.subr.bf16.mxu0 %v1991
  %2636 = vmatpush2.bf16.msra.mxu0 %v1990
  %2637 = vmatprep.mubr.bf16.mxu0 %v725
  %2638 = vmatmul.mubr.bf16.gmra.mxu0 %v724
  %v2639 = vpop.f32.mrf.mxu0
  %v2640 = vadd.f32 %v2597, %v2639
  %v2641 = vpop.f32.mrf.mxu0
  %v2642 = vadd.f32 %v2599, %v2641
  %v2643 = vpop.f32.mrf.mxu0
  %v2644 = vadd.f32 %v2601, %v2643
  %v2645 = vpop.f32.mrf.mxu0
  %v2646 = vadd.f32 %v2603, %v2645
  %2647 = vdwg.mxu0
  %vm2648 = vcmp.gt.f32.partialorder %v2382, 0.0
  %vm2649 = vcmp.gt.f32.partialorder %v2384, 0.0
  %vm2650 = vcmp.gt.f32.partialorder %v2468, 0.0
  %vm2651 = vcmp.gt.f32.partialorder %v2470, 0.0
  %vm2652 = vcmp.gt.f32.partialorder %v2554, 0.0
  %vm2653 = vcmp.gt.f32.partialorder %v2556, 0.0
  %vm2654 = vcmp.gt.f32.partialorder %v2640, 0.0
  %vm2655 = vcmp.gt.f32.partialorder %v2642, 0.0
  %vm2656 = vcmp.gt.f32.partialorder %v2386, 0.0
  %vm2657 = vcmp.gt.f32.partialorder %v2388, 0.0
  %vm2658 = vcmp.gt.f32.partialorder %v2472, 0.0
  %vm2659 = vcmp.gt.f32.partialorder %v2474, 0.0
  %vm2660 = vcmp.gt.f32.partialorder %v2558, 0.0
  %vm2661 = vcmp.gt.f32.partialorder %v2560, 0.0
  %vm2662 = vcmp.gt.f32.partialorder %v2644, 0.0
  %vm2663 = vcmp.gt.f32.partialorder %v2646, 0.0
  %v2664 = vmul.f32 %v2382, 0.2
  %v2665 = vmul.f32 %v2384, 0.2
  %v2666 = vmul.f32 %v2468, 0.2
  %v2667 = vmul.f32 %v2470, 0.2
  %v2668 = vmul.f32 %v2554, 0.2
  %v2669 = vmul.f32 %v2556, 0.2
  %v2670 = vmul.f32 %v2640, 0.2
  %v2671 = vmul.f32 %v2642, 0.2
  %v2672 = vmul.f32 %v2386, 0.2
  %v2673 = vmul.f32 %v2388, 0.2
  %v2674 = vmul.f32 %v2472, 0.2
  %v2675 = vmul.f32 %v2474, 0.2
  %v2676 = vmul.f32 %v2558, 0.2
  %v2677 = vmul.f32 %v2560, 0.2
  %v2678 = vmul.f32 %v2644, 0.2
  %v2679 = vmul.f32 %v2646, 0.2
  %v2680 = vsel %vm2648, %v2382, %v2664
  %v2681 = vsel %vm2649, %v2384, %v2665
  %v2682 = vsel %vm2650, %v2468, %v2666
  %v2683 = vsel %vm2651, %v2470, %v2667
  %v2684 = vsel %vm2652, %v2554, %v2668
  %v2685 = vsel %vm2653, %v2556, %v2669
  %v2686 = vsel %vm2654, %v2640, %v2670
  %v2687 = vsel %vm2655, %v2642, %v2671
  %v2688 = vsel %vm2656, %v2386, %v2672
  %v2689 = vsel %vm2657, %v2388, %v2673
  %v2690 = vsel %vm2658, %v2472, %v2674
  %v2691 = vsel %vm2659, %v2474, %v2675
  %v2692 = vsel %vm2660, %v2558, %v2676
  %v2693 = vsel %vm2661, %v2560, %v2677
  %v2694 = vsel %vm2662, %v2644, %v2678
  %v2695 = vsel %vm2663, %v2646, %v2679
  %v2696 = vpack.c.bf16 %v2688, %v2680
  %v2697 = vpack.c.bf16 %v2689, %v2681
  %v2698 = vpack.c.bf16 %v2690, %v2682
  %v2699 = vpack.c.bf16 %v2691, %v2683
  %v2700 = vpack.c.bf16 %v2692, %v2684
  %v2701 = vpack.c.bf16 %v2693, %v2685
  %v2702 = vpack.c.bf16 %v2694, %v2686
  %v2703 = vpack.c.bf16 %v2695, %v2687
  %v2704 = vld [vmem:[%s7] sm:$0xff]
  %v2705 = vld [vmem:[%s7 + $0x8] sm:$0xff]
  %v2706 = vld [vmem:[%s7 + $0x10] sm:$0xff]
  %v2707 = vld [vmem:[%s7 + $0x18] sm:$0xf]
  %v2708 = vld [vmem:[%s7 + $0x1c] sm:$0xff]
  %v2709 = vld [vmem:[%s7 + $0x24] sm:$0xff]
  %v2710 = vld [vmem:[%s7 + $0x2c] sm:$0xff]
  %v2711 = vld [vmem:[%s7 + $0x34] sm:$0xf]
  %v2712 = vld [vmem:[%s7 + $0x38] sm:$0xff]
  %v2713 = vld [vmem:[%s7 + $0x40] sm:$0xff]
  %v2714 = vld [vmem:[%s7 + $0x48] sm:$0xff]
  %v2715 = vld [vmem:[%s7 + $0x50] sm:$0xf]
  %v2716 = vld [vmem:[%s7 + $0x54] sm:$0xff]
  %v2717 = vld [vmem:[%s7 + $0x5c] sm:$0xff]
  %v2718 = vld [vmem:[%s7 + $0x64] sm:$0xff]
  %v2719 = vld [vmem:[%s7 + $0x6c] sm:$0xf]
  %v2720 = vld [vmem:[%s7 + $0x70] sm:$0xff]
  %v2721 = vld [vmem:[%s7 + $0x78] sm:$0xff]
  %v2722 = vld [vmem:[%s7 + $0x80] sm:$0xff]
  %v2723 = vld [vmem:[%s7 + $0x88] sm:$0xf]
  %v2724 = vld [vmem:[%s7 + $0x8c] sm:$0xff]
  %v2725 = vld [vmem:[%s7 + $0x94] sm:$0xff]
  %v2726 = vld [vmem:[%s7 + $0x9c] sm:$0xff]
  %v2727 = vld [vmem:[%s7 + $0xa4] sm:$0xf]
  %v2728 = vld [vmem:[%s7 + $0xa8] sm:$0xff]
  %v2729 = vld [vmem:[%s7 + $0xb0] sm:$0xff]
  %v2730 = vld [vmem:[%s7 + $0xb8] sm:$0xff]
  %v2731 = vld [vmem:[%s7 + $0xc0] sm:$0xf]
  %v2732 = vld [vmem:[%s7 + $0xc4] sm:$0xff]
  %v2733 = vld [vmem:[%s7 + $0xcc] sm:$0xff]
  %v2734 = vld [vmem:[%s7 + $0xd4] sm:$0xff]
  %v2735 = vld [vmem:[%s7 + $0xdc] sm:$0xf]
  %v2736 = vld [vmem:[%s7 + $0xe0] sm:$0xff]
  %v2737 = vld [vmem:[%s7 + $0xe8] sm:$0xff]
  %v2738 = vld [vmem:[%s7 + $0xf0] sm:$0xff]
  %v2739 = vld [vmem:[%s7 + $0xf8] sm:$0xf]
  %v2740 = vld [vmem:[%s7 + $0xfc] sm:$0xff]
  %v2741 = vld [vmem:[%s7 + $0x104] sm:$0xff]
  %v2742 = vld [vmem:[%s7 + $0x10c] sm:$0xff]
  %v2743 = vld [vmem:[%s7 + $0x114] sm:$0xf]
  %v2744 = vld [vmem:[%s7 + $0x118] sm:$0xff]
  %v2745 = vld [vmem:[%s7 + $0x120] sm:$0xff]
  %v2746 = vld [vmem:[%s7 + $0x128] sm:$0xff]
  %v2747 = vld [vmem:[%s7 + $0x130] sm:$0xf]
  %v2748 = vld [vmem:[%s7 + $0x134] sm:$0xff]
  %v2749 = vld [vmem:[%s7 + $0x13c] sm:$0xff]
  %v2750 = vld [vmem:[%s7 + $0x144] sm:$0xff]
  %v2751 = vld [vmem:[%s7 + $0x14c] sm:$0xf]
  %v2752 = vld [vmem:[%s7 + $0x150] sm:$0xff]
  %v2753 = vld [vmem:[%s7 + $0x158] sm:$0xff]
  %v2754 = vld [vmem:[%s7 + $0x160] sm:$0xff]
  %v2755 = vld [vmem:[%s7 + $0x168] sm:$0xf]
  %v2756 = vld [vmem:[%s7 + $0x16c] sm:$0xff]
  %v2757 = vld [vmem:[%s7 + $0x174] sm:$0xff]
  %v2758 = vld [vmem:[%s7 + $0x17c] sm:$0xff]
  %v2759 = vld [vmem:[%s7 + $0x184] sm:$0xf]
  %v2760 = vld [vmem:[%s7 + $0x188] sm:$0xff]
  %v2761 = vld [vmem:[%s7 + $0x190] sm:$0xff]
  %v2762 = vld [vmem:[%s7 + $0x198] sm:$0xff]
  %v2763 = vld [vmem:[%s7 + $0x1a0] sm:$0xf]
  %v2764 = vld [vmem:[%s7 + $0x1a4] sm:$0xff]
  %v2765 = vld [vmem:[%s7 + $0x1ac] sm:$0xff]
  %v2766 = vld [vmem:[%s7 + $0x1b4] sm:$0xff]
  %v2767 = vld [vmem:[%s7 + $0x1bc] sm:$0xf]
  %v2768 = vld [vmem:[%s7 + $0x1c0] sm:$0xff]
  %v2769 = vld [vmem:[%s7 + $0x1c8] sm:$0xff]
  %v2770 = vld [vmem:[%s7 + $0x1d0] sm:$0xff]
  %v2771 = vld [vmem:[%s7 + $0x1d8] sm:$0xf]
  %v2772 = vld [vmem:[%s7 + $0x1dc] sm:$0xff]
  %v2773 = vld [vmem:[%s7 + $0x1e4] sm:$0xff]
  %v2774 = vld [vmem:[%s7 + $0x1ec] sm:$0xff]
  %v2775 = vld [vmem:[%s7 + $0x1f4] sm:$0xf]
  %v2776 = vld [vmem:[%s7 + $0x1f8] sm:$0xff]
  %v2777 = vld [vmem:[%s7 + $0x200] sm:$0xff]
  %v2778 = vld [vmem:[%s7 + $0x208] sm:$0xff]
  %v2779 = vld [vmem:[%s7 + $0x210] sm:$0xf]
  %v2780 = vld [vmem:[%s7 + $0x214] sm:$0xff]
  %v2781 = vld [vmem:[%s7 + $0x21c] sm:$0xff]
  %v2782 = vld [vmem:[%s7 + $0x224] sm:$0xff]
  %v2783 = vld [vmem:[%s7 + $0x22c] sm:$0xf]
  %v2784 = vld [vmem:[%s7 + $0x230] sm:$0xff]
  %v2785 = vld [vmem:[%s7 + $0x238] sm:$0xff]
  %v2786 = vld [vmem:[%s7 + $0x240] sm:$0xff]
  %v2787 = vld [vmem:[%s7 + $0x248] sm:$0xf]
  %v2788 = vld [vmem:[%s7 + $0x24c] sm:$0xff]
  %v2789 = vld [vmem:[%s7 + $0x254] sm:$0xff]
  %v2790 = vld [vmem:[%s7 + $0x25c] sm:$0xff]
  %v2791 = vld [vmem:[%s7 + $0x264] sm:$0xf]
  %v2792 = vld [vmem:[%s7 + $0x268] sm:$0xff]
  %v2793 = vld [vmem:[%s7 + $0x270] sm:$0xff]
  %v2794 = vld [vmem:[%s7 + $0x278] sm:$0xff]
  %v2795 = vld [vmem:[%s7 + $0x280] sm:$0xf]
  %v2796 = vld [vmem:[%s7 + $0x284] sm:$0xff]
  %v2797 = vld [vmem:[%s7 + $0x28c] sm:$0xff]
  %v2798 = vld [vmem:[%s7 + $0x294] sm:$0xff]
  %v2799 = vld [vmem:[%s7 + $0x29c] sm:$0xf]
  %v2800 = vld [vmem:[%s7 + $0x2a0] sm:$0xff]
  %v2801 = vld [vmem:[%s7 + $0x2a8] sm:$0xff]
  %v2802 = vld [vmem:[%s7 + $0x2b0] sm:$0xff]
  %v2803 = vld [vmem:[%s7 + $0x2b8] sm:$0xf]
  %v2804 = vld [vmem:[%s7 + $0x2bc] sm:$0xff]
  %v2805 = vld [vmem:[%s7 + $0x2c4] sm:$0xff]
  %v2806 = vld [vmem:[%s7 + $0x2cc] sm:$0xff]
  %v2807 = vld [vmem:[%s7 + $0x2d4] sm:$0xf]
  %v2808 = vld [vmem:[%s7 + $0x2d8] sm:$0xff]
  %v2809 = vld [vmem:[%s7 + $0x2e0] sm:$0xff]
  %v2810 = vld [vmem:[%s7 + $0x2e8] sm:$0xff]
  %v2811 = vld [vmem:[%s7 + $0x2f0] sm:$0xf]
  %v2812 = vld [vmem:[%s7 + $0x2f4] sm:$0xff]
  %v2813 = vld [vmem:[%s7 + $0x2fc] sm:$0xff]
  %v2814 = vld [vmem:[%s7 + $0x304] sm:$0xff]
  %v2815 = vld [vmem:[%s7 + $0x30c] sm:$0xf]
  %v2816 = vld [vmem:[%s7 + $0x310] sm:$0xff]
  %v2817 = vld [vmem:[%s7 + $0x318] sm:$0xff]
  %v2818 = vld [vmem:[%s7 + $0x320] sm:$0xff]
  %v2819 = vld [vmem:[%s7 + $0x328] sm:$0xf]
  %v2820 = vld [vmem:[%s7 + $0x32c] sm:$0xff]
  %v2821 = vld [vmem:[%s7 + $0x334] sm:$0xff]
  %v2822 = vld [vmem:[%s7 + $0x33c] sm:$0xff]
  %v2823 = vld [vmem:[%s7 + $0x344] sm:$0xf]
  %v2824 = vld [vmem:[%s7 + $0x348] sm:$0xff]
  %v2825 = vld [vmem:[%s7 + $0x350] sm:$0xff]
  %v2826 = vld [vmem:[%s7 + $0x358] sm:$0xff]
  %v2827 = vld [vmem:[%s7 + $0x360] sm:$0xf]
  %v2828 = vld [vmem:[%s7 + $0x364] sm:$0xff]
  %v2829 = vld [vmem:[%s7 + $0x36c] sm:$0xff]
  %v2830 = vld [vmem:[%s7 + $0x374] sm:$0xff]
  %v2831 = vld [vmem:[%s7 + $0x37c] sm:$0xf]
  %v2832 = vld [vmem:[%s7 + $0x380] sm:$0xff]
  %v2833 = vld [vmem:[%s7 + $0x388] sm:$0xff]
  %v2834 = vld [vmem:[%s7 + $0x390] sm:$0xff]
  %v2835 = vld [vmem:[%s7 + $0x398] sm:$0xf]
  %v2836 = vld [vmem:[%s7 + $0x39c] sm:$0xff]
  %v2837 = vld [vmem:[%s7 + $0x3a4] sm:$0xff]
  %v2838 = vld [vmem:[%s7 + $0x3ac] sm:$0xff]
  %v2839 = vld [vmem:[%s7 + $0x3b4] sm:$0xf]
  %v2840 = vld [vmem:[%s7 + $0x3b8] sm:$0xff]
  %v2841 = vld [vmem:[%s7 + $0x3c0] sm:$0xff]
  %v2842 = vld [vmem:[%s7 + $0x3c8] sm:$0xff]
  %v2843 = vld [vmem:[%s7 + $0x3d0] sm:$0xf]
  %v2844 = vld [vmem:[%s7 + $0x3d4] sm:$0xff]
  %v2845 = vld [vmem:[%s7 + $0x3dc] sm:$0xff]
  %v2846 = vld [vmem:[%s7 + $0x3e4] sm:$0xff]
  %v2847 = vld [vmem:[%s7 + $0x3ec] sm:$0xf]
  %v2848 = vld [vmem:[%s7 + $0x3f0] sm:$0xff]
  %v2849 = vld [vmem:[%s7 + $0x3f8] sm:$0xff]
  %v2850 = vld [vmem:[%s7 + $0x400] sm:$0xff]
  %v2851 = vld [vmem:[%s7 + $0x408] sm:$0xf]
  %v2852 = vld [vmem:[%s7 + $0x40c] sm:$0xff]
  %v2853 = vld [vmem:[%s7 + $0x414] sm:$0xff]
  %v2854 = vld [vmem:[%s7 + $0x41c] sm:$0xff]
  %v2855 = vld [vmem:[%s7 + $0x424] sm:$0xf]
  %v2856 = vld [vmem:[%s7 + $0x428] sm:$0xff]
  %v2857 = vld [vmem:[%s7 + $0x430] sm:$0xff]
  %v2858 = vld [vmem:[%s7 + $0x438] sm:$0xff]
  %v2859 = vld [vmem:[%s7 + $0x440] sm:$0xf]
  %v2860 = vld [vmem:[%s7 + $0x444] sm:$0xff]
  %v2861 = vld [vmem:[%s7 + $0x44c] sm:$0xff]
  %v2862 = vld [vmem:[%s7 + $0x454] sm:$0xff]
  %v2863 = vld [vmem:[%s7 + $0x45c] sm:$0xf]
  %v2864 = vld [vmem:[%s7 + $0x460] sm:$0xff]
  %v2865 = vld [vmem:[%s7 + $0x468] sm:$0xff]
  %v2866 = vld [vmem:[%s7 + $0x470] sm:$0xff]
  %v2867 = vld [vmem:[%s7 + $0x478] sm:$0xf]
  %v2868 = vld [vmem:[%s7 + $0x47c] sm:$0xff]
  %v2869 = vld [vmem:[%s7 + $0x484] sm:$0xff]
  %v2870 = vld [vmem:[%s7 + $0x48c] sm:$0xff]
  %v2871 = vld [vmem:[%s7 + $0x494] sm:$0xf]
  %v2872 = vld [vmem:[%s7 + $0x498] sm:$0xff]
  %v2873 = vld [vmem:[%s7 + $0x4a0] sm:$0xff]
  %v2874 = vld [vmem:[%s7 + $0x4a8] sm:$0xff]
  %v2875 = vld [vmem:[%s7 + $0x4b0] sm:$0xf]
  %v2876 = vld [vmem:[%s7 + $0x4b4] sm:$0xff]
  %v2877 = vld [vmem:[%s7 + $0x4bc] sm:$0xff]
  %v2878 = vld [vmem:[%s7 + $0x4c4] sm:$0xff]
  %v2879 = vld [vmem:[%s7 + $0x4cc] sm:$0xf]
  %v2880 = vld [vmem:[%s7 + $0x4d0] sm:$0xff]
  %v2881 = vld [vmem:[%s7 + $0x4d8] sm:$0xff]
  %v2882 = vld [vmem:[%s7 + $0x4e0] sm:$0xff]
  %v2883 = vld [vmem:[%s7 + $0x4e8] sm:$0xf]
  %v2884 = vld [vmem:[%s7 + $0x4ec] sm:$0xff]
  %v2885 = vld [vmem:[%s7 + $0x4f4] sm:$0xff]
  %v2886 = vld [vmem:[%s7 + $0x4fc] sm:$0xff]
  %v2887 = vld [vmem:[%s7 + $0x504] sm:$0xf]
  %v2888 = vld [vmem:[%s7 + $0x508] sm:$0xff]
  %v2889 = vld [vmem:[%s7 + $0x510] sm:$0xff]
  %v2890 = vld [vmem:[%s7 + $0x518] sm:$0xff]
  %v2891 = vld [vmem:[%s7 + $0x520] sm:$0xf]
  %v2892 = vld [vmem:[%s7 + $0x524] sm:$0xff]
  %v2893 = vld [vmem:[%s7 + $0x52c] sm:$0xff]
  %v2894 = vld [vmem:[%s7 + $0x534] sm:$0xff]
  %v2895 = vld [vmem:[%s7 + $0x53c] sm:$0xf]
  %v2896 = vld [vmem:[%s7 + $0x540] sm:$0xff]
  %v2897 = vld [vmem:[%s7 + $0x548] sm:$0xff]
  %v2898 = vld [vmem:[%s7 + $0x550] sm:$0xff]
  %v2899 = vld [vmem:[%s7 + $0x558] sm:$0xf]
  %v2900 = vld [vmem:[%s7 + $0x55c] sm:$0xff]
  %v2901 = vld [vmem:[%s7 + $0x564] sm:$0xff]
  %v2902 = vld [vmem:[%s7 + $0x56c] sm:$0xff]
  %v2903 = vld [vmem:[%s7 + $0x574] sm:$0xf]
  %v2904 = vld [vmem:[%s7 + $0x578] sm:$0xff]
  %v2905 = vld [vmem:[%s7 + $0x580] sm:$0xff]
  %v2906 = vld [vmem:[%s7 + $0x588] sm:$0xff]
  %v2907 = vld [vmem:[%s7 + $0x590] sm:$0xf]
  %v2908 = vld [vmem:[%s7 + $0x594] sm:$0xff]
  %v2909 = vld [vmem:[%s7 + $0x59c] sm:$0xff]
  %v2910 = vld [vmem:[%s7 + $0x5a4] sm:$0xff]
  %v2911 = vld [vmem:[%s7 + $0x5ac] sm:$0xf]
  %v2912 = vld [vmem:[%s7 + $0x5b0] sm:$0xff]
  %v2913 = vld [vmem:[%s7 + $0x5b8] sm:$0xff]
  %v2914 = vld [vmem:[%s7 + $0x5c0] sm:$0xff]
  %v2915 = vld [vmem:[%s7 + $0x5c8] sm:$0xf]
  %v2916 = vld [vmem:[%s7 + $0x5cc] sm:$0xff]
  %v2917 = vld [vmem:[%s7 + $0x5d4] sm:$0xff]
  %v2918 = vld [vmem:[%s7 + $0x5dc] sm:$0xff]
  %v2919 = vld [vmem:[%s7 + $0x5e4] sm:$0xf]
  %v2920 = vld [vmem:[%s7 + $0x5e8] sm:$0xff]
  %v2921 = vld [vmem:[%s7 + $0x5f0] sm:$0xff]
  %v2922 = vld [vmem:[%s7 + $0x5f8] sm:$0xff]
  %v2923 = vld [vmem:[%s7 + $0x600] sm:$0xf]
  %v2924 = vld [vmem:[%s7 + $0x604] sm:$0xff]
  %v2925 = vld [vmem:[%s7 + $0x60c] sm:$0xff]
  %v2926 = vld [vmem:[%s7 + $0x614] sm:$0xff]
  %v2927 = vld [vmem:[%s7 + $0x61c] sm:$0xf]
  %v2928 = vld [vmem:[%s7 + $0x620] sm:$0xff]
  %v2929 = vld [vmem:[%s7 + $0x628] sm:$0xff]
  %v2930 = vld [vmem:[%s7 + $0x630] sm:$0xff]
  %v2931 = vld [vmem:[%s7 + $0x638] sm:$0xf]
  %v2932 = vld [vmem:[%s7 + $0x63c] sm:$0xff]
  %v2933 = vld [vmem:[%s7 + $0x644] sm:$0xff]
  %v2934 = vld [vmem:[%s7 + $0x64c] sm:$0xff]
  %v2935 = vld [vmem:[%s7 + $0x654] sm:$0xf]
  %v2936 = vld [vmem:[%s7 + $0x658] sm:$0xff]
  %v2937 = vld [vmem:[%s7 + $0x660] sm:$0xff]
  %v2938 = vld [vmem:[%s7 + $0x668] sm:$0xff]
  %v2939 = vld [vmem:[%s7 + $0x670] sm:$0xf]
  %v2940 = vld [vmem:[%s7 + $0x674] sm:$0xff]
  %v2941 = vld [vmem:[%s7 + $0x67c] sm:$0xff]
  %v2942 = vld [vmem:[%s7 + $0x684] sm:$0xff]
  %v2943 = vld [vmem:[%s7 + $0x68c] sm:$0xf]
  %v2944 = vld [vmem:[%s7 + $0x690] sm:$0xff]
  %v2945 = vld [vmem:[%s7 + $0x698] sm:$0xff]
  %v2946 = vld [vmem:[%s7 + $0x6a0] sm:$0xff]
  %v2947 = vld [vmem:[%s7 + $0x6a8] sm:$0xf]
  %v2948 = vld [vmem:[%s7 + $0x6ac] sm:$0xff]
  %v2949 = vld [vmem:[%s7 + $0x6b4] sm:$0xff]
  %v2950 = vld [vmem:[%s7 + $0x6bc] sm:$0xff]
  %v2951 = vld [vmem:[%s7 + $0x6c4] sm:$0xf]
  %v2952 = vld [vmem:[%s7 + $0x6c8] sm:$0xff]
  %v2953 = vld [vmem:[%s7 + $0x6d0] sm:$0xff]
  %v2954 = vld [vmem:[%s7 + $0x6d8] sm:$0xff]
  %v2955 = vld [vmem:[%s7 + $0x6e0] sm:$0xf]
  %v2956 = vld [vmem:[%s7 + $0x6e4] sm:$0xff]
  %v2957 = vld [vmem:[%s7 + $0x6ec] sm:$0xff]
  %v2958 = vld [vmem:[%s7 + $0x6f4] sm:$0xff]
  %v2959 = vld [vmem:[%s7 + $0x6fc] sm:$0xf]
  %v2960 = vld [vmem:[%s7 + $0x700] sm:$0xff]
  %v2961 = vld [vmem:[%s7 + $0x708] sm:$0xff]
  %v2962 = vld [vmem:[%s7 + $0x710] sm:$0xff]
  %v2963 = vld [vmem:[%s7 + $0x718] sm:$0xf]
  %v2964 = vld [vmem:[%s7 + $0x71c] sm:$0xff]
  %v2965 = vld [vmem:[%s7 + $0x724] sm:$0xff]
  %v2966 = vld [vmem:[%s7 + $0x72c] sm:$0xff]
  %v2967 = vld [vmem:[%s7 + $0x734] sm:$0xf]
  %v2968 = vld [vmem:[%s7 + $0x738] sm:$0xff]
  %v2969 = vld [vmem:[%s7 + $0x740] sm:$0xff]
  %v2970 = vld [vmem:[%s7 + $0x748] sm:$0xff]
  %v2971 = vld [vmem:[%s7 + $0x750] sm:$0xf]
  %v2972 = vld [vmem:[%s7 + $0x754] sm:$0xff]
  %v2973 = vld [vmem:[%s7 + $0x75c] sm:$0xff]
  %v2974 = vld [vmem:[%s7 + $0x764] sm:$0xff]
  %v2975 = vld [vmem:[%s7 + $0x76c] sm:$0xf]
  %v2976 = vld [vmem:[%s7 + $0x770] sm:$0xff]
  %v2977 = vld [vmem:[%s7 + $0x778] sm:$0xff]
  %v2978 = vld [vmem:[%s7 + $0x780] sm:$0xff]
  %v2979 = vld [vmem:[%s7 + $0x788] sm:$0xf]
  %v2980 = vld [vmem:[%s7 + $0x78c] sm:$0xff]
  %v2981 = vld [vmem:[%s7 + $0x794] sm:$0xff]
  %v2982 = vld [vmem:[%s7 + $0x79c] sm:$0xff]
  %v2983 = vld [vmem:[%s7 + $0x7a4] sm:$0xf]
  %v2984 = vld [vmem:[%s7 + $0x7a8] sm:$0xff]
  %v2985 = vld [vmem:[%s7 + $0x7b0] sm:$0xff]
  %v2986 = vld [vmem:[%s7 + $0x7b8] sm:$0xff]
  %v2987 = vld [vmem:[%s7 + $0x7c0] sm:$0xf]
  %v2988 = vld [vmem:[%s7 + $0x7c4] sm:$0xff]
  %v2989 = vld [vmem:[%s7 + $0x7cc] sm:$0xff]
  %v2990 = vld [vmem:[%s7 + $0x7d4] sm:$0xff]
  %v2991 = vld [vmem:[%s7 + $0x7dc] sm:$0xf]
  %v2992 = vld [vmem:[%s7 + $0x7e0] sm:$0xff]
  %v2993 = vld [vmem:[%s7 + $0x7e8] sm:$0xff]
  %v2994 = vld [vmem:[%s7 + $0x7f0] sm:$0xff]
  %v2995 = vld [vmem:[%s7 + $0x7f8] sm:$0xf]
  %v2996 = vld [vmem:[%s7 + $0x7fc] sm:$0xff]
  %v2997 = vld [vmem:[%s7 + $0x804] sm:$0xff]
  %v2998 = vld [vmem:[%s7 + $0x80c] sm:$0xff]
  %v2999 = vld [vmem:[%s7 + $0x814] sm:$0xf]
  %v3000 = vld [vmem:[%s7 + $0x818] sm:$0xff]
  %v3001 = vld [vmem:[%s7 + $0x820] sm:$0xff]
  %v3002 = vld [vmem:[%s7 + $0x828] sm:$0xff]
  %v3003 = vld [vmem:[%s7 + $0x830] sm:$0xf]
  %v3004 = vld [vmem:[%s7 + $0x834] sm:$0xff]
  %v3005 = vld [vmem:[%s7 + $0x83c] sm:$0xff]
  %v3006 = vld [vmem:[%s7 + $0x844] sm:$0xff]
  %v3007 = vld [vmem:[%s7 + $0x84c] sm:$0xf]
  %v3008 = vld [vmem:[%s7 + $0x850] sm:$0xff]
  %v3009 = vld [vmem:[%s7 + $0x858] sm:$0xff]
  %v3010 = vld [vmem:[%s7 + $0x860] sm:$0xff]
  %v3011 = vld [vmem:[%s7 + $0x868] sm:$0xf]
  %v3012 = vld [vmem:[%s7 + $0x86c] sm:$0xff]
  %v3013 = vld [vmem:[%s7 + $0x874] sm:$0xff]
  %v3014 = vld [vmem:[%s7 + $0x87c] sm:$0xff]
  %v3015 = vld [vmem:[%s7 + $0x884] sm:$0xf]
  %v3016 = vld [vmem:[%s7 + $0x888] sm:$0xff]
  %v3017 = vld [vmem:[%s7 + $0x890] sm:$0xff]
  %v3018 = vld [vmem:[%s7 + $0x898] sm:$0xff]
  %v3019 = vld [vmem:[%s7 + $0x8a0] sm:$0xf]
  %v3020 = vld [vmem:[%s7 + $0x8a4] sm:$0xff]
  %v3021 = vld [vmem:[%s7 + $0x8ac] sm:$0xff]
  %v3022 = vld [vmem:[%s7 + $0x8b4] sm:$0xff]
  %v3023 = vld [vmem:[%s7 + $0x8bc] sm:$0xf]
  %v3024 = vld [vmem:[%s7 + $0x8c0] sm:$0xff]
  %v3025 = vld [vmem:[%s7 + $0x8c8] sm:$0xff]
  %v3026 = vld [vmem:[%s7 + $0x8d0] sm:$0xff]
  %v3027 = vld [vmem:[%s7 + $0x8d8] sm:$0xf]
  %v3028 = vld [vmem:[%s7 + $0x8dc] sm:$0xff]
  %v3029 = vld [vmem:[%s7 + $0x8e4] sm:$0xff]
  %v3030 = vld [vmem:[%s7 + $0x8ec] sm:$0xff]
  %v3031 = vld [vmem:[%s7 + $0x8f4] sm:$0xf]
  %v3032 = vld [vmem:[%s7 + $0x8f8] sm:$0xff]
  %v3033 = vld [vmem:[%s7 + $0x900] sm:$0xff]
  %v3034 = vld [vmem:[%s7 + $0x908] sm:$0xff]
  %v3035 = vld [vmem:[%s7 + $0x910] sm:$0xf]
  %v3036 = vld [vmem:[%s7 + $0x914] sm:$0xff]
  %v3037 = vld [vmem:[%s7 + $0x91c] sm:$0xff]
  %v3038 = vld [vmem:[%s7 + $0x924] sm:$0xff]
  %v3039 = vld [vmem:[%s7 + $0x92c] sm:$0xf]
  %v3040 = vld [vmem:[%s7 + $0x930] sm:$0xff]
  %v3041 = vld [vmem:[%s7 + $0x938] sm:$0xff]
  %v3042 = vld [vmem:[%s7 + $0x940] sm:$0xff]
  %v3043 = vld [vmem:[%s7 + $0x948] sm:$0xf]
  %v3044 = vld [vmem:[%s7 + $0x94c] sm:$0xff]
  %v3045 = vld [vmem:[%s7 + $0x954] sm:$0xff]
  %v3046 = vld [vmem:[%s7 + $0x95c] sm:$0xff]
  %v3047 = vld [vmem:[%s7 + $0x964] sm:$0xf]
  %v3048 = vld [vmem:[%s7 + $0x968] sm:$0xff]
  %v3049 = vld [vmem:[%s7 + $0x970] sm:$0xff]
  %v3050 = vld [vmem:[%s7 + $0x978] sm:$0xff]
  %v3051 = vld [vmem:[%s7 + $0x980] sm:$0xf]
  %v3052 = vld [vmem:[%s7 + $0x984] sm:$0xff]
  %v3053 = vld [vmem:[%s7 + $0x98c] sm:$0xff]
  %v3054 = vld [vmem:[%s7 + $0x994] sm:$0xff]
  %v3055 = vld [vmem:[%s7 + $0x99c] sm:$0xf]
  %v3056 = vld [vmem:[%s7 + $0x9a0] sm:$0xff]
  %v3057 = vld [vmem:[%s7 + $0x9a8] sm:$0xff]
  %v3058 = vld [vmem:[%s7 + $0x9b0] sm:$0xff]
  %v3059 = vld [vmem:[%s7 + $0x9b8] sm:$0xf]
  %v3060 = vld [vmem:[%s7 + $0x9bc] sm:$0xff]
  %v3061 = vld [vmem:[%s7 + $0x9c4] sm:$0xff]
  %v3062 = vld [vmem:[%s7 + $0x9cc] sm:$0xff]
  %v3063 = vld [vmem:[%s7 + $0x9d4] sm:$0xf]
  %v3064 = vld [vmem:[%s7 + $0x9d8] sm:$0xff]
  %v3065 = vld [vmem:[%s7 + $0x9e0] sm:$0xff]
  %v3066 = vld [vmem:[%s7 + $0x9e8] sm:$0xff]
  %v3067 = vld [vmem:[%s7 + $0x9f0] sm:$0xf]
  %v3068 = vld [vmem:[%s7 + $0x9f4] sm:$0xff]
  %v3069 = vld [vmem:[%s7 + $0x9fc] sm:$0xff]
  %v3070 = vld [vmem:[%s7 + $0xa04] sm:$0xff]
  %v3071 = vld [vmem:[%s7 + $0xa0c] sm:$0xf]
  %v3072 = vld [vmem:[%s7 + $0xa10] sm:$0xff]
  %v3073 = vld [vmem:[%s7 + $0xa18] sm:$0xff]
  %v3074 = vld [vmem:[%s7 + $0xa20] sm:$0xff]
  %v3075 = vld [vmem:[%s7 + $0xa28] sm:$0xf]
  %v3076 = vld [vmem:[%s7 + $0xa2c] sm:$0xff]
  %v3077 = vld [vmem:[%s7 + $0xa34] sm:$0xff]
  %v3078 = vld [vmem:[%s7 + $0xa3c] sm:$0xff]
  %v3079 = vld [vmem:[%s7 + $0xa44] sm:$0xf]
  %v3080 = vld [vmem:[%s7 + $0xa48] sm:$0xff]
  %v3081 = vld [vmem:[%s7 + $0xa50] sm:$0xff]
  %v3082 = vld [vmem:[%s7 + $0xa58] sm:$0xff]
  %v3083 = vld [vmem:[%s7 + $0xa60] sm:$0xf]
  %v3084 = vld [vmem:[%s7 + $0xa64] sm:$0xff]
  %v3085 = vld [vmem:[%s7 + $0xa6c] sm:$0xff]
  %v3086 = vld [vmem:[%s7 + $0xa74] sm:$0xff]
  %v3087 = vld [vmem:[%s7 + $0xa7c] sm:$0xf]
  %v3088 = vld [vmem:[%s7 + $0xa80] sm:$0xff]
  %v3089 = vld [vmem:[%s7 + $0xa88] sm:$0xff]
  %v3090 = vld [vmem:[%s7 + $0xa90] sm:$0xff]
  %v3091 = vld [vmem:[%s7 + $0xa98] sm:$0xf]
  %v3092 = vld [vmem:[%s7 + $0xa9c] sm:$0xff]
  %v3093 = vld [vmem:[%s7 + $0xaa4] sm:$0xff]
  %v3094 = vld [vmem:[%s7 + $0xaac] sm:$0xff]
  %v3095 = vld [vmem:[%s7 + $0xab4] sm:$0xf]
  %v3096 = vld [vmem:[%s7 + $0xab8] sm:$0xff]
  %v3097 = vld [vmem:[%s7 + $0xac0] sm:$0xff]
  %v3098 = vld [vmem:[%s7 + $0xac8] sm:$0xff]
  %v3099 = vld [vmem:[%s7 + $0xad0] sm:$0xf]
  %v3100 = vld [vmem:[%s7 + $0xad4] sm:$0xff]
  %v3101 = vld [vmem:[%s7 + $0xadc] sm:$0xff]
  %v3102 = vld [vmem:[%s7 + $0xae4] sm:$0xff]
  %v3103 = vld [vmem:[%s7 + $0xaec] sm:$0xf]
  %v3104 = vld [vmem:[%s7 + $0xaf0] sm:$0xff]
  %v3105 = vld [vmem:[%s7 + $0xaf8] sm:$0xff]
  %v3106 = vld [vmem:[%s7 + $0xb00] sm:$0xff]
  %v3107 = vld [vmem:[%s7 + $0xb08] sm:$0xf]
  %v3108 = vld [vmem:[%s7 + $0xb0c] sm:$0xff]
  %v3109 = vld [vmem:[%s7 + $0xb14] sm:$0xff]
  %v3110 = vld [vmem:[%s7 + $0xb1c] sm:$0xff]
  %v3111 = vld [vmem:[%s7 + $0xb24] sm:$0xf]
  %v3112 = vld [vmem:[%s7 + $0xb28] sm:$0xff]
  %v3113 = vld [vmem:[%s7 + $0xb30] sm:$0xff]
  %v3114 = vld [vmem:[%s7 + $0xb38] sm:$0xff]
  %v3115 = vld [vmem:[%s7 + $0xb40] sm:$0xf]
  %v3116 = vld [vmem:[%s7 + $0xb44] sm:$0xff]
  %v3117 = vld [vmem:[%s7 + $0xb4c] sm:$0xff]
  %v3118 = vld [vmem:[%s7 + $0xb54] sm:$0xff]
  %v3119 = vld [vmem:[%s7 + $0xb5c] sm:$0xf]
  %v3120 = vld [vmem:[%s7 + $0xb60] sm:$0xff]
  %v3121 = vld [vmem:[%s7 + $0xb68] sm:$0xff]
  %v3122 = vld [vmem:[%s7 + $0xb70] sm:$0xff]
  %v3123 = vld [vmem:[%s7 + $0xb78] sm:$0xf]
  %v3124 = vld [vmem:[%s7 + $0xb7c] sm:$0xff]
  %v3125 = vld [vmem:[%s7 + $0xb84] sm:$0xff]
  %v3126 = vld [vmem:[%s7 + $0xb8c] sm:$0xff]
  %v3127 = vld [vmem:[%s7 + $0xb94] sm:$0xf]
  %v3128 = vld [vmem:[%s7 + $0xb98] sm:$0xff]
  %v3129 = vld [vmem:[%s7 + $0xba0] sm:$0xff]
  %v3130 = vld [vmem:[%s7 + $0xba8] sm:$0xff]
  %v3131 = vld [vmem:[%s7 + $0xbb0] sm:$0xf]
  %v3132 = vld [vmem:[%s7 + $0xbb4] sm:$0xff]
  %v3133 = vld [vmem:[%s7 + $0xbbc] sm:$0xff]
  %v3134 = vld [vmem:[%s7 + $0xbc4] sm:$0xff]
  %v3135 = vld [vmem:[%s7 + $0xbcc] sm:$0xf]
  %v3136 = vld [vmem:[%s7 + $0xbd0] sm:$0xff]
  %v3137 = vld [vmem:[%s7 + $0xbd8] sm:$0xff]
  %v3138 = vld [vmem:[%s7 + $0xbe0] sm:$0xff]
  %v3139 = vld [vmem:[%s7 + $0xbe8] sm:$0xf]
  %v3140 = vld [vmem:[%s7 + $0xbec] sm:$0xff]
  %v3141 = vld [vmem:[%s7 + $0xbf4] sm:$0xff]
  %v3142 = vld [vmem:[%s7 + $0xbfc] sm:$0xff]
  %v3143 = vld [vmem:[%s7 + $0xc04] sm:$0xf]
  %v3144 = vld [vmem:[%s7 + $0xc08] sm:$0xff]
  %v3145 = vld [vmem:[%s7 + $0xc10] sm:$0xff]
  %v3146 = vld [vmem:[%s7 + $0xc18] sm:$0xff]
  %v3147 = vld [vmem:[%s7 + $0xc20] sm:$0xf]
  %v3148 = vld [vmem:[%s7 + $0xc24] sm:$0xff]
  %v3149 = vld [vmem:[%s7 + $0xc2c] sm:$0xff]
  %v3150 = vld [vmem:[%s7 + $0xc34] sm:$0xff]
  %v3151 = vld [vmem:[%s7 + $0xc3c] sm:$0xf]
  %v3152 = vld [vmem:[%s7 + $0xc40] sm:$0xff]
  %v3153 = vld [vmem:[%s7 + $0xc48] sm:$0xff]
  %v3154 = vld [vmem:[%s7 + $0xc50] sm:$0xff]
  %v3155 = vld [vmem:[%s7 + $0xc58] sm:$0xf]
  %v3156 = vld [vmem:[%s7 + $0xc5c] sm:$0xff]
  %v3157 = vld [vmem:[%s7 + $0xc64] sm:$0xff]
  %v3158 = vld [vmem:[%s7 + $0xc6c] sm:$0xff]
  %v3159 = vld [vmem:[%s7 + $0xc74] sm:$0xf]
  %v3160 = vld [vmem:[%s7 + $0xc78] sm:$0xff]
  %v3161 = vld [vmem:[%s7 + $0xc80] sm:$0xff]
  %v3162 = vld [vmem:[%s7 + $0xc88] sm:$0xff]
  %v3163 = vld [vmem:[%s7 + $0xc90] sm:$0xf]
  %v3164 = vld [vmem:[%s7 + $0xc94] sm:$0xff]
  %v3165 = vld [vmem:[%s7 + $0xc9c] sm:$0xff]
  %v3166 = vld [vmem:[%s7 + $0xca4] sm:$0xff]
  %v3167 = vld [vmem:[%s7 + $0xcac] sm:$0xf]
  %v3168 = vld [vmem:[%s7 + $0xcb0] sm:$0xff]
  %v3169 = vld [vmem:[%s7 + $0xcb8] sm:$0xff]
  %v3170 = vld [vmem:[%s7 + $0xcc0] sm:$0xff]
  %v3171 = vld [vmem:[%s7 + $0xcc8] sm:$0xf]
  %v3172 = vld [vmem:[%s7 + $0xccc] sm:$0xff]
  %v3173 = vld [vmem:[%s7 + $0xcd4] sm:$0xff]
  %v3174 = vld [vmem:[%s7 + $0xcdc] sm:$0xff]
  %v3175 = vld [vmem:[%s7 + $0xce4] sm:$0xf]
  %v3176 = vld [vmem:[%s7 + $0xce8] sm:$0xff]
  %v3177 = vld [vmem:[%s7 + $0xcf0] sm:$0xff]
  %v3178 = vld [vmem:[%s7 + $0xcf8] sm:$0xff]
  %v3179 = vld [vmem:[%s7 + $0xd00] sm:$0xf]
  %v3180 = vld [vmem:[%s7 + $0xd04] sm:$0xff]
  %v3181 = vld [vmem:[%s7 + $0xd0c] sm:$0xff]
  %v3182 = vld [vmem:[%s7 + $0xd14] sm:$0xff]
  %v3183 = vld [vmem:[%s7 + $0xd1c] sm:$0xf]
  %v3184 = vld [vmem:[%s7 + $0xd20] sm:$0xff]
  %v3185 = vld [vmem:[%s7 + $0xd28] sm:$0xff]
  %v3186 = vld [vmem:[%s7 + $0xd30] sm:$0xff]
  %v3187 = vld [vmem:[%s7 + $0xd38] sm:$0xf]
  %v3188 = vld [vmem:[%s7 + $0xd3c] sm:$0xff]
  %v3189 = vld [vmem:[%s7 + $0xd44] sm:$0xff]
  %v3190 = vld [vmem:[%s7 + $0xd4c] sm:$0xff]
  %v3191 = vld [vmem:[%s7 + $0xd54] sm:$0xf]
  %v3192 = vld [vmem:[%s7 + $0xd58] sm:$0xff]
  %v3193 = vld [vmem:[%s7 + $0xd60] sm:$0xff]
  %v3194 = vld [vmem:[%s7 + $0xd68] sm:$0xff]
  %v3195 = vld [vmem:[%s7 + $0xd70] sm:$0xf]
  %v3196 = vld [vmem:[%s7 + $0xd74] sm:$0xff]
  %v3197 = vld [vmem:[%s7 + $0xd7c] sm:$0xff]
  %v3198 = vld [vmem:[%s7 + $0xd84] sm:$0xff]
  %v3199 = vld [vmem:[%s7 + $0xd8c] sm:$0xf]
  %v3200 = vld [vmem:[%s7 + $0xd90] sm:$0xff]
  %v3201 = vld [vmem:[%s7 + $0xd98] sm:$0xff]
  %v3202 = vld [vmem:[%s7 + $0xda0] sm:$0xff]
  %v3203 = vld [vmem:[%s7 + $0xda8] sm:$0xf]
  %v3204 = vld [vmem:[%s7 + $0xdac] sm:$0xff]
  %v3205 = vld [vmem:[%s7 + $0xdb4] sm:$0xff]
  %v3206 = vld [vmem:[%s7 + $0xdbc] sm:$0xff]
  %v3207 = vld [vmem:[%s7 + $0xdc4] sm:$0xf]
  %v3208 = vld [vmem:[%s7 + $0xdc8] sm:$0xff]
  %v3209 = vld [vmem:[%s7 + $0xdd0] sm:$0xff]
  %v3210 = vld [vmem:[%s7 + $0xdd8] sm:$0xff]
  %v3211 = vld [vmem:[%s7 + $0xde0] sm:$0xf]
  %v3212 = vld [vmem:[%s7 + $0xde4] sm:$0xff]
  %v3213 = vld [vmem:[%s7 + $0xdec] sm:$0xff]
  %v3214 = vld [vmem:[%s7 + $0xdf4] sm:$0xff]
  %v3215 = vld [vmem:[%s7 + $0xdfc] sm:$0xf]
  %v3216 = vld [vmem:[%s8] sm:$0x7f]
  %v3218 = vlaneseq
  %v3219 = vshrl.u32 %v3218, 7
  %v3220 = vsub.s32 0, %v3219
  %v3221 = vrot.slane %v3216, %v3220
  %v3222 = vlaneseq
  %v3223 = vshrl.u32 %v3222, 7
  %v3224 = vsub.s32 1, %v3223
  %v3225 = vrot.slane %v3216, %v3224
  %v3226 = vlaneseq
  %v3227 = vshrl.u32 %v3226, 7
  %v3228 = vsub.s32 2, %v3227
  %v3229 = vrot.slane %v3216, %v3228
  %v3230 = vlaneseq
  %v3231 = vshrl.u32 %v3230, 7
  %v3232 = vsub.s32 3, %v3231
  %v3233 = vrot.slane %v3216, %v3232
  %v3234 = vlaneseq
  %v3235 = vshrl.u32 %v3234, 7
  %v3236 = vsub.s32 4, %v3235
  %v3237 = vrot.slane %v3216, %v3236
  %v3238 = vlaneseq
  %v3239 = vshrl.u32 %v3238, 7
  %v3240 = vsub.s32 5, %v3239
  %v3241 = vrot.slane %v3216, %v3240
  %v3242 = vlaneseq
  %v3243 = vshrl.u32 %v3242, 7
  %v3244 = vsub.s32 6, %v3243
  %v3245 = vrot.slane %v3216, %v3244
  %v3765 = vunpack.c.l.b16 %v2704
  %v3766 = vunpack.c.h.b16 %v2704
  %v3767 = vunpack.c.l.b16 %v2705
  %v3768 = vunpack.c.h.b16 %v2705
  %v3769 = vunpack.c.l.b16 %v2706
  %v3770 = vunpack.c.h.b16 %v2706
  %v3771 = vunpack.c.l.b16 %v2707
  %v3772 = vunpack.c.l.b16 %v2708
  %v3773 = vunpack.c.h.b16 %v2708
  %v3774 = vunpack.c.l.b16 %v2709
  %v3775 = vunpack.c.h.b16 %v2709
  %v3776 = vunpack.c.l.b16 %v2710
  %v3777 = vunpack.c.h.b16 %v2710
  %v3778 = vunpack.c.l.b16 %v2711
  %v3779 = vunpack.c.l.b16 %v2712
  %v3780 = vunpack.c.h.b16 %v2712
  %v3781 = vunpack.c.l.b16 %v2713
  %v3782 = vunpack.c.h.b16 %v2713
  %v3783 = vunpack.c.l.b16 %v2714
  %v3784 = vunpack.c.h.b16 %v2714
  %v3785 = vunpack.c.l.b16 %v2715
  %v3786 = vunpack.c.l.b16 %v2716
  %v3787 = vunpack.c.h.b16 %v2716
  %v3788 = vunpack.c.l.b16 %v2717
  %v3789 = vunpack.c.h.b16 %v2717
  %v3790 = vunpack.c.l.b16 %v2718
  %v3791 = vunpack.c.h.b16 %v2718
  %v3792 = vunpack.c.l.b16 %v2719
  %v3793 = vunpack.c.l.b16 %v2720
  %v3794 = vunpack.c.h.b16 %v2720
  %v3795 = vunpack.c.l.b16 %v2721
  %v3796 = vunpack.c.h.b16 %v2721
  %v3797 = vunpack.c.l.b16 %v2722
  %v3798 = vunpack.c.h.b16 %v2722
  %v3799 = vunpack.c.l.b16 %v2723
  %v3800 = vunpack.c.l.b16 %v2724
  %v3801 = vunpack.c.h.b16 %v2724
  %v3802 = vunpack.c.l.b16 %v2725
  %v3803 = vunpack.c.h.b16 %v2725
  %v3804 = vunpack.c.l.b16 %v2726
  %v3805 = vunpack.c.h.b16 %v2726
  %v3806 = vunpack.c.l.b16 %v2727
  %v3807 = vunpack.c.l.b16 %v2728
  %v3808 = vunpack.c.h.b16 %v2728
  %v3809 = vunpack.c.l.b16 %v2729
  %v3810 = vunpack.c.h.b16 %v2729
  %v3811 = vunpack.c.l.b16 %v2730
  %v3812 = vunpack.c.h.b16 %v2730
  %v3813 = vunpack.c.l.b16 %v2731
  %v3814 = vunpack.c.l.b16 %v2732
  %v3815 = vunpack.c.h.b16 %v2732
  %v3816 = vunpack.c.l.b16 %v2733
  %v3817 = vunpack.c.h.b16 %v2733
  %v3818 = vunpack.c.l.b16 %v2734
  %v3819 = vunpack.c.h.b16 %v2734
  %v3820 = vunpack.c.l.b16 %v2735
  %v3821 = vunpack.c.l.b16 %v2736
  %v3822 = vunpack.c.h.b16 %v2736
  %v3823 = vunpack.c.l.b16 %v2737
  %v3824 = vunpack.c.h.b16 %v2737
  %v3825 = vunpack.c.l.b16 %v2738
  %v3826 = vunpack.c.h.b16 %v2738
  %v3827 = vunpack.c.l.b16 %v2739
  %v3828 = vunpack.c.l.b16 %v2740
  %v3829 = vunpack.c.h.b16 %v2740
  %v3830 = vunpack.c.l.b16 %v2741
  %v3831 = vunpack.c.h.b16 %v2741
  %v3832 = vunpack.c.l.b16 %v2742
  %v3833 = vunpack.c.h.b16 %v2742
  %v3834 = vunpack.c.l.b16 %v2743
  %v3835 = vunpack.c.l.b16 %v2744
  %v3836 = vunpack.c.h.b16 %v2744
  %v3837 = vunpack.c.l.b16 %v2745
  %v3838 = vunpack.c.h.b16 %v2745
  %v3839 = vunpack.c.l.b16 %v2746
  %v3840 = vunpack.c.h.b16 %v2746
  %v3841 = vunpack.c.l.b16 %v2747
  %v3842 = vunpack.c.l.b16 %v2748
  %v3843 = vunpack.c.h.b16 %v2748
  %v3844 = vunpack.c.l.b16 %v2749
  %v3845 = vunpack.c.h.b16 %v2749
  %v3846 = vunpack.c.l.b16 %v2750
  %v3847 = vunpack.c.h.b16 %v2750
  %v3848 = vunpack.c.l.b16 %v2751
  %v3849 = vunpack.c.l.b16 %v2752
  %v3850 = vunpack.c.h.b16 %v2752
  %v3851 = vunpack.c.l.b16 %v2753
  %v3852 = vunpack.c.h.b16 %v2753
  %v3853 = vunpack.c.l.b16 %v2754
  %v3854 = vunpack.c.h.b16 %v2754
  %v3855 = vunpack.c.l.b16 %v2755
  %v3856 = vunpack.c.l.b16 %v2756
  %v3857 = vunpack.c.h.b16 %v2756
  %v3858 = vunpack.c.l.b16 %v2757
  %v3859 = vunpack.c.h.b16 %v2757
  %v3860 = vunpack.c.l.b16 %v2758
  %v3861 = vunpack.c.h.b16 %v2758
  %v3862 = vunpack.c.l.b16 %v2759
  %v3863 = vunpack.c.l.b16 %v2760
  %v3864 = vunpack.c.h.b16 %v2760
  %v3865 = vunpack.c.l.b16 %v2761
  %v3866 = vunpack.c.h.b16 %v2761
  %v3867 = vunpack.c.l.b16 %v2762
  %v3868 = vunpack.c.h.b16 %v2762
  %v3869 = vunpack.c.l.b16 %v2763
  %v3870 = vunpack.c.l.b16 %v2764
  %v3871 = vunpack.c.h.b16 %v2764
  %v3872 = vunpack.c.l.b16 %v2765
  %v3873 = vunpack.c.h.b16 %v2765
  %v3874 = vunpack.c.l.b16 %v2766
  %v3875 = vunpack.c.h.b16 %v2766
  %v3876 = vunpack.c.l.b16 %v2767
  %v3877 = vunpack.c.l.b16 %v2768
  %v3878 = vunpack.c.h.b16 %v2768
  %v3879 = vunpack.c.l.b16 %v2769
  %v3880 = vunpack.c.h.b16 %v2769
  %v3881 = vunpack.c.l.b16 %v2770
  %v3882 = vunpack.c.h.b16 %v2770
  %v3883 = vunpack.c.l.b16 %v2771
  %v3884 = vunpack.c.l.b16 %v2772
  %v3885 = vunpack.c.h.b16 %v2772
  %v3886 = vunpack.c.l.b16 %v2773
  %v3887 = vunpack.c.h.b16 %v2773
  %v3888 = vunpack.c.l.b16 %v2774
  %v3889 = vunpack.c.h.b16 %v2774
  %v3890 = vunpack.c.l.b16 %v2775
  %v3891 = vunpack.c.l.b16 %v2776
  %v3892 = vunpack.c.h.b16 %v2776
  %v3893 = vunpack.c.l.b16 %v2777
  %v3894 = vunpack.c.h.b16 %v2777
  %v3895 = vunpack.c.l.b16 %v2778
  %v3896 = vunpack.c.h.b16 %v2778
  %v3897 = vunpack.c.l.b16 %v2779
  %v3898 = vunpack.c.l.b16 %v2780
  %v3899 = vunpack.c.h.b16 %v2780
  %v3900 = vunpack.c.l.b16 %v2781
  %v3901 = vunpack.c.h.b16 %v2781
  %v3902 = vunpack.c.l.b16 %v2782
  %v3903 = vunpack.c.h.b16 %v2782
  %v3904 = vunpack.c.l.b16 %v2783
  %v3905 = vunpack.c.l.b16 %v2784
  %v3906 = vunpack.c.h.b16 %v2784
  %v3907 = vunpack.c.l.b16 %v2785
  %v3908 = vunpack.c.h.b16 %v2785
  %v3909 = vunpack.c.l.b16 %v2786
  %v3910 = vunpack.c.h.b16 %v2786
  %v3911 = vunpack.c.l.b16 %v2787
  %v3912 = vunpack.c.l.b16 %v2788
  %v3913 = vunpack.c.h.b16 %v2788
  %v3914 = vunpack.c.l.b16 %v2789
  %v3915 = vunpack.c.h.b16 %v2789
  %v3916 = vunpack.c.l.b16 %v2790
  %v3917 = vunpack.c.h.b16 %v2790
  %v3918 = vunpack.c.l.b16 %v2791
  %v3919 = vunpack.c.l.b16 %v2792
  %v3920 = vunpack.c.h.b16 %v2792
  %v3921 = vunpack.c.l.b16 %v2793
  %v3922 = vunpack.c.h.b16 %v2793
  %v3923 = vunpack.c.l.b16 %v2794
  %v3924 = vunpack.c.h.b16 %v2794
  %v3925 = vunpack.c.l.b16 %v2795
  %v3926 = vunpack.c.l.b16 %v2796
  %v3927 = vunpack.c.h.b16 %v2796
  %v3928 = vunpack.c.l.b16 %v2797
  %v3929 = vunpack.c.h.b16 %v2797
  %v3930 = vunpack.c.l.b16 %v2798
  %v3931 = vunpack.c.h.b16 %v2798
  %v3932 = vunpack.c.l.b16 %v2799
  %v3933 = vunpack.c.l.b16 %v2800
  %v3934 = vunpack.c.h.b16 %v2800
  %v3935 = vunpack.c.l.b16 %v2801
  %v3936 = vunpack.c.h.b16 %v2801
  %v3937 = vunpack.c.l.b16 %v2802
  %v3938 = vunpack.c.h.b16 %v2802
  %v3939 = vunpack.c.l.b16 %v2803
  %v3940 = vunpack.c.l.b16 %v2804
  %v3941 = vunpack.c.h.b16 %v2804
  %v3942 = vunpack.c.l.b16 %v2805
  %v3943 = vunpack.c.h.b16 %v2805
  %v3944 = vunpack.c.l.b16 %v2806
  %v3945 = vunpack.c.h.b16 %v2806
  %v3946 = vunpack.c.l.b16 %v2807
  %v3947 = vunpack.c.l.b16 %v2808
  %v3948 = vunpack.c.h.b16 %v2808
  %v3949 = vunpack.c.l.b16 %v2809
  %v3950 = vunpack.c.h.b16 %v2809
  %v3951 = vunpack.c.l.b16 %v2810
  %v3952 = vunpack.c.h.b16 %v2810
  %v3953 = vunpack.c.l.b16 %v2811
  %v3954 = vunpack.c.l.b16 %v2812
  %v3955 = vunpack.c.h.b16 %v2812
  %v3956 = vunpack.c.l.b16 %v2813
  %v3957 = vunpack.c.h.b16 %v2813
  %v3958 = vunpack.c.l.b16 %v2814
  %v3959 = vunpack.c.h.b16 %v2814
  %v3960 = vunpack.c.l.b16 %v2815
  %v3961 = vunpack.c.l.b16 %v2816
  %v3962 = vunpack.c.h.b16 %v2816
  %v3963 = vunpack.c.l.b16 %v2817
  %v3964 = vunpack.c.h.b16 %v2817
  %v3965 = vunpack.c.l.b16 %v2818
  %v3966 = vunpack.c.h.b16 %v2818
  %v3967 = vunpack.c.l.b16 %v2819
  %v3968 = vunpack.c.l.b16 %v2820
  %v3969 = vunpack.c.h.b16 %v2820
  %v3970 = vunpack.c.l.b16 %v2821
  %v3971 = vunpack.c.h.b16 %v2821
  %v3972 = vunpack.c.l.b16 %v2822
  %v3973 = vunpack.c.h.b16 %v2822
  %v3974 = vunpack.c.l.b16 %v2823
  %v3975 = vunpack.c.l.b16 %v2824
  %v3976 = vunpack.c.h.b16 %v2824
  %v3977 = vunpack.c.l.b16 %v2825
  %v3978 = vunpack.c.h.b16 %v2825
  %v3979 = vunpack.c.l.b16 %v2826
  %v3980 = vunpack.c.h.b16 %v2826
  %v3981 = vunpack.c.l.b16 %v2827
  %v3982 = vunpack.c.l.b16 %v2828
  %v3983 = vunpack.c.h.b16 %v2828
  %v3984 = vunpack.c.l.b16 %v2829
  %v3985 = vunpack.c.h.b16 %v2829
  %v3986 = vunpack.c.l.b16 %v2830
  %v3987 = vunpack.c.h.b16 %v2830
  %v3988 = vunpack.c.l.b16 %v2831
  %v3989 = vunpack.c.l.b16 %v2832
  %v3990 = vunpack.c.h.b16 %v2832
  %v3991 = vunpack.c.l.b16 %v2833
  %v3992 = vunpack.c.h.b16 %v2833
  %v3993 = vunpack.c.l.b16 %v2834
  %v3994 = vunpack.c.h.b16 %v2834
  %v3995 = vunpack.c.l.b16 %v2835
  %v3996 = vunpack.c.l.b16 %v2836
  %v3997 = vunpack.c.h.b16 %v2836
  %v3998 = vunpack.c.l.b16 %v2837
  %v3999 = vunpack.c.h.b16 %v2837
  %v4000 = vunpack.c.l.b16 %v2838
  %v4001 = vunpack.c.h.b16 %v2838
  %v4002 = vunpack.c.l.b16 %v2839
  %v4003 = vunpack.c.l.b16 %v2840
  %v4004 = vunpack.c.h.b16 %v2840
  %v4005 = vunpack.c.l.b16 %v2841
  %v4006 = vunpack.c.h.b16 %v2841
  %v4007 = vunpack.c.l.b16 %v2842
  %v4008 = vunpack.c.h.b16 %v2842
  %v4009 = vunpack.c.l.b16 %v2843
  %v4010 = vunpack.c.l.b16 %v2844
  %v4011 = vunpack.c.h.b16 %v2844
  %v4012 = vunpack.c.l.b16 %v2845
  %v4013 = vunpack.c.h.b16 %v2845
  %v4014 = vunpack.c.l.b16 %v2846
  %v4015 = vunpack.c.h.b16 %v2846
  %v4016 = vunpack.c.l.b16 %v2847
  %v4017 = vunpack.c.l.b16 %v2848
  %v4018 = vunpack.c.h.b16 %v2848
  %v4019 = vunpack.c.l.b16 %v2849
  %v4020 = vunpack.c.h.b16 %v2849
  %v4021 = vunpack.c.l.b16 %v2850
  %v4022 = vunpack.c.h.b16 %v2850
  %v4023 = vunpack.c.l.b16 %v2851
  %v4024 = vunpack.c.l.b16 %v2852
  %v4025 = vunpack.c.h.b16 %v2852
  %v4026 = vunpack.c.l.b16 %v2853
  %v4027 = vunpack.c.h.b16 %v2853
  %v4028 = vunpack.c.l.b16 %v2854
  %v4029 = vunpack.c.h.b16 %v2854
  %v4030 = vunpack.c.l.b16 %v2855
  %v4031 = vunpack.c.l.b16 %v2856
  %v4032 = vunpack.c.h.b16 %v2856
  %v4033 = vunpack.c.l.b16 %v2857
  %v4034 = vunpack.c.h.b16 %v2857
  %v4035 = vunpack.c.l.b16 %v2858
  %v4036 = vunpack.c.h.b16 %v2858
  %v4037 = vunpack.c.l.b16 %v2859
  %v4038 = vunpack.c.l.b16 %v2860
  %v4039 = vunpack.c.h.b16 %v2860
  %v4040 = vunpack.c.l.b16 %v2861
  %v4041 = vunpack.c.h.b16 %v2861
  %v4042 = vunpack.c.l.b16 %v2862
  %v4043 = vunpack.c.h.b16 %v2862
  %v4044 = vunpack.c.l.b16 %v2863
  %v4045 = vunpack.c.l.b16 %v2864
  %v4046 = vunpack.c.h.b16 %v2864
  %v4047 = vunpack.c.l.b16 %v2865
  %v4048 = vunpack.c.h.b16 %v2865
  %v4049 = vunpack.c.l.b16 %v2866
  %v4050 = vunpack.c.h.b16 %v2866
  %v4051 = vunpack.c.l.b16 %v2867
  %v4052 = vunpack.c.l.b16 %v2868
  %v4053 = vunpack.c.h.b16 %v2868
  %v4054 = vunpack.c.l.b16 %v2869
  %v4055 = vunpack.c.h.b16 %v2869
  %v4056 = vunpack.c.l.b16 %v2870
  %v4057 = vunpack.c.h.b16 %v2870
  %v4058 = vunpack.c.l.b16 %v2871
  %v4059 = vunpack.c.l.b16 %v2872
  %v4060 = vunpack.c.h.b16 %v2872
  %v4061 = vunpack.c.l.b16 %v2873
  %v4062 = vunpack.c.h.b16 %v2873
  %v4063 = vunpack.c.l.b16 %v2874
  %v4064 = vunpack.c.h.b16 %v2874
  %v4065 = vunpack.c.l.b16 %v2875
  %v4066 = vunpack.c.l.b16 %v2876
  %v4067 = vunpack.c.h.b16 %v2876
  %v4068 = vunpack.c.l.b16 %v2877
  %v4069 = vunpack.c.h.b16 %v2877
  %v4070 = vunpack.c.l.b16 %v2878
  %v4071 = vunpack.c.h.b16 %v2878
  %v4072 = vunpack.c.l.b16 %v2879
  %v4073 = vunpack.c.l.b16 %v2880
  %v4074 = vunpack.c.h.b16 %v2880
  %v4075 = vunpack.c.l.b16 %v2881
  %v4076 = vunpack.c.h.b16 %v2881
  %v4077 = vunpack.c.l.b16 %v2882
  %v4078 = vunpack.c.h.b16 %v2882
  %v4079 = vunpack.c.l.b16 %v2883
  %v4080 = vunpack.c.l.b16 %v2884
  %v4081 = vunpack.c.h.b16 %v2884
  %v4082 = vunpack.c.l.b16 %v2885
  %v4083 = vunpack.c.h.b16 %v2885
  %v4084 = vunpack.c.l.b16 %v2886
  %v4085 = vunpack.c.h.b16 %v2886
  %v4086 = vunpack.c.l.b16 %v2887
  %v4087 = vunpack.c.l.b16 %v2888
  %v4088 = vunpack.c.h.b16 %v2888
  %v4089 = vunpack.c.l.b16 %v2889
  %v4090 = vunpack.c.h.b16 %v2889
  %v4091 = vunpack.c.l.b16 %v2890
  %v4092 = vunpack.c.h.b16 %v2890
  %v4093 = vunpack.c.l.b16 %v2891
  %v4094 = vunpack.c.l.b16 %v2892
  %v4095 = vunpack.c.h.b16 %v2892
  %v4096 = vunpack.c.l.b16 %v2893
  %v4097 = vunpack.c.h.b16 %v2893
  %v4098 = vunpack.c.l.b16 %v2894
  %v4099 = vunpack.c.h.b16 %v2894
  %v4100 = vunpack.c.l.b16 %v2895
  %v4101 = vunpack.c.l.b16 %v2896
  %v4102 = vunpack.c.h.b16 %v2896
  %v4103 = vunpack.c.l.b16 %v2897
  %v4104 = vunpack.c.h.b16 %v2897
  %v4105 = vunpack.c.l.b16 %v2898
  %v4106 = vunpack.c.h.b16 %v2898
  %v4107 = vunpack.c.l.b16 %v2899
  %v4108 = vunpack.c.l.b16 %v2900
  %v4109 = vunpack.c.h.b16 %v2900
  %v4110 = vunpack.c.l.b16 %v2901
  %v4111 = vunpack.c.h.b16 %v2901
  %v4112 = vunpack.c.l.b16 %v2902
  %v4113 = vunpack.c.h.b16 %v2902
  %v4114 = vunpack.c.l.b16 %v2903
  %v4115 = vunpack.c.l.b16 %v2904
  %v4116 = vunpack.c.h.b16 %v2904
  %v4117 = vunpack.c.l.b16 %v2905
  %v4118 = vunpack.c.h.b16 %v2905
  %v4119 = vunpack.c.l.b16 %v2906
  %v4120 = vunpack.c.h.b16 %v2906
  %v4121 = vunpack.c.l.b16 %v2907
  %v4122 = vunpack.c.l.b16 %v2908
  %v4123 = vunpack.c.h.b16 %v2908
  %v4124 = vunpack.c.l.b16 %v2909
  %v4125 = vunpack.c.h.b16 %v2909
  %v4126 = vunpack.c.l.b16 %v2910
  %v4127 = vunpack.c.h.b16 %v2910
  %v4128 = vunpack.c.l.b16 %v2911
  %v4129 = vunpack.c.l.b16 %v2912
  %v4130 = vunpack.c.h.b16 %v2912
  %v4131 = vunpack.c.l.b16 %v2913
  %v4132 = vunpack.c.h.b16 %v2913
  %v4133 = vunpack.c.l.b16 %v2914
  %v4134 = vunpack.c.h.b16 %v2914
  %v4135 = vunpack.c.l.b16 %v2915
  %v4136 = vunpack.c.l.b16 %v2916
  %v4137 = vunpack.c.h.b16 %v2916
  %v4138 = vunpack.c.l.b16 %v2917
  %v4139 = vunpack.c.h.b16 %v2917
  %v4140 = vunpack.c.l.b16 %v2918
  %v4141 = vunpack.c.h.b16 %v2918
  %v4142 = vunpack.c.l.b16 %v2919
  %v4143 = vunpack.c.l.b16 %v2920
  %v4144 = vunpack.c.h.b16 %v2920
  %v4145 = vunpack.c.l.b16 %v2921
  %v4146 = vunpack.c.h.b16 %v2921
  %v4147 = vunpack.c.l.b16 %v2922
  %v4148 = vunpack.c.h.b16 %v2922
  %v4149 = vunpack.c.l.b16 %v2923
  %v4150 = vunpack.c.l.b16 %v2924
  %v4151 = vunpack.c.h.b16 %v2924
  %v4152 = vunpack.c.l.b16 %v2925
  %v4153 = vunpack.c.h.b16 %v2925
  %v4154 = vunpack.c.l.b16 %v2926
  %v4155 = vunpack.c.h.b16 %v2926
  %v4156 = vunpack.c.l.b16 %v2927
  %v4157 = vunpack.c.l.b16 %v2928
  %v4158 = vunpack.c.h.b16 %v2928
  %v4159 = vunpack.c.l.b16 %v2929
  %v4160 = vunpack.c.h.b16 %v2929
  %v4161 = vunpack.c.l.b16 %v2930
  %v4162 = vunpack.c.h.b16 %v2930
  %v4163 = vunpack.c.l.b16 %v2931
  %v4164 = vunpack.c.l.b16 %v2932
  %v4165 = vunpack.c.h.b16 %v2932
  %v4166 = vunpack.c.l.b16 %v2933
  %v4167 = vunpack.c.h.b16 %v2933
  %v4168 = vunpack.c.l.b16 %v2934
  %v4169 = vunpack.c.h.b16 %v2934
  %v4170 = vunpack.c.l.b16 %v2935
  %v4171 = vunpack.c.l.b16 %v2936
  %v4172 = vunpack.c.h.b16 %v2936
  %v4173 = vunpack.c.l.b16 %v2937
  %v4174 = vunpack.c.h.b16 %v2937
  %v4175 = vunpack.c.l.b16 %v2938
  %v4176 = vunpack.c.h.b16 %v2938
  %v4177 = vunpack.c.l.b16 %v2939
  %v4178 = vunpack.c.l.b16 %v2940
  %v4179 = vunpack.c.h.b16 %v2940
  %v4180 = vunpack.c.l.b16 %v2941
  %v4181 = vunpack.c.h.b16 %v2941
  %v4182 = vunpack.c.l.b16 %v2942
  %v4183 = vunpack.c.h.b16 %v2942
  %v4184 = vunpack.c.l.b16 %v2943
  %v4185 = vunpack.c.l.b16 %v2944
  %v4186 = vunpack.c.h.b16 %v2944
  %v4187 = vunpack.c.l.b16 %v2945
  %v4188 = vunpack.c.h.b16 %v2945
  %v4189 = vunpack.c.l.b16 %v2946
  %v4190 = vunpack.c.h.b16 %v2946
  %v4191 = vunpack.c.l.b16 %v2947
  %v4192 = vunpack.c.l.b16 %v2948
  %v4193 = vunpack.c.h.b16 %v2948
  %v4194 = vunpack.c.l.b16 %v2949
  %v4195 = vunpack.c.h.b16 %v2949
  %v4196 = vunpack.c.l.b16 %v2950
  %v4197 = vunpack.c.h.b16 %v2950
  %v4198 = vunpack.c.l.b16 %v2951
  %v4199 = vunpack.c.l.b16 %v2952
  %v4200 = vunpack.c.h.b16 %v2952
  %v4201 = vunpack.c.l.b16 %v2953
  %v4202 = vunpack.c.h.b16 %v2953
  %v4203 = vunpack.c.l.b16 %v2954
  %v4204 = vunpack.c.h.b16 %v2954
  %v4205 = vunpack.c.l.b16 %v2955
  %v4206 = vunpack.c.l.b16 %v2956
  %v4207 = vunpack.c.h.b16 %v2956
  %v4208 = vunpack.c.l.b16 %v2957
  %v4209 = vunpack.c.h.b16 %v2957
  %v4210 = vunpack.c.l.b16 %v2958
  %v4211 = vunpack.c.h.b16 %v2958
  %v4212 = vunpack.c.l.b16 %v2959
  %v4213 = vunpack.c.l.b16 %v2960
  %v4214 = vunpack.c.h.b16 %v2960
  %v4215 = vunpack.c.l.b16 %v2961
  %v4216 = vunpack.c.h.b16 %v2961
  %v4217 = vunpack.c.l.b16 %v2962
  %v4218 = vunpack.c.h.b16 %v2962
  %v4219 = vunpack.c.l.b16 %v2963
  %v4220 = vunpack.c.l.b16 %v2964
  %v4221 = vunpack.c.h.b16 %v2964
  %v4222 = vunpack.c.l.b16 %v2965
  %v4223 = vunpack.c.h.b16 %v2965
  %v4224 = vunpack.c.l.b16 %v2966
  %v4225 = vunpack.c.h.b16 %v2966
  %v4226 = vunpack.c.l.b16 %v2967
  %v4227 = vunpack.c.l.b16 %v2968
  %v4228 = vunpack.c.h.b16 %v2968
  %v4229 = vunpack.c.l.b16 %v2969
  %v4230 = vunpack.c.h.b16 %v2969
  %v4231 = vunpack.c.l.b16 %v2970
  %v4232 = vunpack.c.h.b16 %v2970
  %v4233 = vunpack.c.l.b16 %v2971
  %v4234 = vunpack.c.l.b16 %v2972
  %v4235 = vunpack.c.h.b16 %v2972
  %v4236 = vunpack.c.l.b16 %v2973
  %v4237 = vunpack.c.h.b16 %v2973
  %v4238 = vunpack.c.l.b16 %v2974
  %v4239 = vunpack.c.h.b16 %v2974
  %v4240 = vunpack.c.l.b16 %v2975
  %v4241 = vunpack.c.l.b16 %v2976
  %v4242 = vunpack.c.h.b16 %v2976
  %v4243 = vunpack.c.l.b16 %v2977
  %v4244 = vunpack.c.h.b16 %v2977
  %v4245 = vunpack.c.l.b16 %v2978
  %v4246 = vunpack.c.h.b16 %v2978
  %v4247 = vunpack.c.l.b16 %v2979
  %v4248 = vunpack.c.l.b16 %v2980
  %v4249 = vunpack.c.h.b16 %v2980
  %v4250 = vunpack.c.l.b16 %v2981
  %v4251 = vunpack.c.h.b16 %v2981
  %v4252 = vunpack.c.l.b16 %v2982
  %v4253 = vunpack.c.h.b16 %v2982
  %v4254 = vunpack.c.l.b16 %v2983
  %v4255 = vunpack.c.l.b16 %v2984
  %v4256 = vunpack.c.h.b16 %v2984
  %v4257 = vunpack.c.l.b16 %v2985
  %v4258 = vunpack.c.h.b16 %v2985
  %v4259 = vunpack.c.l.b16 %v2986
  %v4260 = vunpack.c.h.b16 %v2986
  %v4261 = vunpack.c.l.b16 %v2987
  %v4262 = vunpack.c.l.b16 %v2988
  %v4263 = vunpack.c.h.b16 %v2988
  %v4264 = vunpack.c.l.b16 %v2989
  %v4265 = vunpack.c.h.b16 %v2989
  %v4266 = vunpack.c.l.b16 %v2990
  %v4267 = vunpack.c.h.b16 %v2990
  %v4268 = vunpack.c.l.b16 %v2991
  %v4269 = vunpack.c.l.b16 %v2992
  %v4270 = vunpack.c.h.b16 %v2992
  %v4271 = vunpack.c.l.b16 %v2993
  %v4272 = vunpack.c.h.b16 %v2993
  %v4273 = vunpack.c.l.b16 %v2994
  %v4274 = vunpack.c.h.b16 %v2994
  %v4275 = vunpack.c.l.b16 %v2995
  %v4276 = vunpack.c.l.b16 %v2996
  %v4277 = vunpack.c.h.b16 %v2996
  %v4278 = vunpack.c.l.b16 %v2997
  %v4279 = vunpack.c.h.b16 %v2997
  %v4280 = vunpack.c.l.b16 %v2998
  %v4281 = vunpack.c.h.b16 %v2998
  %v4282 = vunpack.c.l.b16 %v2999
  %v4283 = vunpack.c.l.b16 %v3000
  %v4284 = vunpack.c.h.b16 %v3000
  %v4285 = vunpack.c.l.b16 %v3001
  %v4286 = vunpack.c.h.b16 %v3001
  %v4287 = vunpack.c.l.b16 %v3002
  %v4288 = vunpack.c.h.b16 %v3002
  %v4289 = vunpack.c.l.b16 %v3003
  %v4290 = vunpack.c.l.b16 %v3004
  %v4291 = vunpack.c.h.b16 %v3004
  %v4292 = vunpack.c.l.b16 %v3005
  %v4293 = vunpack.c.h.b16 %v3005
  %v4294 = vunpack.c.l.b16 %v3006
  %v4295 = vunpack.c.h.b16 %v3006
  %v4296 = vunpack.c.l.b16 %v3007
  %v4297 = vunpack.c.l.b16 %v3008
  %v4298 = vunpack.c.h.b16 %v3008
  %v4299 = vunpack.c.l.b16 %v3009
  %v4300 = vunpack.c.h.b16 %v3009
  %v4301 = vunpack.c.l.b16 %v3010
  %v4302 = vunpack.c.h.b16 %v3010
  %v4303 = vunpack.c.l.b16 %v3011
  %v4304 = vunpack.c.l.b16 %v3012
  %v4305 = vunpack.c.h.b16 %v3012
  %v4306 = vunpack.c.l.b16 %v3013
  %v4307 = vunpack.c.h.b16 %v3013
  %v4308 = vunpack.c.l.b16 %v3014
  %v4309 = vunpack.c.h.b16 %v3014
  %v4310 = vunpack.c.l.b16 %v3015
  %v4311 = vunpack.c.l.b16 %v3016
  %v4312 = vunpack.c.h.b16 %v3016
  %v4313 = vunpack.c.l.b16 %v3017
  %v4314 = vunpack.c.h.b16 %v3017
  %v4315 = vunpack.c.l.b16 %v3018
  %v4316 = vunpack.c.h.b16 %v3018
  %v4317 = vunpack.c.l.b16 %v3019
  %v4318 = vunpack.c.l.b16 %v3020
  %v4319 = vunpack.c.h.b16 %v3020
  %v4320 = vunpack.c.l.b16 %v3021
  %v4321 = vunpack.c.h.b16 %v3021
  %v4322 = vunpack.c.l.b16 %v3022
  %v4323 = vunpack.c.h.b16 %v3022
  %v4324 = vunpack.c.l.b16 %v3023
  %v4325 = vunpack.c.l.b16 %v3024
  %v4326 = vunpack.c.h.b16 %v3024
  %v4327 = vunpack.c.l.b16 %v3025
  %v4328 = vunpack.c.h.b16 %v3025
  %v4329 = vunpack.c.l.b16 %v3026
  %v4330 = vunpack.c.h.b16 %v3026
  %v4331 = vunpack.c.l.b16 %v3027
  %v4332 = vunpack.c.l.b16 %v3028
  %v4333 = vunpack.c.h.b16 %v3028
  %v4334 = vunpack.c.l.b16 %v3029
  %v4335 = vunpack.c.h.b16 %v3029
  %v4336 = vunpack.c.l.b16 %v3030
  %v4337 = vunpack.c.h.b16 %v3030
  %v4338 = vunpack.c.l.b16 %v3031
  %v4339 = vunpack.c.l.b16 %v3032
  %v4340 = vunpack.c.h.b16 %v3032
  %v4341 = vunpack.c.l.b16 %v3033
  %v4342 = vunpack.c.h.b16 %v3033
  %v4343 = vunpack.c.l.b16 %v3034
  %v4344 = vunpack.c.h.b16 %v3034
  %v4345 = vunpack.c.l.b16 %v3035
  %v4346 = vunpack.c.l.b16 %v3036
  %v4347 = vunpack.c.h.b16 %v3036
  %v4348 = vunpack.c.l.b16 %v3037
  %v4349 = vunpack.c.h.b16 %v3037
  %v4350 = vunpack.c.l.b16 %v3038
  %v4351 = vunpack.c.h.b16 %v3038
  %v4352 = vunpack.c.l.b16 %v3039
  %v4353 = vunpack.c.l.b16 %v3040
  %v4354 = vunpack.c.h.b16 %v3040
  %v4355 = vunpack.c.l.b16 %v3041
  %v4356 = vunpack.c.h.b16 %v3041
  %v4357 = vunpack.c.l.b16 %v3042
  %v4358 = vunpack.c.h.b16 %v3042
  %v4359 = vunpack.c.l.b16 %v3043
  %v4360 = vunpack.c.l.b16 %v3044
  %v4361 = vunpack.c.h.b16 %v3044
  %v4362 = vunpack.c.l.b16 %v3045
  %v4363 = vunpack.c.h.b16 %v3045
  %v4364 = vunpack.c.l.b16 %v3046
  %v4365 = vunpack.c.h.b16 %v3046
  %v4366 = vunpack.c.l.b16 %v3047
  %v4367 = vunpack.c.l.b16 %v3048
  %v4368 = vunpack.c.h.b16 %v3048
  %v4369 = vunpack.c.l.b16 %v3049
  %v4370 = vunpack.c.h.b16 %v3049
  %v4371 = vunpack.c.l.b16 %v3050
  %v4372 = vunpack.c.h.b16 %v3050
  %v4373 = vunpack.c.l.b16 %v3051
  %v4374 = vunpack.c.l.b16 %v3052
  %v4375 = vunpack.c.h.b16 %v3052
  %v4376 = vunpack.c.l.b16 %v3053
  %v4377 = vunpack.c.h.b16 %v3053
  %v4378 = vunpack.c.l.b16 %v3054
  %v4379 = vunpack.c.h.b16 %v3054
  %v4380 = vunpack.c.l.b16 %v3055
  %v4381 = vunpack.c.l.b16 %v3056
  %v4382 = vunpack.c.h.b16 %v3056
  %v4383 = vunpack.c.l.b16 %v3057
  %v4384 = vunpack.c.h.b16 %v3057
  %v4385 = vunpack.c.l.b16 %v3058
  %v4386 = vunpack.c.h.b16 %v3058
  %v4387 = vunpack.c.l.b16 %v3059
  %v4388 = vunpack.c.l.b16 %v3060
  %v4389 = vunpack.c.h.b16 %v3060
  %v4390 = vunpack.c.l.b16 %v3061
  %v4391 = vunpack.c.h.b16 %v3061
  %v4392 = vunpack.c.l.b16 %v3062
  %v4393 = vunpack.c.h.b16 %v3062
  %v4394 = vunpack.c.l.b16 %v3063
  %v4395 = vunpack.c.l.b16 %v3064
  %v4396 = vunpack.c.h.b16 %v3064
  %v4397 = vunpack.c.l.b16 %v3065
  %v4398 = vunpack.c.h.b16 %v3065
  %v4399 = vunpack.c.l.b16 %v3066
  %v4400 = vunpack.c.h.b16 %v3066
  %v4401 = vunpack.c.l.b16 %v3067
  %v4402 = vunpack.c.l.b16 %v3068
  %v4403 = vunpack.c.h.b16 %v3068
  %v4404 = vunpack.c.l.b16 %v3069
  %v4405 = vunpack.c.h.b16 %v3069
  %v4406 = vunpack.c.l.b16 %v3070
  %v4407 = vunpack.c.h.b16 %v3070
  %v4408 = vunpack.c.l.b16 %v3071
  %v4409 = vunpack.c.l.b16 %v3072
  %v4410 = vunpack.c.h.b16 %v3072
  %v4411 = vunpack.c.l.b16 %v3073
  %v4412 = vunpack.c.h.b16 %v3073
  %v4413 = vunpack.c.l.b16 %v3074
  %v4414 = vunpack.c.h.b16 %v3074
  %v4415 = vunpack.c.l.b16 %v3075
  %v4416 = vunpack.c.l.b16 %v3076
  %v4417 = vunpack.c.h.b16 %v3076
  %v4418 = vunpack.c.l.b16 %v3077
  %v4419 = vunpack.c.h.b16 %v3077
  %v4420 = vunpack.c.l.b16 %v3078
  %v4421 = vunpack.c.h.b16 %v3078
  %v4422 = vunpack.c.l.b16 %v3079
  %v4423 = vunpack.c.l.b16 %v3080
  %v4424 = vunpack.c.h.b16 %v3080
  %v4425 = vunpack.c.l.b16 %v3081
  %v4426 = vunpack.c.h.b16 %v3081
  %v4427 = vunpack.c.l.b16 %v3082
  %v4428 = vunpack.c.h.b16 %v3082
  %v4429 = vunpack.c.l.b16 %v3083
  %v4430 = vunpack.c.l.b16 %v3084
  %v4431 = vunpack.c.h.b16 %v3084
  %v4432 = vunpack.c.l.b16 %v3085
  %v4433 = vunpack.c.h.b16 %v3085
  %v4434 = vunpack.c.l.b16 %v3086
  %v4435 = vunpack.c.h.b16 %v3086
  %v4436 = vunpack.c.l.b16 %v3087
  %v4437 = vunpack.c.l.b16 %v3088
  %v4438 = vunpack.c.h.b16 %v3088
  %v4439 = vunpack.c.l.b16 %v3089
  %v4440 = vunpack.c.h.b16 %v3089
  %v4441 = vunpack.c.l.b16 %v3090
  %v4442 = vunpack.c.h.b16 %v3090
  %v4443 = vunpack.c.l.b16 %v3091
  %v4444 = vunpack.c.l.b16 %v3092
  %v4445 = vunpack.c.h.b16 %v3092
  %v4446 = vunpack.c.l.b16 %v3093
  %v4447 = vunpack.c.h.b16 %v3093
  %v4448 = vunpack.c.l.b16 %v3094
  %v4449 = vunpack.c.h.b16 %v3094
  %v4450 = vunpack.c.l.b16 %v3095
  %v4451 = vunpack.c.l.b16 %v3096
  %v4452 = vunpack.c.h.b16 %v3096
  %v4453 = vunpack.c.l.b16 %v3097
  %v4454 = vunpack.c.h.b16 %v3097
  %v4455 = vunpack.c.l.b16 %v3098
  %v4456 = vunpack.c.h.b16 %v3098
  %v4457 = vunpack.c.l.b16 %v3099
  %v4458 = vunpack.c.l.b16 %v3100
  %v4459 = vunpack.c.h.b16 %v3100
  %v4460 = vunpack.c.l.b16 %v3101
  %v4461 = vunpack.c.h.b16 %v3101
  %v4462 = vunpack.c.l.b16 %v3102
  %v4463 = vunpack.c.h.b16 %v3102
  %v4464 = vunpack.c.l.b16 %v3103
  %v4465 = vunpack.c.l.b16 %v3104
  %v4466 = vunpack.c.h.b16 %v3104
  %v4467 = vunpack.c.l.b16 %v3105
  %v4468 = vunpack.c.h.b16 %v3105
  %v4469 = vunpack.c.l.b16 %v3106
  %v4470 = vunpack.c.h.b16 %v3106
  %v4471 = vunpack.c.l.b16 %v3107
  %v4472 = vunpack.c.l.b16 %v3108
  %v4473 = vunpack.c.h.b16 %v3108
  %v4474 = vunpack.c.l.b16 %v3109
  %v4475 = vunpack.c.h.b16 %v3109
  %v4476 = vunpack.c.l.b16 %v3110
  %v4477 = vunpack.c.h.b16 %v3110
  %v4478 = vunpack.c.l.b16 %v3111
  %v4479 = vunpack.c.l.b16 %v3112
  %v4480 = vunpack.c.h.b16 %v3112
  %v4481 = vunpack.c.l.b16 %v3113
  %v4482 = vunpack.c.h.b16 %v3113
  %v4483 = vunpack.c.l.b16 %v3114
  %v4484 = vunpack.c.h.b16 %v3114
  %v4485 = vunpack.c.l.b16 %v3115
  %v4486 = vunpack.c.l.b16 %v3116
  %v4487 = vunpack.c.h.b16 %v3116
  %v4488 = vunpack.c.l.b16 %v3117
  %v4489 = vunpack.c.h.b16 %v3117
  %v4490 = vunpack.c.l.b16 %v3118
  %v4491 = vunpack.c.h.b16 %v3118
  %v4492 = vunpack.c.l.b16 %v3119
  %v4493 = vunpack.c.l.b16 %v3120
  %v4494 = vunpack.c.h.b16 %v3120
  %v4495 = vunpack.c.l.b16 %v3121
  %v4496 = vunpack.c.h.b16 %v3121
  %v4497 = vunpack.c.l.b16 %v3122
  %v4498 = vunpack.c.h.b16 %v3122
  %v4499 = vunpack.c.l.b16 %v3123
  %v4500 = vunpack.c.l.b16 %v3124
  %v4501 = vunpack.c.h.b16 %v3124
  %v4502 = vunpack.c.l.b16 %v3125
  %v4503 = vunpack.c.h.b16 %v3125
  %v4504 = vunpack.c.l.b16 %v3126
  %v4505 = vunpack.c.h.b16 %v3126
  %v4506 = vunpack.c.l.b16 %v3127
  %v4507 = vunpack.c.l.b16 %v3128
  %v4508 = vunpack.c.h.b16 %v3128
  %v4509 = vunpack.c.l.b16 %v3129
  %v4510 = vunpack.c.h.b16 %v3129
  %v4511 = vunpack.c.l.b16 %v3130
  %v4512 = vunpack.c.h.b16 %v3130
  %v4513 = vunpack.c.l.b16 %v3131
  %v4514 = vunpack.c.l.b16 %v3132
  %v4515 = vunpack.c.h.b16 %v3132
  %v4516 = vunpack.c.l.b16 %v3133
  %v4517 = vunpack.c.h.b16 %v3133
  %v4518 = vunpack.c.l.b16 %v3134
  %v4519 = vunpack.c.h.b16 %v3134
  %v4520 = vunpack.c.l.b16 %v3135
  %v4521 = vunpack.c.l.b16 %v3136
  %v4522 = vunpack.c.h.b16 %v3136
  %v4523 = vunpack.c.l.b16 %v3137
  %v4524 = vunpack.c.h.b16 %v3137
  %v4525 = vunpack.c.l.b16 %v3138
  %v4526 = vunpack.c.h.b16 %v3138
  %v4527 = vunpack.c.l.b16 %v3139
  %v4528 = vunpack.c.l.b16 %v3140
  %v4529 = vunpack.c.h.b16 %v3140
  %v4530 = vunpack.c.l.b16 %v3141
  %v4531 = vunpack.c.h.b16 %v3141
  %v4532 = vunpack.c.l.b16 %v3142
  %v4533 = vunpack.c.h.b16 %v3142
  %v4534 = vunpack.c.l.b16 %v3143
  %v4535 = vunpack.c.l.b16 %v3144
  %v4536 = vunpack.c.h.b16 %v3144
  %v4537 = vunpack.c.l.b16 %v3145
  %v4538 = vunpack.c.h.b16 %v3145
  %v4539 = vunpack.c.l.b16 %v3146
  %v4540 = vunpack.c.h.b16 %v3146
  %v4541 = vunpack.c.l.b16 %v3147
  %v4542 = vunpack.c.l.b16 %v3148
  %v4543 = vunpack.c.h.b16 %v3148
  %v4544 = vunpack.c.l.b16 %v3149
  %v4545 = vunpack.c.h.b16 %v3149
  %v4546 = vunpack.c.l.b16 %v3150
  %v4547 = vunpack.c.h.b16 %v3150
  %v4548 = vunpack.c.l.b16 %v3151
  %v4549 = vunpack.c.l.b16 %v3152
  %v4550 = vunpack.c.h.b16 %v3152
  %v4551 = vunpack.c.l.b16 %v3153
  %v4552 = vunpack.c.h.b16 %v3153
  %v4553 = vunpack.c.l.b16 %v3154
  %v4554 = vunpack.c.h.b16 %v3154
  %v4555 = vunpack.c.l.b16 %v3155
  %v4556 = vunpack.c.l.b16 %v3156
  %v4557 = vunpack.c.h.b16 %v3156
  %v4558 = vunpack.c.l.b16 %v3157
  %v4559 = vunpack.c.h.b16 %v3157
  %v4560 = vunpack.c.l.b16 %v3158
  %v4561 = vunpack.c.h.b16 %v3158
  %v4562 = vunpack.c.l.b16 %v3159
  %v4563 = vunpack.c.l.b16 %v3160
  %v4564 = vunpack.c.h.b16 %v3160
  %v4565 = vunpack.c.l.b16 %v3161
  %v4566 = vunpack.c.h.b16 %v3161
  %v4567 = vunpack.c.l.b16 %v3162
  %v4568 = vunpack.c.h.b16 %v3162
  %v4569 = vunpack.c.l.b16 %v3163
  %v4570 = vunpack.c.l.b16 %v3164
  %v4571 = vunpack.c.h.b16 %v3164
  %v4572 = vunpack.c.l.b16 %v3165
  %v4573 = vunpack.c.h.b16 %v3165
  %v4574 = vunpack.c.l.b16 %v3166
  %v4575 = vunpack.c.h.b16 %v3166
  %v4576 = vunpack.c.l.b16 %v3167
  %v4577 = vunpack.c.l.b16 %v3168
  %v4578 = vunpack.c.h.b16 %v3168
  %v4579 = vunpack.c.l.b16 %v3169
  %v4580 = vunpack.c.h.b16 %v3169
  %v4581 = vunpack.c.l.b16 %v3170
  %v4582 = vunpack.c.h.b16 %v3170
  %v4583 = vunpack.c.l.b16 %v3171
  %v4584 = vunpack.c.l.b16 %v3172
  %v4585 = vunpack.c.h.b16 %v3172
  %v4586 = vunpack.c.l.b16 %v3173
  %v4587 = vunpack.c.h.b16 %v3173
  %v4588 = vunpack.c.l.b16 %v3174
  %v4589 = vunpack.c.h.b16 %v3174
  %v4590 = vunpack.c.l.b16 %v3175
  %v4591 = vunpack.c.l.b16 %v3176
  %v4592 = vunpack.c.h.b16 %v3176
  %v4593 = vunpack.c.l.b16 %v3177
  %v4594 = vunpack.c.h.b16 %v3177
  %v4595 = vunpack.c.l.b16 %v3178
  %v4596 = vunpack.c.h.b16 %v3178
  %v4597 = vunpack.c.l.b16 %v3179
  %v4598 = vunpack.c.l.b16 %v3180
  %v4599 = vunpack.c.h.b16 %v3180
  %v4600 = vunpack.c.l.b16 %v3181
  %v4601 = vunpack.c.h.b16 %v3181
  %v4602 = vunpack.c.l.b16 %v3182
  %v4603 = vunpack.c.h.b16 %v3182
  %v4604 = vunpack.c.l.b16 %v3183
  %v4605 = vunpack.c.l.b16 %v3184
  %v4606 = vunpack.c.h.b16 %v3184
  %v4607 = vunpack.c.l.b16 %v3185
  %v4608 = vunpack.c.h.b16 %v3185
  %v4609 = vunpack.c.l.b16 %v3186
  %v4610 = vunpack.c.h.b16 %v3186
  %v4611 = vunpack.c.l.b16 %v3187
  %v4612 = vunpack.c.l.b16 %v3188
  %v4613 = vunpack.c.h.b16 %v3188
  %v4614 = vunpack.c.l.b16 %v3189
  %v4615 = vunpack.c.h.b16 %v3189
  %v4616 = vunpack.c.l.b16 %v3190
  %v4617 = vunpack.c.h.b16 %v3190
  %v4618 = vunpack.c.l.b16 %v3191
  %v4619 = vunpack.c.l.b16 %v3192
  %v4620 = vunpack.c.h.b16 %v3192
  %v4621 = vunpack.c.l.b16 %v3193
  %v4622 = vunpack.c.h.b16 %v3193
  %v4623 = vunpack.c.l.b16 %v3194
  %v4624 = vunpack.c.h.b16 %v3194
  %v4625 = vunpack.c.l.b16 %v3195
  %v4626 = vunpack.c.l.b16 %v3196
  %v4627 = vunpack.c.h.b16 %v3196
  %v4628 = vunpack.c.l.b16 %v3197
  %v4629 = vunpack.c.h.b16 %v3197
  %v4630 = vunpack.c.l.b16 %v3198
  %v4631 = vunpack.c.h.b16 %v3198
  %v4632 = vunpack.c.l.b16 %v3199
  %v4633 = vunpack.c.l.b16 %v3200
  %v4634 = vunpack.c.h.b16 %v3200
  %v4635 = vunpack.c.l.b16 %v3201
  %v4636 = vunpack.c.h.b16 %v3201
  %v4637 = vunpack.c.l.b16 %v3202
  %v4638 = vunpack.c.h.b16 %v3202
  %v4639 = vunpack.c.l.b16 %v3203
  %v4640 = vunpack.c.l.b16 %v3204
  %v4641 = vunpack.c.h.b16 %v3204
  %v4642 = vunpack.c.l.b16 %v3205
  %v4643 = vunpack.c.h.b16 %v3205
  %v4644 = vunpack.c.l.b16 %v3206
  %v4645 = vunpack.c.h.b16 %v3206
  %v4646 = vunpack.c.l.b16 %v3207
  %v4647 = vunpack.c.l.b16 %v3208
  %v4648 = vunpack.c.h.b16 %v3208
  %v4649 = vunpack.c.l.b16 %v3209
  %v4650 = vunpack.c.h.b16 %v3209
  %v4651 = vunpack.c.l.b16 %v3210
  %v4652 = vunpack.c.h.b16 %v3210
  %v4653 = vunpack.c.l.b16 %v3211
  %v4654 = vunpack.c.l.b16 %v3212
  %v4655 = vunpack.c.h.b16 %v3212
  %v4656 = vunpack.c.l.b16 %v3213
  %v4657 = vunpack.c.h.b16 %v3213
  %v4658 = vunpack.c.l.b16 %v3214
  %v4659 = vunpack.c.h.b16 %v3214
  %v4660 = vunpack.c.l.b16 %v3215
  %v4661 = vpack.c.b16 %v3772, %v3765
  %v4662 = vpack.c.b16 %v3773, %v3766
  %v4663 = vpack.c.b16 %v3774, %v3767
  %v4664 = vpack.c.b16 %v3775, %v3768
  %v4665 = vpack.c.b16 %v3776, %v3769
  %v4666 = vpack.c.b16 %v3777, %v3770
  %v4667 = vpack.c.b16 %v3778, %v3771
  %v4668 = vpack.c.b16 %v3786, %v3779
  %v4669 = vpack.c.b16 %v3787, %v3780
  %v4670 = vpack.c.b16 %v3788, %v3781
  %v4671 = vpack.c.b16 %v3789, %v3782
  %v4672 = vpack.c.b16 %v3790, %v3783
  %v4673 = vpack.c.b16 %v3791, %v3784
  %v4674 = vpack.c.b16 %v3792, %v3785
  %v4675 = vpack.c.b16 %v3800, %v3793
  %v4676 = vpack.c.b16 %v3801, %v3794
  %v4677 = vpack.c.b16 %v3802, %v3795
  %v4678 = vpack.c.b16 %v3803, %v3796
  %v4679 = vpack.c.b16 %v3804, %v3797
  %v4680 = vpack.c.b16 %v3805, %v3798
  %v4681 = vpack.c.b16 %v3806, %v3799
  %v4682 = vpack.c.b16 %v3814, %v3807
  %v4683 = vpack.c.b16 %v3815, %v3808
  %v4684 = vpack.c.b16 %v3816, %v3809
  %v4685 = vpack.c.b16 %v3817, %v3810
  %v4686 = vpack.c.b16 %v3818, %v3811
  %v4687 = vpack.c.b16 %v3819, %v3812
  %v4688 = vpack.c.b16 %v3820, %v3813
  %v4689 = vpack.c.b16 %v3828, %v3821
  %v4690 = vpack.c.b16 %v3829, %v3822
  %v4691 = vpack.c.b16 %v3830, %v3823
  %v4692 = vpack.c.b16 %v3831, %v3824
  %v4693 = vpack.c.b16 %v3832, %v3825
  %v4694 = vpack.c.b16 %v3833, %v3826
  %v4695 = vpack.c.b16 %v3834, %v3827
  %v4696 = vpack.c.b16 %v3842, %v3835
  %v4697 = vpack.c.b16 %v3843, %v3836
  %v4698 = vpack.c.b16 %v3844, %v3837
  %v4699 = vpack.c.b16 %v3845, %v3838
  %v4700 = vpack.c.b16 %v3846, %v3839
  %v4701 = vpack.c.b16 %v3847, %v3840
  %v4702 = vpack.c.b16 %v3848, %v3841
  %v4703 = vpack.c.b16 %v3856, %v3849
  %v4704 = vpack.c.b16 %v3857, %v3850
  %v4705 = vpack.c.b16 %v3858, %v3851
  %v4706 = vpack.c.b16 %v3859, %v3852
  %v4707 = vpack.c.b16 %v3860, %v3853
  %v4708 = vpack.c.b16 %v3861, %v3854
  %v4709 = vpack.c.b16 %v3862, %v3855
  %v4710 = vpack.c.b16 %v3870, %v3863
  %v4711 = vpack.c.b16 %v3871, %v3864
  %v4712 = vpack.c.b16 %v3872, %v3865
  %v4713 = vpack.c.b16 %v3873, %v3866
  %v4714 = vpack.c.b16 %v3874, %v3867
  %v4715 = vpack.c.b16 %v3875, %v3868
  %v4716 = vpack.c.b16 %v3876, %v3869
  %v4717 = vpack.c.b16 %v3884, %v3877
  %v4718 = vpack.c.b16 %v3885, %v3878
  %v4719 = vpack.c.b16 %v3886, %v3879
  %v4720 = vpack.c.b16 %v3887, %v3880
  %v4721 = vpack.c.b16 %v3888, %v3881
  %v4722 = vpack.c.b16 %v3889, %v3882
  %v4723 = vpack.c.b16 %v3890, %v3883
  %v4724 = vpack.c.b16 %v3898, %v3891
  %v4725 = vpack.c.b16 %v3899, %v3892
  %v4726 = vpack.c.b16 %v3900, %v3893
  %v4727 = vpack.c.b16 %v3901, %v3894
  %v4728 = vpack.c.b16 %v3902, %v3895
  %v4729 = vpack.c.b16 %v3903, %v3896
  %v4730 = vpack.c.b16 %v3904, %v3897
  %v4731 = vpack.c.b16 %v3912, %v3905
  %v4732 = vpack.c.b16 %v3913, %v3906
  %v4733 = vpack.c.b16 %v3914, %v3907
  %v4734 = vpack.c.b16 %v3915, %v3908
  %v4735 = vpack.c.b16 %v3916, %v3909
  %v4736 = vpack.c.b16 %v3917, %v3910
  %v4737 = vpack.c.b16 %v3918, %v3911
  %v4738 = vpack.c.b16 %v3926, %v3919
  %v4739 = vpack.c.b16 %v3927, %v3920
  %v4740 = vpack.c.b16 %v3928, %v3921
  %v4741 = vpack.c.b16 %v3929, %v3922
  %v4742 = vpack.c.b16 %v3930, %v3923
  %v4743 = vpack.c.b16 %v3931, %v3924
  %v4744 = vpack.c.b16 %v3932, %v3925
  %v4745 = vpack.c.b16 %v3940, %v3933
  %v4746 = vpack.c.b16 %v3941, %v3934
  %v4747 = vpack.c.b16 %v3942, %v3935
  %v4748 = vpack.c.b16 %v3943, %v3936
  %v4749 = vpack.c.b16 %v3944, %v3937
  %v4750 = vpack.c.b16 %v3945, %v3938
  %v4751 = vpack.c.b16 %v3946, %v3939
  %v4752 = vpack.c.b16 %v3954, %v3947
  %v4753 = vpack.c.b16 %v3955, %v3948
  %v4754 = vpack.c.b16 %v3956, %v3949
  %v4755 = vpack.c.b16 %v3957, %v3950
  %v4756 = vpack.c.b16 %v3958, %v3951
  %v4757 = vpack.c.b16 %v3959, %v3952
  %v4758 = vpack.c.b16 %v3960, %v3953
  %v4759 = vpack.c.b16 %v3968, %v3961
  %v4760 = vpack.c.b16 %v3969, %v3962
  %v4761 = vpack.c.b16 %v3970, %v3963
  %v4762 = vpack.c.b16 %v3971, %v3964
  %v4763 = vpack.c.b16 %v3972, %v3965
  %v4764 = vpack.c.b16 %v3973, %v3966
  %v4765 = vpack.c.b16 %v3974, %v3967
  %v4766 = vpack.c.b16 %v3982, %v3975
  %v4767 = vpack.c.b16 %v3983, %v3976
  %v4768 = vpack.c.b16 %v3984, %v3977
  %v4769 = vpack.c.b16 %v3985, %v3978
  %v4770 = vpack.c.b16 %v3986, %v3979
  %v4771 = vpack.c.b16 %v3987, %v3980
  %v4772 = vpack.c.b16 %v3988, %v3981
  %v4773 = vpack.c.b16 %v3996, %v3989
  %v4774 = vpack.c.b16 %v3997, %v3990
  %v4775 = vpack.c.b16 %v3998, %v3991
  %v4776 = vpack.c.b16 %v3999, %v3992
  %v4777 = vpack.c.b16 %v4000, %v3993
  %v4778 = vpack.c.b16 %v4001, %v3994
  %v4779 = vpack.c.b16 %v4002, %v3995
  %v4780 = vpack.c.b16 %v4010, %v4003
  %v4781 = vpack.c.b16 %v4011, %v4004
  %v4782 = vpack.c.b16 %v4012, %v4005
  %v4783 = vpack.c.b16 %v4013, %v4006
  %v4784 = vpack.c.b16 %v4014, %v4007
  %v4785 = vpack.c.b16 %v4015, %v4008
  %v4786 = vpack.c.b16 %v4016, %v4009
  %v4787 = vpack.c.b16 %v4024, %v4017
  %v4788 = vpack.c.b16 %v4025, %v4018
  %v4789 = vpack.c.b16 %v4026, %v4019
  %v4790 = vpack.c.b16 %v4027, %v4020
  %v4791 = vpack.c.b16 %v4028, %v4021
  %v4792 = vpack.c.b16 %v4029, %v4022
  %v4793 = vpack.c.b16 %v4030, %v4023
  %v4794 = vpack.c.b16 %v4038, %v4031
  %v4795 = vpack.c.b16 %v4039, %v4032
  %v4796 = vpack.c.b16 %v4040, %v4033
  %v4797 = vpack.c.b16 %v4041, %v4034
  %v4798 = vpack.c.b16 %v4042, %v4035
  %v4799 = vpack.c.b16 %v4043, %v4036
  %v4800 = vpack.c.b16 %v4044, %v4037
  %v4801 = vpack.c.b16 %v4052, %v4045
  %v4802 = vpack.c.b16 %v4053, %v4046
  %v4803 = vpack.c.b16 %v4054, %v4047
  %v4804 = vpack.c.b16 %v4055, %v4048
  %v4805 = vpack.c.b16 %v4056, %v4049
  %v4806 = vpack.c.b16 %v4057, %v4050
  %v4807 = vpack.c.b16 %v4058, %v4051
  %v4808 = vpack.c.b16 %v4066, %v4059
  %v4809 = vpack.c.b16 %v4067, %v4060
  %v4810 = vpack.c.b16 %v4068, %v4061
  %v4811 = vpack.c.b16 %v4069, %v4062
  %v4812 = vpack.c.b16 %v4070, %v4063
  %v4813 = vpack.c.b16 %v4071, %v4064
  %v4814 = vpack.c.b16 %v4072, %v4065
  %v4815 = vpack.c.b16 %v4080, %v4073
  %v4816 = vpack.c.b16 %v4081, %v4074
  %v4817 = vpack.c.b16 %v4082, %v4075
  %v4818 = vpack.c.b16 %v4083, %v4076
  %v4819 = vpack.c.b16 %v4084, %v4077
  %v4820 = vpack.c.b16 %v4085, %v4078
  %v4821 = vpack.c.b16 %v4086, %v4079
  %v4822 = vpack.c.b16 %v4094, %v4087
  %v4823 = vpack.c.b16 %v4095, %v4088
  %v4824 = vpack.c.b16 %v4096, %v4089
  %v4825 = vpack.c.b16 %v4097, %v4090
  %v4826 = vpack.c.b16 %v4098, %v4091
  %v4827 = vpack.c.b16 %v4099, %v4092
  %v4828 = vpack.c.b16 %v4100, %v4093
  %v4829 = vpack.c.b16 %v4108, %v4101
  %v4830 = vpack.c.b16 %v4109, %v4102
  %v4831 = vpack.c.b16 %v4110, %v4103
  %v4832 = vpack.c.b16 %v4111, %v4104
  %v4833 = vpack.c.b16 %v4112, %v4105
  %v4834 = vpack.c.b16 %v4113, %v4106
  %v4835 = vpack.c.b16 %v4114, %v4107
  %v4836 = vpack.c.b16 %v4122, %v4115
  %v4837 = vpack.c.b16 %v4123, %v4116
  %v4838 = vpack.c.b16 %v4124, %v4117
  %v4839 = vpack.c.b16 %v4125, %v4118
  %v4840 = vpack.c.b16 %v4126, %v4119
  %v4841 = vpack.c.b16 %v4127, %v4120
  %v4842 = vpack.c.b16 %v4128, %v4121
  %v4843 = vpack.c.b16 %v4136, %v4129
  %v4844 = vpack.c.b16 %v4137, %v4130
  %v4845 = vpack.c.b16 %v4138, %v4131
  %v4846 = vpack.c.b16 %v4139, %v4132
  %v4847 = vpack.c.b16 %v4140, %v4133
  %v4848 = vpack.c.b16 %v4141, %v4134
  %v4849 = vpack.c.b16 %v4142, %v4135
  %v4850 = vpack.c.b16 %v4150, %v4143
  %v4851 = vpack.c.b16 %v4151, %v4144
  %v4852 = vpack.c.b16 %v4152, %v4145
  %v4853 = vpack.c.b16 %v4153, %v4146
  %v4854 = vpack.c.b16 %v4154, %v4147
  %v4855 = vpack.c.b16 %v4155, %v4148
  %v4856 = vpack.c.b16 %v4156, %v4149
  %v4857 = vpack.c.b16 %v4164, %v4157
  %v4858 = vpack.c.b16 %v4165, %v4158
  %v4859 = vpack.c.b16 %v4166, %v4159
  %v4860 = vpack.c.b16 %v4167, %v4160
  %v4861 = vpack.c.b16 %v4168, %v4161
  %v4862 = vpack.c.b16 %v4169, %v4162
  %v4863 = vpack.c.b16 %v4170, %v4163
  %v4864 = vpack.c.b16 %v4178, %v4171
  %v4865 = vpack.c.b16 %v4179, %v4172
  %v4866 = vpack.c.b16 %v4180, %v4173
  %v4867 = vpack.c.b16 %v4181, %v4174
  %v4868 = vpack.c.b16 %v4182, %v4175
  %v4869 = vpack.c.b16 %v4183, %v4176
  %v4870 = vpack.c.b16 %v4184, %v4177
  %v4871 = vpack.c.b16 %v4192, %v4185
  %v4872 = vpack.c.b16 %v4193, %v4186
  %v4873 = vpack.c.b16 %v4194, %v4187
  %v4874 = vpack.c.b16 %v4195, %v4188
  %v4875 = vpack.c.b16 %v4196, %v4189
  %v4876 = vpack.c.b16 %v4197, %v4190
  %v4877 = vpack.c.b16 %v4198, %v4191
  %v4878 = vpack.c.b16 %v4206, %v4199
  %v4879 = vpack.c.b16 %v4207, %v4200
  %v4880 = vpack.c.b16 %v4208, %v4201
  %v4881 = vpack.c.b16 %v4209, %v4202
  %v4882 = vpack.c.b16 %v4210, %v4203
  %v4883 = vpack.c.b16 %v4211, %v4204
  %v4884 = vpack.c.b16 %v4212, %v4205
  %v4885 = vpack.c.b16 %v4220, %v4213
  %v4886 = vpack.c.b16 %v4221, %v4214
  %v4887 = vpack.c.b16 %v4222, %v4215
  %v4888 = vpack.c.b16 %v4223, %v4216
  %v4889 = vpack.c.b16 %v4224, %v4217
  %v4890 = vpack.c.b16 %v4225, %v4218
  %v4891 = vpack.c.b16 %v4226, %v4219
  %v4892 = vpack.c.b16 %v4234, %v4227
  %v4893 = vpack.c.b16 %v4235, %v4228
  %v4894 = vpack.c.b16 %v4236, %v4229
  %v4895 = vpack.c.b16 %v4237, %v4230
  %v4896 = vpack.c.b16 %v4238, %v4231
  %v4897 = vpack.c.b16 %v4239, %v4232
  %v4898 = vpack.c.b16 %v4240, %v4233
  %v4899 = vpack.c.b16 %v4248, %v4241
  %v4900 = vpack.c.b16 %v4249, %v4242
  %v4901 = vpack.c.b16 %v4250, %v4243
  %v4902 = vpack.c.b16 %v4251, %v4244
  %v4903 = vpack.c.b16 %v4252, %v4245
  %v4904 = vpack.c.b16 %v4253, %v4246
  %v4905 = vpack.c.b16 %v4254, %v4247
  %v4906 = vpack.c.b16 %v4262, %v4255
  %v4907 = vpack.c.b16 %v4263, %v4256
  %v4908 = vpack.c.b16 %v4264, %v4257
  %v4909 = vpack.c.b16 %v4265, %v4258
  %v4910 = vpack.c.b16 %v4266, %v4259
  %v4911 = vpack.c.b16 %v4267, %v4260
  %v4912 = vpack.c.b16 %v4268, %v4261
  %v4913 = vpack.c.b16 %v4276, %v4269
  %v4914 = vpack.c.b16 %v4277, %v4270
  %v4915 = vpack.c.b16 %v4278, %v4271
  %v4916 = vpack.c.b16 %v4279, %v4272
  %v4917 = vpack.c.b16 %v4280, %v4273
  %v4918 = vpack.c.b16 %v4281, %v4274
  %v4919 = vpack.c.b16 %v4282, %v4275
  %v4920 = vpack.c.b16 %v4290, %v4283
  %v4921 = vpack.c.b16 %v4291, %v4284
  %v4922 = vpack.c.b16 %v4292, %v4285
  %v4923 = vpack.c.b16 %v4293, %v4286
  %v4924 = vpack.c.b16 %v4294, %v4287
  %v4925 = vpack.c.b16 %v4295, %v4288
  %v4926 = vpack.c.b16 %v4296, %v4289
  %v4927 = vpack.c.b16 %v4304, %v4297
  %v4928 = vpack.c.b16 %v4305, %v4298
  %v4929 = vpack.c.b16 %v4306, %v4299
  %v4930 = vpack.c.b16 %v4307, %v4300
  %v4931 = vpack.c.b16 %v4308, %v4301
  %v4932 = vpack.c.b16 %v4309, %v4302
  %v4933 = vpack.c.b16 %v4310, %v4303
  %v4934 = vpack.c.b16 %v4318, %v4311
  %v4935 = vpack.c.b16 %v4319, %v4312
  %v4936 = vpack.c.b16 %v4320, %v4313
  %v4937 = vpack.c.b16 %v4321, %v4314
  %v4938 = vpack.c.b16 %v4322, %v4315
  %v4939 = vpack.c.b16 %v4323, %v4316
  %v4940 = vpack.c.b16 %v4324, %v4317
  %v4941 = vpack.c.b16 %v4332, %v4325
  %v4942 = vpack.c.b16 %v4333, %v4326
  %v4943 = vpack.c.b16 %v4334, %v4327
  %v4944 = vpack.c.b16 %v4335, %v4328
  %v4945 = vpack.c.b16 %v4336, %v4329
  %v4946 = vpack.c.b16 %v4337, %v4330
  %v4947 = vpack.c.b16 %v4338, %v4331
  %v4948 = vpack.c.b16 %v4346, %v4339
  %v4949 = vpack.c.b16 %v4347, %v4340
  %v4950 = vpack.c.b16 %v4348, %v4341
  %v4951 = vpack.c.b16 %v4349, %v4342
  %v4952 = vpack.c.b16 %v4350, %v4343
  %v4953 = vpack.c.b16 %v4351, %v4344
  %v4954 = vpack.c.b16 %v4352, %v4345
  %v4955 = vpack.c.b16 %v4360, %v4353
  %v4956 = vpack.c.b16 %v4361, %v4354
  %v4957 = vpack.c.b16 %v4362, %v4355
  %v4958 = vpack.c.b16 %v4363, %v4356
  %v4959 = vpack.c.b16 %v4364, %v4357
  %v4960 = vpack.c.b16 %v4365, %v4358
  %v4961 = vpack.c.b16 %v4366, %v4359
  %v4962 = vpack.c.b16 %v4374, %v4367
  %v4963 = vpack.c.b16 %v4375, %v4368
  %v4964 = vpack.c.b16 %v4376, %v4369
  %v4965 = vpack.c.b16 %v4377, %v4370
  %v4966 = vpack.c.b16 %v4378, %v4371
  %v4967 = vpack.c.b16 %v4379, %v4372
  %v4968 = vpack.c.b16 %v4380, %v4373
  %v4969 = vpack.c.b16 %v4388, %v4381
  %v4970 = vpack.c.b16 %v4389, %v4382
  %v4971 = vpack.c.b16 %v4390, %v4383
  %v4972 = vpack.c.b16 %v4391, %v4384
  %v4973 = vpack.c.b16 %v4392, %v4385
  %v4974 = vpack.c.b16 %v4393, %v4386
  %v4975 = vpack.c.b16 %v4394, %v4387
  %v4976 = vpack.c.b16 %v4402, %v4395
  %v4977 = vpack.c.b16 %v4403, %v4396
  %v4978 = vpack.c.b16 %v4404, %v4397
  %v4979 = vpack.c.b16 %v4405, %v4398
  %v4980 = vpack.c.b16 %v4406, %v4399
  %v4981 = vpack.c.b16 %v4407, %v4400
  %v4982 = vpack.c.b16 %v4408, %v4401
  %v4983 = vpack.c.b16 %v4416, %v4409
  %v4984 = vpack.c.b16 %v4417, %v4410
  %v4985 = vpack.c.b16 %v4418, %v4411
  %v4986 = vpack.c.b16 %v4419, %v4412
  %v4987 = vpack.c.b16 %v4420, %v4413
  %v4988 = vpack.c.b16 %v4421, %v4414
  %v4989 = vpack.c.b16 %v4422, %v4415
  %v4990 = vpack.c.b16 %v4430, %v4423
  %v4991 = vpack.c.b16 %v4431, %v4424
  %v4992 = vpack.c.b16 %v4432, %v4425
  %v4993 = vpack.c.b16 %v4433, %v4426
  %v4994 = vpack.c.b16 %v4434, %v4427
  %v4995 = vpack.c.b16 %v4435, %v4428
  %v4996 = vpack.c.b16 %v4436, %v4429
  %v4997 = vpack.c.b16 %v4444, %v4437
  %v4998 = vpack.c.b16 %v4445, %v4438
  %v4999 = vpack.c.b16 %v4446, %v4439
  %v5000 = vpack.c.b16 %v4447, %v4440
  %v5001 = vpack.c.b16 %v4448, %v4441
  %v5002 = vpack.c.b16 %v4449, %v4442
  %v5003 = vpack.c.b16 %v4450, %v4443
  %v5004 = vpack.c.b16 %v4458, %v4451
  %v5005 = vpack.c.b16 %v4459, %v4452
  %v5006 = vpack.c.b16 %v4460, %v4453
  %v5007 = vpack.c.b16 %v4461, %v4454
  %v5008 = vpack.c.b16 %v4462, %v4455
  %v5009 = vpack.c.b16 %v4463, %v4456
  %v5010 = vpack.c.b16 %v4464, %v4457
  %v5011 = vpack.c.b16 %v4472, %v4465
  %v5012 = vpack.c.b16 %v4473, %v4466
  %v5013 = vpack.c.b16 %v4474, %v4467
  %v5014 = vpack.c.b16 %v4475, %v4468
  %v5015 = vpack.c.b16 %v4476, %v4469
  %v5016 = vpack.c.b16 %v4477, %v4470
  %v5017 = vpack.c.b16 %v4478, %v4471
  %v5018 = vpack.c.b16 %v4486, %v4479
  %v5019 = vpack.c.b16 %v4487, %v4480
  %v5020 = vpack.c.b16 %v4488, %v4481
  %v5021 = vpack.c.b16 %v4489, %v4482
  %v5022 = vpack.c.b16 %v4490, %v4483
  %v5023 = vpack.c.b16 %v4491, %v4484
  %v5024 = vpack.c.b16 %v4492, %v4485
  %v5025 = vpack.c.b16 %v4500, %v4493
  %v5026 = vpack.c.b16 %v4501, %v4494
  %v5027 = vpack.c.b16 %v4502, %v4495
  %v5028 = vpack.c.b16 %v4503, %v4496
  %v5029 = vpack.c.b16 %v4504, %v4497
  %v5030 = vpack.c.b16 %v4505, %v4498
  %v5031 = vpack.c.b16 %v4506, %v4499
  %v5032 = vpack.c.b16 %v4514, %v4507
  %v5033 = vpack.c.b16 %v4515, %v4508
  %v5034 = vpack.c.b16 %v4516, %v4509
  %v5035 = vpack.c.b16 %v4517, %v4510
  %v5036 = vpack.c.b16 %v4518, %v4511
  %v5037 = vpack.c.b16 %v4519, %v4512
  %v5038 = vpack.c.b16 %v4520, %v4513
  %v5039 = vpack.c.b16 %v4528, %v4521
  %v5040 = vpack.c.b16 %v4529, %v4522
  %v5041 = vpack.c.b16 %v4530, %v4523
  %v5042 = vpack.c.b16 %v4531, %v4524
  %v5043 = vpack.c.b16 %v4532, %v4525
  %v5044 = vpack.c.b16 %v4533, %v4526
  %v5045 = vpack.c.b16 %v4534, %v4527
  %v5046 = vpack.c.b16 %v4542, %v4535
  %v5047 = vpack.c.b16 %v4543, %v4536
  %v5048 = vpack.c.b16 %v4544, %v4537
  %v5049 = vpack.c.b16 %v4545, %v4538
  %v5050 = vpack.c.b16 %v4546, %v4539
  %v5051 = vpack.c.b16 %v4547, %v4540
  %v5052 = vpack.c.b16 %v4548, %v4541
  %v5053 = vpack.c.b16 %v4556, %v4549
  %v5054 = vpack.c.b16 %v4557, %v4550
  %v5055 = vpack.c.b16 %v4558, %v4551
  %v5056 = vpack.c.b16 %v4559, %v4552
  %v5057 = vpack.c.b16 %v4560, %v4553
  %v5058 = vpack.c.b16 %v4561, %v4554
  %v5059 = vpack.c.b16 %v4562, %v4555
  %v5060 = vpack.c.b16 %v4570, %v4563
  %v5061 = vpack.c.b16 %v4571, %v4564
  %v5062 = vpack.c.b16 %v4572, %v4565
  %v5063 = vpack.c.b16 %v4573, %v4566
  %v5064 = vpack.c.b16 %v4574, %v4567
  %v5065 = vpack.c.b16 %v4575, %v4568
  %v5066 = vpack.c.b16 %v4576, %v4569
  %v5067 = vpack.c.b16 %v4584, %v4577
  %v5068 = vpack.c.b16 %v4585, %v4578
  %v5069 = vpack.c.b16 %v4586, %v4579
  %v5070 = vpack.c.b16 %v4587, %v4580
  %v5071 = vpack.c.b16 %v4588, %v4581
  %v5072 = vpack.c.b16 %v4589, %v4582
  %v5073 = vpack.c.b16 %v4590, %v4583
  %v5074 = vpack.c.b16 %v4598, %v4591
  %v5075 = vpack.c.b16 %v4599, %v4592
  %v5076 = vpack.c.b16 %v4600, %v4593
  %v5077 = vpack.c.b16 %v4601, %v4594
  %v5078 = vpack.c.b16 %v4602, %v4595
  %v5079 = vpack.c.b16 %v4603, %v4596
  %v5080 = vpack.c.b16 %v4604, %v4597
  %v5081 = vpack.c.b16 %v4612, %v4605
  %v5082 = vpack.c.b16 %v4613, %v4606
  %v5083 = vpack.c.b16 %v4614, %v4607
  %v5084 = vpack.c.b16 %v4615, %v4608
  %v5085 = vpack.c.b16 %v4616, %v4609
  %v5086 = vpack.c.b16 %v4617, %v4610
  %v5087 = vpack.c.b16 %v4618, %v4611
  %v5088 = vpack.c.b16 %v4626, %v4619
  %v5089 = vpack.c.b16 %v4627, %v4620
  %v5090 = vpack.c.b16 %v4628, %v4621
  %v5091 = vpack.c.b16 %v4629, %v4622
  %v5092 = vpack.c.b16 %v4630, %v4623
  %v5093 = vpack.c.b16 %v4631, %v4624
  %v5094 = vpack.c.b16 %v4632, %v4625
  %v5095 = vpack.c.b16 %v4640, %v4633
  %v5096 = vpack.c.b16 %v4641, %v4634
  %v5097 = vpack.c.b16 %v4642, %v4635
  %v5098 = vpack.c.b16 %v4643, %v4636
  %v5099 = vpack.c.b16 %v4644, %v4637
  %v5100 = vpack.c.b16 %v4645, %v4638
  %v5101 = vpack.c.b16 %v4646, %v4639
  %v5102 = vpack.c.b16 %v4654, %v4647
  %v5103 = vpack.c.b16 %v4655, %v4648
  %v5104 = vpack.c.b16 %v4656, %v4649
  %v5105 = vpack.c.b16 %v4657, %v4650
  %v5106 = vpack.c.b16 %v4658, %v4651
  %v5107 = vpack.c.b16 %v4659, %v4652
  %v5108 = vpack.c.b16 %v4660, %v4653
  %5557 = vmatprep.subr.bf16.mxu0 %v4711
  %5558 = vmatpush1.bf16.msra.mxu0 %v4710
  %5559 = vmatprep.subr.bf16.mxu0 %v4704
  %5560 = vmatpush1.bf16.msra.mxu0 %v4703
  %5561 = vmatprep.subr.bf16.mxu0 %v4697
  %5562 = vmatpush1.bf16.msra.mxu0 %v4696
  %5563 = vmatprep.subr.bf16.mxu0 %v4690
  %5564 = vmatpush1.bf16.msra.mxu0 %v4689
  %5565 = vmatprep.subr.bf16.mxu0 %v4683
  %5566 = vmatpush1.bf16.msra.mxu0 %v4682
  %5567 = vmatprep.subr.bf16.mxu0 %v4676
  %5568 = vmatpush1.bf16.msra.mxu0 %v4675
  %5569 = vmatprep.subr.bf16.mxu0 %v4669
  %5570 = vmatpush1.bf16.msra.mxu0 %v4668
  %5571 = vmatprep.subr.bf16.mxu0 %v4662
  %5572 = vmatpush1.bf16.msra.mxu0 %v4661
  %5573 = vmatprep.subr.bf16.mxu0 %v4767
  %5574 = vmatpush2.bf16.msra.mxu0 %v4766
  %5575 = vmatprep.subr.bf16.mxu0 %v4760
  %5576 = vmatpush2.bf16.msra.mxu0 %v4759
  %5577 = vmatprep.subr.bf16.mxu0 %v4753
  %5578 = vmatpush2.bf16.msra.mxu0 %v4752
  %5579 = vmatprep.subr.bf16.mxu0 %v4746
  %5580 = vmatpush2.bf16.msra.mxu0 %v4745
  %5581 = vmatprep.subr.bf16.mxu0 %v4739
  %5582 = vmatpush2.bf16.msra.mxu0 %v4738
  %5583 = vmatprep.subr.bf16.mxu0 %v4732
  %5584 = vmatpush2.bf16.msra.mxu0 %v4731
  %5585 = vmatprep.subr.bf16.mxu0 %v4725
  %5586 = vmatpush2.bf16.msra.mxu0 %v4724
  %5587 = vmatprep.subr.bf16.mxu0 %v4718
  %5588 = vmatpush2.bf16.msra.mxu0 %v4717
  %5589 = vmatprep.mubr.bf16.mxu0 %v2697
  %5590 = vmatmul.mubr.bf16.gmra.mxu0 %v2696
  %v5591 = vpop.f32.mrf.mxu0
  %v5592 = vadd.f32 %v3221, %v5591
  %v5593 = vpop.f32.mrf.mxu0
  %v5594 = vadd.f32 %v3225, %v5593
  %v5595 = vpop.f32.mrf.mxu0
  %v5596 = vadd.f32 %v3221, %v5595
  %v5597 = vpop.f32.mrf.mxu0
  %v5598 = vadd.f32 %v3225, %v5597
  %5599 = vdwg.mxu0
  %5600 = vmatprep.subr.bf16.mxu0 %v4823
  %5601 = vmatpush1.bf16.msra.mxu0 %v4822
  %5602 = vmatprep.subr.bf16.mxu0 %v4816
  %5603 = vmatpush1.bf16.msra.mxu0 %v4815
  %5604 = vmatprep.subr.bf16.mxu0 %v4809
  %5605 = vmatpush1.bf16.msra.mxu0 %v4808
  %5606 = vmatprep.subr.bf16.mxu0 %v4802
  %5607 = vmatpush1.bf16.msra.mxu0 %v4801
  %5608 = vmatprep.subr.bf16.mxu0 %v4795
  %5609 = vmatpush1.bf16.msra.mxu0 %v4794
  %5610 = vmatprep.subr.bf16.mxu0 %v4788
  %5611 = vmatpush1.bf16.msra.mxu0 %v4787
  %5612 = vmatprep.subr.bf16.mxu0 %v4781
  %5613 = vmatpush1.bf16.msra.mxu0 %v4780
  %5614 = vmatprep.subr.bf16.mxu0 %v4774
  %5615 = vmatpush1.bf16.msra.mxu0 %v4773
  %5616 = vmatprep.subr.bf16.mxu0 %v4879
  %5617 = vmatpush2.bf16.msra.mxu0 %v4878
  %5618 = vmatprep.subr.bf16.mxu0 %v4872
  %5619 = vmatpush2.bf16.msra.mxu0 %v4871
  %5620 = vmatprep.subr.bf16.mxu0 %v4865
  %5621 = vmatpush2.bf16.msra.mxu0 %v4864
  %5622 = vmatprep.subr.bf16.mxu0 %v4858
  %5623 = vmatpush2.bf16.msra.mxu0 %v4857
  %5624 = vmatprep.subr.bf16.mxu0 %v4851
  %5625 = vmatpush2.bf16.msra.mxu0 %v4850
  %5626 = vmatprep.subr.bf16.mxu0 %v4844
  %5627 = vmatpush2.bf16.msra.mxu0 %v4843
  %5628 = vmatprep.subr.bf16.mxu0 %v4837
  %5629 = vmatpush2.bf16.msra.mxu0 %v4836
  %5630 = vmatprep.subr.bf16.mxu0 %v4830
  %5631 = vmatpush2.bf16.msra.mxu0 %v4829
  %5632 = vmatprep.mubr.bf16.mxu0 %v2699
  %5633 = vmatmul.mubr.bf16.gmra.mxu0 %v2698
  %v5634 = vpop.f32.mrf.mxu0
  %v5635 = vadd.f32 %v5592, %v5634
  %v5636 = vpop.f32.mrf.mxu0
  %v5637 = vadd.f32 %v5594, %v5636
  %v5638 = vpop.f32.mrf.mxu0
  %v5639 = vadd.f32 %v5596, %v5638
  %v5640 = vpop.f32.mrf.mxu0
  %v5641 = vadd.f32 %v5598, %v5640
  %5642 = vdwg.mxu0
  %5643 = vmatprep.subr.bf16.mxu0 %v4935
  %5644 = vmatpush1.bf16.msra.mxu0 %v4934
  %5645 = vmatprep.subr.bf16.mxu0 %v4928
  %5646 = vmatpush1.bf16.msra.mxu0 %v4927
  %5647 = vmatprep.subr.bf16.mxu0 %v4921
  %5648 = vmatpush1.bf16.msra.mxu0 %v4920
  %5649 = vmatprep.subr.bf16.mxu0 %v4914
  %5650 = vmatpush1.bf16.msra.mxu0 %v4913
  %5651 = vmatprep.subr.bf16.mxu0 %v4907
  %5652 = vmatpush1.bf16.msra.mxu0 %v4906
  %5653 = vmatprep.subr.bf16.mxu0 %v4900
  %5654 = vmatpush1.bf16.msra.mxu0 %v4899
  %5655 = vmatprep.subr.bf16.mxu0 %v4893
  %5656 = vmatpush1.bf16.msra.mxu0 %v4892
  %5657 = vmatprep.subr.bf16.mxu0 %v4886
  %5658 = vmatpush1.bf16.msra.mxu0 %v4885
  %5659 = vmatprep.subr.bf16.mxu0 %v4991
  %5660 = vmatpush2.bf16.msra.mxu0 %v4990
  %5661 = vmatprep.subr.bf16.mxu0 %v4984
  %5662 = vmatpush2.bf16.msra.mxu0 %v4983
  %5663 = vmatprep.subr.bf16.mxu0 %v4977
  %5664 = vmatpush2.bf16.msra.mxu0 %v4976
  %5665 = vmatprep.subr.bf16.mxu0 %v4970
  %5666 = vmatpush2.bf16.msra.mxu0 %v4969
  %5667 = vmatprep.subr.bf16.mxu0 %v4963
  %5668 = vmatpush2.bf16.msra.mxu0 %v4962
  %5669 = vmatprep.subr.bf16.mxu0 %v4956
  %5670 = vmatpush2.bf16.msra.mxu0 %v4955
  %5671 = vmatprep.subr.bf16.mxu0 %v4949
  %5672 = vmatpush2.bf16.msra.mxu0 %v4948
  %5673 = vmatprep.subr.bf16.mxu0 %v4942
  %5674 = vmatpush2.bf16.msra.mxu0 %v4941
  %5675 = vmatprep.mubr.bf16.mxu0 %v2701
  %5676 = vmatmul.mubr.bf16.gmra.mxu0 %v2700
  %v5677 = vpop.f32.mrf.mxu0
  %v5678 = vadd.f32 %v5635, %v5677
  %v5679 = vpop.f32.mrf.mxu0
  %v5680 = vadd.f32 %v5637, %v5679
  %v5681 = vpop.f32.mrf.mxu0
  %v5682 = vadd.f32 %v5639, %v5681
  %v5683 = vpop.f32.mrf.mxu0
  %v5684 = vadd.f32 %v5641, %v5683
  %5685 = vdwg.mxu0
  %5686 = vmatprep.subr.bf16.mxu0 %v5047
  %5687 = vmatpush1.bf16.msra.mxu0 %v5046
  %5688 = vmatprep.subr.bf16.mxu0 %v5040
  %5689 = vmatpush1.bf16.msra.mxu0 %v5039
  %5690 = vmatprep.subr.bf16.mxu0 %v5033
  %5691 = vmatpush1.bf16.msra.mxu0 %v5032
  %5692 = vmatprep.subr.bf16.mxu0 %v5026
  %5693 = vmatpush1.bf16.msra.mxu0 %v5025
  %5694 = vmatprep.subr.bf16.mxu0 %v5019
  %5695 = vmatpush1.bf16.msra.mxu0 %v5018
  %5696 = vmatprep.subr.bf16.mxu0 %v5012
  %5697 = vmatpush1.bf16.msra.mxu0 %v5011
  %5698 = vmatprep.subr.bf16.mxu0 %v5005
  %5699 = vmatpush1.bf16.msra.mxu0 %v5004
  %5700 = vmatprep.subr.bf16.mxu0 %v4998
  %5701 = vmatpush1.bf16.msra.mxu0 %v4997
  %5702 = vmatprep.subr.bf16.mxu0 %v5103
  %5703 = vmatpush2.bf16.msra.mxu0 %v5102
  %5704 = vmatprep.subr.bf16.mxu0 %v5096
  %5705 = vmatpush2.bf16.msra.mxu0 %v5095
  %5706 = vmatprep.subr.bf16.mxu0 %v5089
  %5707 = vmatpush2.bf16.msra.mxu0 %v5088
  %5708 = vmatprep.subr.bf16.mxu0 %v5082
  %5709 = vmatpush2.bf16.msra.mxu0 %v5081
  %5710 = vmatprep.subr.bf16.mxu0 %v5075
  %5711 = vmatpush2.bf16.msra.mxu0 %v5074
  %5712 = vmatprep.subr.bf16.mxu0 %v5068
  %5713 = vmatpush2.bf16.msra.mxu0 %v5067
  %5714 = vmatprep.subr.bf16.mxu0 %v5061
  %5715 = vmatpush2.bf16.msra.mxu0 %v5060
  %5716 = vmatprep.subr.bf16.mxu0 %v5054
  %5717 = vmatpush2.bf16.msra.mxu0 %v5053
  %5718 = vmatprep.mubr.bf16.mxu0 %v2703
  %5719 = vmatmul.mubr.bf16.gmra.mxu0 %v2702
  %v5720 = vpop.f32.mrf.mxu0
  %v5721 = vadd.f32 %v5678, %v5720
  %v5722 = vpop.f32.mrf.mxu0
  %v5723 = vadd.f32 %v5680, %v5722
  %v5724 = vpop.f32.mrf.mxu0
  %v5725 = vadd.f32 %v5682, %v5724
  %v5726 = vpop.f32.mrf.mxu0
  %v5727 = vadd.f32 %v5684, %v5726
  %5728 = vdwg.mxu0
  %5729 = vmatprep.subr.bf16.mxu0 %v4713
  %5730 = vmatpush1.bf16.msra.mxu0 %v4712
  %5731 = vmatprep.subr.bf16.mxu0 %v4706
  %5732 = vmatpush1.bf16.msra.mxu0 %v4705
  %5733 = vmatprep.subr.bf16.mxu0 %v4699
  %5734 = vmatpush1.bf16.msra.mxu0 %v4698
  %5735 = vmatprep.subr.bf16.mxu0 %v4692
  %5736 = vmatpush1.bf16.msra.mxu0 %v4691
  %5737 = vmatprep.subr.bf16.mxu0 %v4685
  %5738 = vmatpush1.bf16.msra.mxu0 %v4684
  %5739 = vmatprep.subr.bf16.mxu0 %v4678
  %5740 = vmatpush1.bf16.msra.mxu0 %v4677
  %5741 = vmatprep.subr.bf16.mxu0 %v4671
  %5742 = vmatpush1.bf16.msra.mxu0 %v4670
  %5743 = vmatprep.subr.bf16.mxu0 %v4664
  %5744 = vmatpush1.bf16.msra.mxu0 %v4663
  %5745 = vmatprep.subr.bf16.mxu0 %v4769
  %5746 = vmatpush2.bf16.msra.mxu0 %v4768
  %5747 = vmatprep.subr.bf16.mxu0 %v4762
  %5748 = vmatpush2.bf16.msra.mxu0 %v4761
  %5749 = vmatprep.subr.bf16.mxu0 %v4755
  %5750 = vmatpush2.bf16.msra.mxu0 %v4754
  %5751 = vmatprep.subr.bf16.mxu0 %v4748
  %5752 = vmatpush2.bf16.msra.mxu0 %v4747
  %5753 = vmatprep.subr.bf16.mxu0 %v4741
  %5754 = vmatpush2.bf16.msra.mxu0 %v4740
  %5755 = vmatprep.subr.bf16.mxu0 %v4734
  %5756 = vmatpush2.bf16.msra.mxu0 %v4733
  %5757 = vmatprep.subr.bf16.mxu0 %v4727
  %5758 = vmatpush2.bf16.msra.mxu0 %v4726
  %5759 = vmatprep.subr.bf16.mxu0 %v4720
  %5760 = vmatpush2.bf16.msra.mxu0 %v4719
  %5761 = vmatprep.mubr.bf16.mxu0 %v2697
  %5762 = vmatmul.mubr.bf16.gmra.mxu0 %v2696
  %v5763 = vpop.f32.mrf.mxu0
  %v5764 = vadd.f32 %v3229, %v5763
  %v5765 = vpop.f32.mrf.mxu0
  %v5766 = vadd.f32 %v3233, %v5765
  %v5767 = vpop.f32.mrf.mxu0
  %v5768 = vadd.f32 %v3229, %v5767
  %v5769 = vpop.f32.mrf.mxu0
  %v5770 = vadd.f32 %v3233, %v5769
  %5771 = vdwg.mxu0
  %5772 = vmatprep.subr.bf16.mxu0 %v4825
  %5773 = vmatpush1.bf16.msra.mxu0 %v4824
  %5774 = vmatprep.subr.bf16.mxu0 %v4818
  %5775 = vmatpush1.bf16.msra.mxu0 %v4817
  %5776 = vmatprep.subr.bf16.mxu0 %v4811
  %5777 = vmatpush1.bf16.msra.mxu0 %v4810
  %5778 = vmatprep.subr.bf16.mxu0 %v4804
  %5779 = vmatpush1.bf16.msra.mxu0 %v4803
  %5780 = vmatprep.subr.bf16.mxu0 %v4797
  %5781 = vmatpush1.bf16.msra.mxu0 %v4796
  %5782 = vmatprep.subr.bf16.mxu0 %v4790
  %5783 = vmatpush1.bf16.msra.mxu0 %v4789
  %5784 = vmatprep.subr.bf16.mxu0 %v4783
  %5785 = vmatpush1.bf16.msra.mxu0 %v4782
  %5786 = vmatprep.subr.bf16.mxu0 %v4776
  %5787 = vmatpush1.bf16.msra.mxu0 %v4775
  %5788 = vmatprep.subr.bf16.mxu0 %v4881
  %5789 = vmatpush2.bf16.msra.mxu0 %v4880
  %5790 = vmatprep.subr.bf16.mxu0 %v4874
  %5791 = vmatpush2.bf16.msra.mxu0 %v4873
  %5792 = vmatprep.subr.bf16.mxu0 %v4867
  %5793 = vmatpush2.bf16.msra.mxu0 %v4866
  %5794 = vmatprep.subr.bf16.mxu0 %v4860
  %5795 = vmatpush2.bf16.msra.mxu0 %v4859
  %5796 = vmatprep.subr.bf16.mxu0 %v4853
  %5797 = vmatpush2.bf16.msra.mxu0 %v4852
  %5798 = vmatprep.subr.bf16.mxu0 %v4846
  %5799 = vmatpush2.bf16.msra.mxu0 %v4845
  %5800 = vmatprep.subr.bf16.mxu0 %v4839
  %5801 = vmatpush2.bf16.msra.mxu0 %v4838
  %5802 = vmatprep.subr.bf16.mxu0 %v4832
  %5803 = vmatpush2.bf16.msra.mxu0 %v4831
  %5804 = vmatprep.mubr.bf16.mxu0 %v2699
  %5805 = vmatmul.mubr.bf16.gmra.mxu0 %v2698
  %v5806 = vpop.f32.mrf.mxu0
  %v5807 = vadd.f32 %v5764, %v5806
  %v5808 = vpop.f32.mrf.mxu0
  %v5809 = vadd.f32 %v5766, %v5808
  %v5810 = vpop.f32.mrf.mxu0
  %v5811 = vadd.f32 %v5768, %v5810
  %v5812 = vpop.f32.mrf.mxu0
  %v5813 = vadd.f32 %v5770, %v5812
  %5814 = vdwg.mxu0
  %5815 = vmatprep.subr.bf16.mxu0 %v4937
  %5816 = vmatpush1.bf16.msra.mxu0 %v4936
  %5817 = vmatprep.subr.bf16.mxu0 %v4930
  %5818 = vmatpush1.bf16.msra.mxu0 %v4929
  %5819 = vmatprep.subr.bf16.mxu0 %v4923
  %5820 = vmatpush1.bf16.msra.mxu0 %v4922
  %5821 = vmatprep.subr.bf16.mxu0 %v4916
  %5822 = vmatpush1.bf16.msra.mxu0 %v4915
  %5823 = vmatprep.subr.bf16.mxu0 %v4909
  %5824 = vmatpush1.bf16.msra.mxu0 %v4908
  %5825 = vmatprep.subr.bf16.mxu0 %v4902
  %5826 = vmatpush1.bf16.msra.mxu0 %v4901
  %5827 = vmatprep.subr.bf16.mxu0 %v4895
  %5828 = vmatpush1.bf16.msra.mxu0 %v4894
  %5829 = vmatprep.subr.bf16.mxu0 %v4888
  %5830 = vmatpush1.bf16.msra.mxu0 %v4887
  %5831 = vmatprep.subr.bf16.mxu0 %v4993
  %5832 = vmatpush2.bf16.msra.mxu0 %v4992
  %5833 = vmatprep.subr.bf16.mxu0 %v4986
  %5834 = vmatpush2.bf16.msra.mxu0 %v4985
  %5835 = vmatprep.subr.bf16.mxu0 %v4979
  %5836 = vmatpush2.bf16.msra.mxu0 %v4978
  %5837 = vmatprep.subr.bf16.mxu0 %v4972
  %5838 = vmatpush2.bf16.msra.mxu0 %v4971
  %5839 = vmatprep.subr.bf16.mxu0 %v4965
  %5840 = vmatpush2.bf16.msra.mxu0 %v4964
  %5841 = vmatprep.subr.bf16.mxu0 %v4958
  %5842 = vmatpush2.bf16.msra.mxu0 %v4957
  %5843 = vmatprep.subr.bf16.mxu0 %v4951
  %5844 = vmatpush2.bf16.msra.mxu0 %v4950
  %5845 = vmatprep.subr.bf16.mxu0 %v4944
  %5846 = vmatpush2.bf16.msra.mxu0 %v4943
  %5847 = vmatprep.mubr.bf16.mxu0 %v2701
  %5848 = vmatmul.mubr.bf16.gmra.mxu0 %v2700
  %v5849 = vpop.f32.mrf.mxu0
  %v5850 = vadd.f32 %v5807, %v5849
  %v5851 = vpop.f32.mrf.mxu0
  %v5852 = vadd.f32 %v5809, %v5851
  %v5853 = vpop.f32.mrf.mxu0
  %v5854 = vadd.f32 %v5811, %v5853
  %v5855 = vpop.f32.mrf.mxu0
  %v5856 = vadd.f32 %v5813, %v5855
  %5857 = vdwg.mxu0
  %5858 = vmatprep.subr.bf16.mxu0 %v5049
  %5859 = vmatpush1.bf16.msra.mxu0 %v5048
  %5860 = vmatprep.subr.bf16.mxu0 %v5042
  %5861 = vmatpush1.bf16.msra.mxu0 %v5041
  %5862 = vmatprep.subr.bf16.mxu0 %v5035
  %5863 = vmatpush1.bf16.msra.mxu0 %v5034
  %5864 = vmatprep.subr.bf16.mxu0 %v5028
  %5865 = vmatpush1.bf16.msra.mxu0 %v5027
  %5866 = vmatprep.subr.bf16.mxu0 %v5021
  %5867 = vmatpush1.bf16.msra.mxu0 %v5020
  %5868 = vmatprep.subr.bf16.mxu0 %v5014
  %5869 = vmatpush1.bf16.msra.mxu0 %v5013
  %5870 = vmatprep.subr.bf16.mxu0 %v5007
  %5871 = vmatpush1.bf16.msra.mxu0 %v5006
  %5872 = vmatprep.subr.bf16.mxu0 %v5000
  %5873 = vmatpush1.bf16.msra.mxu0 %v4999
  %5874 = vmatprep.subr.bf16.mxu0 %v5105
  %5875 = vmatpush2.bf16.msra.mxu0 %v5104
  %5876 = vmatprep.subr.bf16.mxu0 %v5098
  %5877 = vmatpush2.bf16.msra.mxu0 %v5097
  %5878 = vmatprep.subr.bf16.mxu0 %v5091
  %5879 = vmatpush2.bf16.msra.mxu0 %v5090
  %5880 = vmatprep.subr.bf16.mxu0 %v5084
  %5881 = vmatpush2.bf16.msra.mxu0 %v5083
  %5882 = vmatprep.subr.bf16.mxu0 %v5077
  %5883 = vmatpush2.bf16.msra.mxu0 %v5076
  %5884 = vmatprep.subr.bf16.mxu0 %v5070
  %5885 = vmatpush2.bf16.msra.mxu0 %v5069
  %5886 = vmatprep.subr.bf16.mxu0 %v5063
  %5887 = vmatpush2.bf16.msra.mxu0 %v5062
  %5888 = vmatprep.subr.bf16.mxu0 %v5056
  %5889 = vmatpush2.bf16.msra.mxu0 %v5055
  %5890 = vmatprep.mubr.bf16.mxu0 %v2703
  %5891 = vmatmul.mubr.bf16.gmra.mxu0 %v2702
  %v5892 = vpop.f32.mrf.mxu0
  %v5893 = vadd.f32 %v5850, %v5892
  %v5894 = vpop.f32.mrf.mxu0
  %v5895 = vadd.f32 %v5852, %v5894
  %v5896 = vpop.f32.mrf.mxu0
  %v5897 = vadd.f32 %v5854, %v5896
  %v5898 = vpop.f32.mrf.mxu0
  %v5899 = vadd.f32 %v5856, %v5898
  %5900 = vdwg.mxu0
  %5901 = vmatprep.subr.bf16.mxu0 %v4715
  %5902 = vmatpush1.bf16.msra.mxu0 %v4714
  %5903 = vmatprep.subr.bf16.mxu0 %v4708
  %5904 = vmatpush1.bf16.msra.mxu0 %v4707
  %5905 = vmatprep.subr.bf16.mxu0 %v4701
  %5906 = vmatpush1.bf16.msra.mxu0 %v4700
  %5907 = vmatprep.subr.bf16.mxu0 %v4694
  %5908 = vmatpush1.bf16.msra.mxu0 %v4693
  %5909 = vmatprep.subr.bf16.mxu0 %v4687
  %5910 = vmatpush1.bf16.msra.mxu0 %v4686
  %5911 = vmatprep.subr.bf16.mxu0 %v4680
  %5912 = vmatpush1.bf16.msra.mxu0 %v4679
  %5913 = vmatprep.subr.bf16.mxu0 %v4673
  %5914 = vmatpush1.bf16.msra.mxu0 %v4672
  %5915 = vmatprep.subr.bf16.mxu0 %v4666
  %5916 = vmatpush1.bf16.msra.mxu0 %v4665
  %5917 = vmatprep.subr.bf16.mxu0 %v4771
  %5918 = vmatpush2.bf16.msra.mxu0 %v4770
  %5919 = vmatprep.subr.bf16.mxu0 %v4764
  %5920 = vmatpush2.bf16.msra.mxu0 %v4763
  %5921 = vmatprep.subr.bf16.mxu0 %v4757
  %5922 = vmatpush2.bf16.msra.mxu0 %v4756
  %5923 = vmatprep.subr.bf16.mxu0 %v4750
  %5924 = vmatpush2.bf16.msra.mxu0 %v4749
  %5925 = vmatprep.subr.bf16.mxu0 %v4743
  %5926 = vmatpush2.bf16.msra.mxu0 %v4742
  %5927 = vmatprep.subr.bf16.mxu0 %v4736
  %5928 = vmatpush2.bf16.msra.mxu0 %v4735
  %5929 = vmatprep.subr.bf16.mxu0 %v4729
  %5930 = vmatpush2.bf16.msra.mxu0 %v4728
  %5931 = vmatprep.subr.bf16.mxu0 %v4722
  %5932 = vmatpush2.bf16.msra.mxu0 %v4721
  %5933 = vmatprep.mubr.bf16.mxu0 %v2697
  %5934 = vmatmul.mubr.bf16.gmra.mxu0 %v2696
  %v5935 = vpop.f32.mrf.mxu0
  %v5936 = vadd.f32 %v3237, %v5935
  %v5937 = vpop.f32.mrf.mxu0
  %v5938 = vadd.f32 %v3241, %v5937
  %v5939 = vpop.f32.mrf.mxu0
  %v5940 = vadd.f32 %v3237, %v5939
  %v5941 = vpop.f32.mrf.mxu0
  %v5942 = vadd.f32 %v3241, %v5941
  %5943 = vdwg.mxu0
  %5944 = vmatprep.subr.bf16.mxu0 %v4827
  %5945 = vmatpush1.bf16.msra.mxu0 %v4826
  %5946 = vmatprep.subr.bf16.mxu0 %v4820
  %5947 = vmatpush1.bf16.msra.mxu0 %v4819
  %5948 = vmatprep.subr.bf16.mxu0 %v4813
  %5949 = vmatpush1.bf16.msra.mxu0 %v4812
  %5950 = vmatprep.subr.bf16.mxu0 %v4806
  %5951 = vmatpush1.bf16.msra.mxu0 %v4805
  %5952 = vmatprep.subr.bf16.mxu0 %v4799
  %5953 = vmatpush1.bf16.msra.mxu0 %v4798
  %5954 = vmatprep.subr.bf16.mxu0 %v4792
  %5955 = vmatpush1.bf16.msra.mxu0 %v4791
  %5956 = vmatprep.subr.bf16.mxu0 %v4785
  %5957 = vmatpush1.bf16.msra.mxu0 %v4784
  %5958 = vmatprep.subr.bf16.mxu0 %v4778
  %5959 = vmatpush1.bf16.msra.mxu0 %v4777
  %5960 = vmatprep.subr.bf16.mxu0 %v4883
  %5961 = vmatpush2.bf16.msra.mxu0 %v4882
  %5962 = vmatprep.subr.bf16.mxu0 %v4876
  %5963 = vmatpush2.bf16.msra.mxu0 %v4875
  %5964 = vmatprep.subr.bf16.mxu0 %v4869
  %5965 = vmatpush2.bf16.msra.mxu0 %v4868
  %5966 = vmatprep.subr.bf16.mxu0 %v4862
  %5967 = vmatpush2.bf16.msra.mxu0 %v4861
  %5968 = vmatprep.subr.bf16.mxu0 %v4855
  %5969 = vmatpush2.bf16.msra.mxu0 %v4854
  %5970 = vmatprep.subr.bf16.mxu0 %v4848
  %5971 = vmatpush2.bf16.msra.mxu0 %v4847
  %5972 = vmatprep.subr.bf16.mxu0 %v4841
  %5973 = vmatpush2.bf16.msra.mxu0 %v4840
  %5974 = vmatprep.subr.bf16.mxu0 %v4834
  %5975 = vmatpush2.bf16.msra.mxu0 %v4833
  %5976 = vmatprep.mubr.bf16.mxu0 %v2699
  %5977 = vmatmul.mubr.bf16.gmra.mxu0 %v2698
  %v5978 = vpop.f32.mrf.mxu0
  %v5979 = vadd.f32 %v5936, %v5978
  %v5980 = vpop.f32.mrf.mxu0
  %v5981 = vadd.f32 %v5938, %v5980
  %v5982 = vpop.f32.mrf.mxu0
  %v5983 = vadd.f32 %v5940, %v5982
  %v5984 = vpop.f32.mrf.mxu0
  %v5985 = vadd.f32 %v5942, %v5984
  %5986 = vdwg.mxu0
  %5987 = vmatprep.subr.bf16.mxu0 %v4939
  %5988 = vmatpush1.bf16.msra.mxu0 %v4938
  %5989 = vmatprep.subr.bf16.mxu0 %v4932
  %5990 = vmatpush1.bf16.msra.mxu0 %v4931
  %5991 = vmatprep.subr.bf16.mxu0 %v4925
  %5992 = vmatpush1.bf16.msra.mxu0 %v4924
  %5993 = vmatprep.subr.bf16.mxu0 %v4918
  %5994 = vmatpush1.bf16.msra.mxu0 %v4917
  %5995 = vmatprep.subr.bf16.mxu0 %v4911
  %5996 = vmatpush1.bf16.msra.mxu0 %v4910
  %5997 = vmatprep.subr.bf16.mxu0 %v4904
  %5998 = vmatpush1.bf16.msra.mxu0 %v4903
  %5999 = vmatprep.subr.bf16.mxu0 %v4897
  %6000 = vmatpush1.bf16.msra.mxu0 %v4896
  %6001 = vmatprep.subr.bf16.mxu0 %v4890
  %6002 = vmatpush1.bf16.msra.mxu0 %v4889
  %6003 = vmatprep.subr.bf16.mxu0 %v4995
  %6004 = vmatpush2.bf16.msra.mxu0 %v4994
  %6005 = vmatprep.subr.bf16.mxu0 %v4988
  %6006 = vmatpush2.bf16.msra.mxu0 %v4987
  %6007 = vmatprep.subr.bf16.mxu0 %v4981
  %6008 = vmatpush2.bf16.msra.mxu0 %v4980
  %6009 = vmatprep.subr.bf16.mxu0 %v4974
  %6010 = vmatpush2.bf16.msra.mxu0 %v4973
  %6011 = vmatprep.subr.bf16.mxu0 %v4967
  %6012 = vmatpush2.bf16.msra.mxu0 %v4966
  %6013 = vmatprep.subr.bf16.mxu0 %v4960
  %6014 = vmatpush2.bf16.msra.mxu0 %v4959
  %6015 = vmatprep.subr.bf16.mxu0 %v4953
  %6016 = vmatpush2.bf16.msra.mxu0 %v4952
  %6017 = vmatprep.subr.bf16.mxu0 %v4946
  %6018 = vmatpush2.bf16.msra.mxu0 %v4945
  %6019 = vmatprep.mubr.bf16.mxu0 %v2701
  %6020 = vmatmul.mubr.bf16.gmra.mxu0 %v2700
  %v6021 = vpop.f32.mrf.mxu0
  %v6022 = vadd.f32 %v5979, %v6021
  %v6023 = vpop.f32.mrf.mxu0
  %v6024 = vadd.f32 %v5981, %v6023
  %v6025 = vpop.f32.mrf.mxu0
  %v6026 = vadd.f32 %v5983, %v6025
  %v6027 = vpop.f32.mrf.mxu0
  %v6028 = vadd.f32 %v5985, %v6027
  %6029 = vdwg.mxu0
  %6030 = vmatprep.subr.bf16.mxu0 %v5051
  %6031 = vmatpush1.bf16.msra.mxu0 %v5050
  %6032 = vmatprep.subr.bf16.mxu0 %v5044
  %6033 = vmatpush1.bf16.msra.mxu0 %v5043
  %6034 = vmatprep.subr.bf16.mxu0 %v5037
  %6035 = vmatpush1.bf16.msra.mxu0 %v5036
  %6036 = vmatprep.subr.bf16.mxu0 %v5030
  %6037 = vmatpush1.bf16.msra.mxu0 %v5029
  %6038 = vmatprep.subr.bf16.mxu0 %v5023
  %6039 = vmatpush1.bf16.msra.mxu0 %v5022
  %6040 = vmatprep.subr.bf16.mxu0 %v5016
  %6041 = vmatpush1.bf16.msra.mxu0 %v5015
  %6042 = vmatprep.subr.bf16.mxu0 %v5009
  %6043 = vmatpush1.bf16.msra.mxu0 %v5008
  %6044 = vmatprep.subr.bf16.mxu0 %v5002
  %6045 = vmatpush1.bf16.msra.mxu0 %v5001
  %6046 = vmatprep.subr.bf16.mxu0 %v5107
  %6047 = vmatpush2.bf16.msra.mxu0 %v5106
  %6048 = vmatprep.subr.bf16.mxu0 %v5100
  %6049 = vmatpush2.bf16.msra.mxu0 %v5099
  %6050 = vmatprep.subr.bf16.mxu0 %v5093
  %6051 = vmatpush2.bf16.msra.mxu0 %v5092
  %6052 = vmatprep.subr.bf16.mxu0 %v5086
  %6053 = vmatpush2.bf16.msra.mxu0 %v5085
  %6054 = vmatprep.subr.bf16.mxu0 %v5079
  %6055 = vmatpush2.bf16.msra.mxu0 %v5078
  %6056 = vmatprep.subr.bf16.mxu0 %v5072
  %6057 = vmatpush2.bf16.msra.mxu0 %v5071
  %6058 = vmatprep.subr.bf16.mxu0 %v5065
  %6059 = vmatpush2.bf16.msra.mxu0 %v5064
  %6060 = vmatprep.subr.bf16.mxu0 %v5058
  %6061 = vmatpush2.bf16.msra.mxu0 %v5057
  %6062 = vmatprep.mubr.bf16.mxu0 %v2703
  %6063 = vmatmul.mubr.bf16.gmra.mxu0 %v2702
  %v6064 = vpop.f32.mrf.mxu0
  %v6065 = vadd.f32 %v6022, %v6064
  %v6066 = vpop.f32.mrf.mxu0
  %v6067 = vadd.f32 %v6024, %v6066
  %v6068 = vpop.f32.mrf.mxu0
  %v6069 = vadd.f32 %v6026, %v6068
  %v6070 = vpop.f32.mrf.mxu0
  %v6071 = vadd.f32 %v6028, %v6070
  %6072 = vdwg.mxu0
  %6073 = vmatprep.subr.bf16.mxu0 0
  %6074 = vmatpush1.bf16.msra.mxu0 %v4716
  %6075 = vmatprep.subr.bf16.mxu0 0
  %6076 = vmatpush1.bf16.msra.mxu0 %v4709
  %6077 = vmatprep.subr.bf16.mxu0 0
  %6078 = vmatpush1.bf16.msra.mxu0 %v4702
  %6079 = vmatprep.subr.bf16.mxu0 0
  %6080 = vmatpush1.bf16.msra.mxu0 %v4695
  %6081 = vmatprep.subr.bf16.mxu0 0
  %6082 = vmatpush1.bf16.msra.mxu0 %v4688
  %6083 = vmatprep.subr.bf16.mxu0 0
  %6084 = vmatpush1.bf16.msra.mxu0 %v4681
  %6085 = vmatprep.subr.bf16.mxu0 0
  %6086 = vmatpush1.bf16.msra.mxu0 %v4674
  %6087 = vmatprep.subr.bf16.mxu0 0
  %6088 = vmatpush1.bf16.msra.mxu0 %v4667
  %6089 = vmatprep.subr.bf16.mxu0 0
  %6090 = vmatpush2.bf16.msra.mxu0 %v4772
  %6091 = vmatprep.subr.bf16.mxu0 0
  %6092 = vmatpush2.bf16.msra.mxu0 %v4765
  %6093 = vmatprep.subr.bf16.mxu0 0
  %6094 = vmatpush2.bf16.msra.mxu0 %v4758
  %6095 = vmatprep.subr.bf16.mxu0 0
  %6096 = vmatpush2.bf16.msra.mxu0 %v4751
  %6097 = vmatprep.subr.bf16.mxu0 0
  %6098 = vmatpush2.bf16.msra.mxu0 %v4744
  %6099 = vmatprep.subr.bf16.mxu0 0
  %6100 = vmatpush2.bf16.msra.mxu0 %v4737
  %6101 = vmatprep.subr.bf16.mxu0 0
  %6102 = vmatpush2.bf16.msra.mxu0 %v4730
  %6103 = vmatprep.subr.bf16.mxu0 0
  %6104 = vmatpush2.bf16.msra.mxu0 %v4723
  %6105 = vmatprep.mubr.bf16.mxu0 %v2697
  %6106 = vmatmul.mubr.bf16.gmra.mxu0 %v2696
  %v6107 = vpop.f32.mrf.mxu0
  %v6108 = vadd.f32 %v3245, %v6107
  %v6109 = vpop.f32.mrf.mxu0
  %v6110 = vpop.f32.mrf.mxu0
  %v6111 = vadd.f32 %v3245, %v6110
  %v6112 = vpop.f32.mrf.mxu0
  %6113 = vdwg.mxu0
  %6114 = vmatprep.subr.bf16.mxu0 0
  %6115 = vmatpush1.bf16.msra.mxu0 %v4828
  %6116 = vmatprep.subr.bf16.mxu0 0
  %6117 = vmatpush1.bf16.msra.mxu0 %v4821
  %6118 = vmatprep.subr.bf16.mxu0 0
  %6119 = vmatpush1.bf16.msra.mxu0 %v4814
  %6120 = vmatprep.subr.bf16.mxu0 0
  %6121 = vmatpush1.bf16.msra.mxu0 %v4807
  %6122 = vmatprep.subr.bf16.mxu0 0
  %6123 = vmatpush1.bf16.msra.mxu0 %v4800
  %6124 = vmatprep.subr.bf16.mxu0 0
  %6125 = vmatpush1.bf16.msra.mxu0 %v4793
  %6126 = vmatprep.subr.bf16.mxu0 0
  %6127 = vmatpush1.bf16.msra.mxu0 %v4786
  %6128 = vmatprep.subr.bf16.mxu0 0
  %6129 = vmatpush1.bf16.msra.mxu0 %v4779
  %6130 = vmatprep.subr.bf16.mxu0 0
  %6131 = vmatpush2.bf16.msra.mxu0 %v4884
  %6132 = vmatprep.subr.bf16.mxu0 0
  %6133 = vmatpush2.bf16.msra.mxu0 %v4877
  %6134 = vmatprep.subr.bf16.mxu0 0
  %6135 = vmatpush2.bf16.msra.mxu0 %v4870
  %6136 = vmatprep.subr.bf16.mxu0 0
  %6137 = vmatpush2.bf16.msra.mxu0 %v4863
  %6138 = vmatprep.subr.bf16.mxu0 0
  %6139 = vmatpush2.bf16.msra.mxu0 %v4856
  %6140 = vmatprep.subr.bf16.mxu0 0
  %6141 = vmatpush2.bf16.msra.mxu0 %v4849
  %6142 = vmatprep.subr.bf16.mxu0 0
  %6143 = vmatpush2.bf16.msra.mxu0 %v4842
  %6144 = vmatprep.subr.bf16.mxu0 0
  %6145 = vmatpush2.bf16.msra.mxu0 %v4835
  %6146 = vmatprep.mubr.bf16.mxu0 %v2699
  %6147 = vmatmul.mubr.bf16.gmra.mxu0 %v2698
  %v6148 = vpop.f32.mrf.mxu0
  %v6149 = vadd.f32 %v6108, %v6148
  %v6150 = vpop.f32.mrf.mxu0
  %v6151 = vpop.f32.mrf.mxu0
  %v6152 = vadd.f32 %v6111, %v6151
  %v6153 = vpop.f32.mrf.mxu0
  %6154 = vdwg.mxu0
  %6155 = vmatprep.subr.bf16.mxu0 0
  %6156 = vmatpush1.bf16.msra.mxu0 %v4940
  %6157 = vmatprep.subr.bf16.mxu0 0
  %6158 = vmatpush1.bf16.msra.mxu0 %v4933
  %6159 = vmatprep.subr.bf16.mxu0 0
  %6160 = vmatpush1.bf16.msra.mxu0 %v4926
  %6161 = vmatprep.subr.bf16.mxu0 0
  %6162 = vmatpush1.bf16.msra.mxu0 %v4919
  %6163 = vmatprep.subr.bf16.mxu0 0
  %6164 = vmatpush1.bf16.msra.mxu0 %v4912
  %6165 = vmatprep.subr.bf16.mxu0 0
  %6166 = vmatpush1.bf16.msra.mxu0 %v4905
  %6167 = vmatprep.subr.bf16.mxu0 0
  %6168 = vmatpush1.bf16.msra.mxu0 %v4898
  %6169 = vmatprep.subr.bf16.mxu0 0
  %6170 = vmatpush1.bf16.msra.mxu0 %v4891
  %6171 = vmatprep.subr.bf16.mxu0 0
  %6172 = vmatpush2.bf16.msra.mxu0 %v4996
  %6173 = vmatprep.subr.bf16.mxu0 0
  %6174 = vmatpush2.bf16.msra.mxu0 %v4989
  %6175 = vmatprep.subr.bf16.mxu0 0
  %6176 = vmatpush2.bf16.msra.mxu0 %v4982
  %6177 = vmatprep.subr.bf16.mxu0 0
  %6178 = vmatpush2.bf16.msra.mxu0 %v4975
  %6179 = vmatprep.subr.bf16.mxu0 0
  %6180 = vmatpush2.bf16.msra.mxu0 %v4968
  %6181 = vmatprep.subr.bf16.mxu0 0
  %6182 = vmatpush2.bf16.msra.mxu0 %v4961
  %6183 = vmatprep.subr.bf16.mxu0 0
  %6184 = vmatpush2.bf16.msra.mxu0 %v4954
  %6185 = vmatprep.subr.bf16.mxu0 0
  %6186 = vmatpush2.bf16.msra.mxu0 %v4947
  %6187 = vmatprep.mubr.bf16.mxu0 %v2701
  %6188 = vmatmul.mubr.bf16.gmra.mxu0 %v2700
  %v6189 = vpop.f32.mrf.mxu0
  %v6190 = vadd.f32 %v6149, %v6189
  %v6191 = vpop.f32.mrf.mxu0
  %v6192 = vpop.f32.mrf.mxu0
  %v6193 = vadd.f32 %v6152, %v6192
  %v6194 = vpop.f32.mrf.mxu0
  %6195 = vdwg.mxu0
  %6196 = vmatprep.subr.bf16.mxu0 0
  %6197 = vmatpush1.bf16.msra.mxu0 %v5052
  %6198 = vmatprep.subr.bf16.mxu0 0
  %6199 = vmatpush1.bf16.msra.mxu0 %v5045
  %6200 = vmatprep.subr.bf16.mxu0 0
  %6201 = vmatpush1.bf16.msra.mxu0 %v5038
  %6202 = vmatprep.subr.bf16.mxu0 0
  %6203 = vmatpush1.bf16.msra.mxu0 %v5031
  %6204 = vmatprep.subr.bf16.mxu0 0
  %6205 = vmatpush1.bf16.msra.mxu0 %v5024
  %6206 = vmatprep.subr.bf16.mxu0 0
  %6207 = vmatpush1.bf16.msra.mxu0 %v5017
  %6208 = vmatprep.subr.bf16.mxu0 0
  %6209 = vmatpush1.bf16.msra.mxu0 %v5010
  %6210 = vmatprep.subr.bf16.mxu0 0
  %6211 = vmatpush1.bf16.msra.mxu0 %v5003
  %6212 = vmatprep.subr.bf16.mxu0 0
  %6213 = vmatpush2.bf16.msra.mxu0 %v5108
  %6214 = vmatprep.subr.bf16.mxu0 0
  %6215 = vmatpush2.bf16.msra.mxu0 %v5101
  %6216 = vmatprep.subr.bf16.mxu0 0
  %6217 = vmatpush2.bf16.msra.mxu0 %v5094
  %6218 = vmatprep.subr.bf16.mxu0 0
  %6219 = vmatpush2.bf16.msra.mxu0 %v5087
  %6220 = vmatprep.subr.bf16.mxu0 0
  %6221 = vmatpush2.bf16.msra.mxu0 %v5080
  %6222 = vmatprep.subr.bf16.mxu0 0
  %6223 = vmatpush2.bf16.msra.mxu0 %v5073
  %6224 = vmatprep.subr.bf16.mxu0 0
  %6225 = vmatpush2.bf16.msra.mxu0 %v5066
  %6226 = vmatprep.subr.bf16.mxu0 0
  %6227 = vmatpush2.bf16.msra.mxu0 %v5059
  %6228 = vmatprep.mubr.bf16.mxu0 %v2703
  %6229 = vmatmul.mubr.bf16.gmra.mxu0 %v2702
  %v6230 = vpop.f32.mrf.mxu0
  %v6231 = vadd.f32 %v6190, %v6230
  %v6232 = vpop.f32.mrf.mxu0
  %v6233 = vpop.f32.mrf.mxu0
  %v6234 = vadd.f32 %v6193, %v6233
  %v6235 = vpop.f32.mrf.mxu0
  %6236 = vdwg.mxu0
  %v6237 = vtanh.pop %v5721
  %v6238 = vtanh.pop %v5723
  %v6239 = vtanh.pop %v5893
  %v6240 = vtanh.pop %v5895
  %v6241 = vtanh.pop %v6065
  %v6242 = vtanh.pop %v6067
  %v6243 = vtanh.pop %v6231
  %v6244 = vtanh.pop %v5725
  %v6245 = vtanh.pop %v5727
  %v6246 = vtanh.pop %v5897
  %v6247 = vtanh.pop %v5899
  %v6248 = vtanh.pop %v6069
  %v6249 = vtanh.pop %v6071
  %v6250 = vtanh.pop %v6234
  %v6251 = vpack.c.bf16 %v6244, %v6237
  %v6252 = vpack.c.bf16 %v6245, %v6238
  %v6253 = vpack.c.bf16 %v6246, %v6239
  %v6254 = vpack.c.bf16 %v6247, %v6240
  %v6255 = vpack.c.bf16 %v6248, %v6241
  %v6256 = vpack.c.bf16 %v6249, %v6242
  %v6257 = vpack.c.bf16 %v6250, %v6243
  %v6265 = vunpack.c.l.b16 %v6251
  %v6266 = vunpack.c.l.b16 %v6252
  %v6267 = vunpack.c.l.b16 %v6253
  %v6268 = vunpack.c.l.b16 %v6254
  %v6269 = vunpack.c.l.b16 %v6255
  %v6270 = vunpack.c.l.b16 %v6256
  %v6271 = vunpack.c.l.b16 %v6257
  %v6272 = vunpack.c.h.b16 %v6251
  %v6273 = vunpack.c.h.b16 %v6252
  %v6274 = vunpack.c.h.b16 %v6253
  %v6275 = vunpack.c.h.b16 %v6254
  %v6276 = vunpack.c.h.b16 %v6255
  %v6277 = vunpack.c.h.b16 %v6256
  %v6278 = vunpack.c.h.b16 %v6257
  %v6279 = vpack.c.b16 %v6266, %v6265
  %v6280 = vpack.c.b16 %v6268, %v6267
  %v6281 = vpack.c.b16 %v6270, %v6269
  %v6282 = vpack.c.b16 %v6271, %v6271
  %v6283 = vpack.c.b16 %v6273, %v6272
  %v6284 = vpack.c.b16 %v6275, %v6274
  %v6285 = vpack.c.b16 %v6277, %v6276
  %v6286 = vpack.c.b16 %v6278, %v6278
  %6295 = vst [vmem:[%s9] sm:$0xff] %v6279
  %6296 = vst [vmem:[%s9 + $0x8] sm:$0xff] %v6280
  %6297 = vst [vmem:[%s9 + $0x10] sm:$0xff] %v6281
  %vm6298 = vcmask 125952
  %6299 = vst.msk [vmem:[%s9 + $0x18] sm:$0xf] %vm6298, %v6282
  %6300 = vst [vmem:[%s9 + $0x1c] sm:$0xff] %v6283
  %6301 = vst [vmem:[%s9 + $0x24] sm:$0xff] %v6284
  %6302 = vst [vmem:[%s9 + $0x2c] sm:$0xff] %v6285
  %6303 = vst.msk [vmem:[%s9 + $0x34] sm:$0xf] %vm6298, %v6286
  // Predicated region
  $region38: #{generator_forward.1} parent=0 // pred_check
    _
  $region39: #{generator_forward.1} parent=0 // pred_check_branch
    %6305 = sbr.rel (0) target = $region41
  $region40: #{generator_forward.1} parent=0 // pred_region
    _
  $region41: #{generator_forward.1} parent=0 // pred_fallthru
    _
  // Predicated region
  $region42: #{generator_forward.1} parent=0 // pred_check
    _
  $region43: #{generator_forward.1} parent=0 // pred_check_branch
    %6307 = sbr.rel (0) target = $region45
  $region44: #{generator_forward.1} parent=0 // pred_region
    _
  $region45: #{generator_forward.1} parent=0 // pred_fallthru
    _

</llo_original>
